<compile_context>
chip_gen: v7x
topology: tpu7x:2x2x1
jax: 0.10.0
libtpu: 0.0.40
codegen_flags: <defaults>
</compile_context>

<pallas_src>
import jax
import jax.numpy as jnp
from jax.experimental import pallas as pl
from jax.experimental.pallas import tpu as pltpu


# ----------------------------------------------------------------------------
# Fully fused Classifier kernel (one grid step == one batch sample)
# ----------------------------------------------------------------------------
def _make_classifier_kernel(ks, enc_has_res, rev_has_res):
    def kernel(*refs):
        it = iter(refs)
        x1_ref, x2_ref, oh_ref = next(it), next(it), next(it)

        # Hoisted, once-per-step weight loads (no per-sample loop to repeat them).
        def parse(has_res_list):
            blocks = []
            for hr in has_res_list:
                blk = {"w1": next(it)[...], "b1": next(it)[...],
                       "w2": next(it)[...], "b2": next(it)[...]}
                if hr:
                    blk["wr"] = next(it)[...]
                    blk["br"] = next(it)[...]
                blocks.append(blk)
            return blocks

        enc = parse(enc_has_res)
        rev = parse(rev_has_res)
        wh, bh = next(it)[...], next(it)[...]
        o_ref = next(it)

        x1 = x1_ref[0]                      # (L, cin) bf16
        x2 = x2_ref[0]
        L = x1.shape[0]

        def circ_conv(x_bf, w3, dil):
            # out[t] = sum_k x[(t - left + k*dil) % L] @ w3[k]
            # Dot first (bf16 MXU, f32 acc), then sublane-roll the f32 partial
            # product; rolling rows commutes with the per-row matmul, so this
            # is exact and keeps the tap loop cast-free.
            left = dil * (ks - 1) // 2
            acc = None
            for k in range(ks):
                s = (left - k * dil) % L
                part = jnp.dot(x_bf, w3[k], preferred_element_type=jnp.float32)
                if s:
                    part = pltpu.roll(part, s, axis=0)
                acc = part if acc is None else acc + part
            return acc                      # (L, cout) f32

        def apply_block(x_bf, blk, dil):
            # BN scale pre-folded into the weights -> epilogue is bias + ReLU.
            h = jnp.maximum(circ_conv(x_bf, blk["w1"], dil) + blk["b1"], 0.0)
            o = jnp.maximum(
                circ_conv(h.astype(jnp.bfloat16), blk["w2"], dil) + blk["b2"], 0.0)
            if "wr" in blk:                 # 1x1 residual conv (has bias)
                res = jnp.dot(x_bf, blk["wr"],
                              preferred_element_type=jnp.float32) + blk["br"]
            else:
                res = x_bf.astype(jnp.float32)
            return o + res                  # (L, cout) f32

        def run_layer(x_bf, blocks):
            y = None
            for i, blk in enumerate(blocks):
                y = apply_block(x_bf, blk, 2 ** i)
                x_bf = y.astype(jnp.bfloat16)
            return y                        # f32 output of the last block

        y1 = run_layer(x1, enc)
        y2 = run_layer(x2, enc)
        d = (y1 - y2).astype(jnp.bfloat16)          # fused subtract (f32 math)
        y = run_layer(d, rev)                       # (L, clf_dim) f32
        m = jnp.mean(y, axis=0, keepdims=True)      # fused mean over length
        logits = jnp.dot(m, wh, preferred_element_type=jnp.float32) + bh
        # fused torch.gather: one-hot mask prepared in the wrapper
        o_ref[0] = jnp.sum(logits * oh_ref[0], axis=1, keepdims=True)

    return kernel


# ----------------------------------------------------------------------------
# Host-side weight prep + single pallas_call wrapper
# ----------------------------------------------------------------------------
def _fold_block(p):
    """Fold BN scale into conv weights (inference mode), cast MXU weights bf16."""
    out = {"w1": (p["w1"] * p["s1"][None]).astype(jnp.bfloat16),
           "b1": p["b1"],
           "w2": (p["w2"] * p["s2"][None]).astype(jnp.bfloat16),
           "b2": p["b2"]}
    if "w_res" in p:
        out["wr"] = p["w_res"].astype(jnp.bfloat16)
        out["br"] = p["b_res"]
    return out


def _flatten_blocks(blocks):
    args, has_res = [], []
    for b in blocks:
        args += [b["w1"], b["b1"], b["w2"], b["b2"]]
        hr = "wr" in b
        if hr:
            args += [b["wr"], b["br"]]
        has_res.append(hr)
    return args, has_res


def classifier_forward(params, x1, x2, idx_linear, *, ks):
    B, cin, L = x1.shape
    assert L % 8 == 0, "sublane circular roll wants L to be a multiple of 8"
    o_dim = params["w_head"].shape[-1]

    # torch NCL -> (B, L, C); bf16 MXU inputs.
    x1b = jnp.transpose(x1.astype(jnp.float32), (0, 2, 1)).astype(jnp.bfloat16)
    x2b = jnp.transpose(x2.astype(jnp.float32), (0, 2, 1)).astype(jnp.bfloat16)
    # torch.gather(y, 1, idx) as an in-kernel one-hot masked reduce.
    onehot = (jnp.arange(o_dim)[None, :] == idx_linear.astype(jnp.int32)[:, None])
    onehot = onehot.astype(jnp.float32).reshape(B, 1, o_dim)

    enc_args, enc_has_res = _flatten_blocks([_fold_block(p) for p in params["encoder"]])
    rev_args, rev_has_res = _flatten_blocks([_fold_block(p) for p in params["revoclf"]])
    w_args = enc_args + rev_args + [params["w_head"], params["b_head"]]

    def _per_sample(shape):
        return pl.BlockSpec(shape, lambda i, _n=len(shape) - 1: (i,) + (0,) * _n)

    def _const(a):
        # Constant-index weight spec (loaded once; at production scale also set
        # pipeline_mode=pl.Buffered(1) to avoid the wasted second buffer).
        return pl.BlockSpec(a.shape, lambda i, _nd=a.ndim: (0,) * _nd)

    in_specs = ([_per_sample((1, L, cin)), _per_sample((1, L, cin)),
                 _per_sample((1, 1, o_dim))] + [_const(a) for a in w_args])

    out = pl.pallas_call(
        _make_classifier_kernel(ks, enc_has_res, rev_has_res),
        out_shape=jax.ShapeDtypeStruct((B, 1, 1), jnp.float32),
        grid=(B,),
        in_specs=in_specs,
        out_specs=_per_sample((1, 1, 1)),
        # One sample per step: B=2 gives exactly one step per v7x TensorCore;
        # on single-TC v5e/v6e the extra grid step is ~0.35us, negligible.
        compiler_params=pltpu.CompilerParams(dimension_semantics=("parallel",)),
    )(x1b, x2b, onehot, *w_args)
    return out[:, 0, :]                                          # (B, 1)


# ----------------------------------------------------------------------------
# Deterministic parameter init (shapes follow the PyTorch module's __init__)
# ----------------------------------------------------------------------------
def _bn_affine(key, c, eps=1e-5):
    kg, kb, km, kv = jax.random.split(key, 4)
    gamma = 1.0 + 0.1 * jax.random.normal(kg, (c,), jnp.float32)
    beta = 0.1 * jax.random.normal(kb, (c,), jnp.float32)
    mean = 0.1 * jax.random.normal(km, (c,), jnp.float32)
    var = jax.random.uniform(kv, (c,), jnp.float32, minval=0.5, maxval=1.5)
    scale = gamma / jnp.sqrt(var + eps)
    bias = beta - mean * scale
    return scale.reshape(1, c), bias.reshape(1, c)


def _init_block(key, cin, cout, hdim, ks):
    k = jax.random.split(key, 6)
    p = {
        "w1": 0.1 * jax.random.normal(k[0], (ks, cin, hdim), jnp.float32),
        "w2": 0.1 * jax.random.normal(k[1], (ks, hdim, cout), jnp.float32),
    }
    p["s1"], p["b1"] = _bn_affine(k[2], hdim)
    p["s2"], p["b2"] = _bn_affine(k[3], cout)
    if cin != cout:
        p["w_res"] = 0.1 * jax.random.normal(k[4], (cin, cout), jnp.float32)
        p["b_res"] = 0.1 * jax.random.normal(k[5], (1, cout), jnp.float32)
    return p


def init_params(key, dim_in, dim_out, clf_dim, layers, ks, output_size):
    keys = jax.random.split(key, 2 * layers + 2)
    enc, rev = [], []
    for i in range(layers):
        cin = dim_in if i == 0 else dim_out
        enc.append(_init_block(keys[i], cin, dim_out, dim_out * 2, ks))
    for i in range(layers):
        cin = dim_out if i == 0 else clf_dim
        rev.append(_init_block(keys[layers + i], cin, clf_dim, clf_dim * 2, ks))
    w_head = 0.01 * jax.random.normal(keys[-2], (clf_dim, output_size), jnp.float32)
    b_head = 0.01 * jax.random.normal(keys[-1], (1, output_size), jnp.float32)
    return {"encoder": enc, "revoclf": rev, "w_head": w_head, "b_head": b_head}


# ----------------------------------------------------------------------------
# Pure-JAX f32 reference (for correctness check)
# ----------------------------------------------------------------------------
def _ref_circ_conv(x, w, dil):
    ks = w.shape[0]
    L = x.shape[1]
    left = dil * (ks - 1) // 2
    out = jnp.zeros(x.shape[:2] + (w.shape[-1],), jnp.float32)
    for k in range(ks):
        shift = (left - k * dil) % L
        out = out + jnp.einsum("blc,cd->bld", jnp.roll(x, shift, axis=1), w[k])
    return out


def _ref_block(x, p, dil):
    h = jnp.maximum(_ref_circ_conv(x, p["w1"], dil) * p["s1"] + p["b1"], 0.0)
    o = jnp.maximum(_ref_circ_conv(h, p["w2"], dil) * p["s2"] + p["b2"], 0.0)
    if "w_res" in p:
        res = jnp.einsum("blc,cd->bld", x, p["w_res"]) + p["b_res"]
    else:
        res = x
    return o + res


def reference_forward(params, x1, x2, idx_linear, *, ks):
    x1 = jnp.transpose(x1.astype(jnp.float32), (0, 2, 1))
    x2 = jnp.transpose(x2.astype(jnp.float32), (0, 2, 1))

    def layer(x, blocks):
        for i, p in enumerate(blocks):
            x = _ref_block(x, p, 2 ** i)
        return x

    y = layer(x1, params["encoder"]) - layer(x2, params["encoder"])
    y = layer(y, params["revoclf"])
    m = jnp.mean(y, axis=1)
    logits = m @ params["w_head"] + params["b_head"]
    return jnp.take_along_axis(
        logits, idx_linear.reshape(-1, 1).astype(jnp.int32), axis=1)


# ----------------------------------------------------------------------------
if __name__ == "__main__":
    B, L = 2, 16
    dim_in, dim_out, clf_dim, layers, ks, output_size = 4, 8, 8, 2, 3, 5

    root = jax.random.PRNGKey(0)
    kp, kx1, kx2, ki = jax.random.split(root, 4)
    params = init_params(kp, dim_in, dim_out, clf_dim, layers, ks, output_size)

    # torch-style NCL inputs
    x1 = jax.random.normal(kx1, (B, dim_in, L), jnp.float32)
    x2 = jax.random.normal(kx2, (B, dim_in, L), jnp.float32)
    idx_linear = jax.random.randint(ki, (B,), 0, output_size)

    out = classifier_forward(params, x1, x2, idx_linear, ks=ks)
    out = jax.block_until_ready(out)

    ref = reference_forward(params, x1, x2, idx_linear, ks=ks)
    assert out.shape == (B, 1)
    assert bool(jnp.allclose(out, ref, rtol=2e-2, atol=2e-2)), (out, ref)
    print("KERNEL_OK")
</pallas_src>

<mosaic_0001>
module attributes {stable_mosaic.version = 11 : i64} {
  func.func @kernel(%arg0: i32, %arg1: memref<1x16x4xbf16, #tpu.memory_space<vmem>>, %arg2: memref<1x16x4xbf16, #tpu.memory_space<vmem>>, %arg3: memref<1x1x5xf32, #tpu.memory_space<vmem>>, %arg4: memref<3x4x16xbf16, #tpu.memory_space<vmem>>, %arg5: memref<1x16xf32, #tpu.memory_space<vmem>>, %arg6: memref<3x16x8xbf16, #tpu.memory_space<vmem>>, %arg7: memref<1x8xf32, #tpu.memory_space<vmem>>, %arg8: memref<4x8xbf16, #tpu.memory_space<vmem>>, %arg9: memref<1x8xf32, #tpu.memory_space<vmem>>, %arg10: memref<3x8x16xbf16, #tpu.memory_space<vmem>>, %arg11: memref<1x16xf32, #tpu.memory_space<vmem>>, %arg12: memref<3x16x8xbf16, #tpu.memory_space<vmem>>, %arg13: memref<1x8xf32, #tpu.memory_space<vmem>>, %arg14: memref<3x8x16xbf16, #tpu.memory_space<vmem>>, %arg15: memref<1x16xf32, #tpu.memory_space<vmem>>, %arg16: memref<3x16x8xbf16, #tpu.memory_space<vmem>>, %arg17: memref<1x8xf32, #tpu.memory_space<vmem>>, %arg18: memref<3x8x16xbf16, #tpu.memory_space<vmem>>, %arg19: memref<1x16xf32, #tpu.memory_space<vmem>>, %arg20: memref<3x16x8xbf16, #tpu.memory_space<vmem>>, %arg21: memref<1x8xf32, #tpu.memory_space<vmem>>, %arg22: memref<8x5xf32, #tpu.memory_space<vmem>>, %arg23: memref<1x5xf32, #tpu.memory_space<vmem>>, %arg24: memref<1x1x1xf32, #tpu.memory_space<vmem>>) attributes {dimension_semantics = [#tpu.dimension_semantics<parallel>], iteration_bounds = array<i64: 2>, scalar_prefetch = 0 : i64, scratch_operands = 0 : i64, tpu.core_type = #tpu.core_type<tc>, window_params = [{transform_indices = @transform_0, window_bounds = array<i64: 1, 16, 4>}, {transform_indices = @transform_1, window_bounds = array<i64: 1, 16, 4>}, {transform_indices = @transform_2, window_bounds = array<i64: 1, 1, 5>}, {pipeline_mode = #tpu.pipeline_mode<synchronous>, transform_indices = @transform_3, window_bounds = array<i64: 3, 4, 16>}, {pipeline_mode = #tpu.pipeline_mode<synchronous>, transform_indices = @transform_4, window_bounds = array<i64: 1, 16>}, {pipeline_mode = #tpu.pipeline_mode<synchronous>, transform_indices = @transform_5, window_bounds = array<i64: 3, 16, 8>}, {pipeline_mode = #tpu.pipeline_mode<synchronous>, transform_indices = @transform_6, window_bounds = array<i64: 1, 8>}, {pipeline_mode = #tpu.pipeline_mode<synchronous>, transform_indices = @transform_7, window_bounds = array<i64: 4, 8>}, {pipeline_mode = #tpu.pipeline_mode<synchronous>, transform_indices = @transform_8, window_bounds = array<i64: 1, 8>}, {pipeline_mode = #tpu.pipeline_mode<synchronous>, transform_indices = @transform_9, window_bounds = array<i64: 3, 8, 16>}, {pipeline_mode = #tpu.pipeline_mode<synchronous>, transform_indices = @transform_10, window_bounds = array<i64: 1, 16>}, {pipeline_mode = #tpu.pipeline_mode<synchronous>, transform_indices = @transform_11, window_bounds = array<i64: 3, 16, 8>}, {pipeline_mode = #tpu.pipeline_mode<synchronous>, transform_indices = @transform_12, window_bounds = array<i64: 1, 8>}, {pipeline_mode = #tpu.pipeline_mode<synchronous>, transform_indices = @transform_13, window_bounds = array<i64: 3, 8, 16>}, {pipeline_mode = #tpu.pipeline_mode<synchronous>, transform_indices = @transform_14, window_bounds = array<i64: 1, 16>}, {pipeline_mode = #tpu.pipeline_mode<synchronous>, transform_indices = @transform_15, window_bounds = array<i64: 3, 16, 8>}, {pipeline_mode = #tpu.pipeline_mode<synchronous>, transform_indices = @transform_16, window_bounds = array<i64: 1, 8>}, {pipeline_mode = #tpu.pipeline_mode<synchronous>, transform_indices = @transform_17, window_bounds = array<i64: 3, 8, 16>}, {pipeline_mode = #tpu.pipeline_mode<synchronous>, transform_indices = @transform_18, window_bounds = array<i64: 1, 16>}, {pipeline_mode = #tpu.pipeline_mode<synchronous>, transform_indices = @transform_19, window_bounds = array<i64: 3, 16, 8>}, {pipeline_mode = #tpu.pipeline_mode<synchronous>, transform_indices = @transform_20, window_bounds = array<i64: 1, 8>}, {pipeline_mode = #tpu.pipeline_mode<synchronous>, transform_indices = @transform_21, window_bounds = array<i64: 8, 5>}, {pipeline_mode = #tpu.pipeline_mode<synchronous>, transform_indices = @transform_22, window_bounds = array<i64: 1, 5>}, {transform_indices = @transform_23, window_bounds = array<i64: 1, 1, 1>}]} {
    %c0 = arith.constant 0 : index
    %c0_0 = arith.constant 0 : index
    %c0_1 = arith.constant 0 : index
    %0 = vector.load %arg4[%c0, %c0_0, %c0_1] : memref<3x4x16xbf16, #tpu.memory_space<vmem>>, vector<3x4x16xbf16>
    %c0_2 = arith.constant 0 : index
    %c0_3 = arith.constant 0 : index
    %1 = vector.load %arg5[%c0_2, %c0_3] : memref<1x16xf32, #tpu.memory_space<vmem>>, vector<1x16xf32>
    %c0_4 = arith.constant 0 : index
    %c0_5 = arith.constant 0 : index
    %c0_6 = arith.constant 0 : index
    %2 = vector.load %arg6[%c0_4, %c0_5, %c0_6] : memref<3x16x8xbf16, #tpu.memory_space<vmem>>, vector<3x16x8xbf16>
    %c0_7 = arith.constant 0 : index
    %c0_8 = arith.constant 0 : index
    %3 = vector.load %arg7[%c0_7, %c0_8] : memref<1x8xf32, #tpu.memory_space<vmem>>, vector<1x8xf32>
    %c0_9 = arith.constant 0 : index
    %c0_10 = arith.constant 0 : index
    %4 = vector.load %arg8[%c0_9, %c0_10] : memref<4x8xbf16, #tpu.memory_space<vmem>>, vector<4x8xbf16>
    %c0_11 = arith.constant 0 : index
    %c0_12 = arith.constant 0 : index
    %5 = vector.load %arg9[%c0_11, %c0_12] : memref<1x8xf32, #tpu.memory_space<vmem>>, vector<1x8xf32>
    %c0_13 = arith.constant 0 : index
    %c0_14 = arith.constant 0 : index
    %c0_15 = arith.constant 0 : index
    %6 = vector.load %arg10[%c0_13, %c0_14, %c0_15] : memref<3x8x16xbf16, #tpu.memory_space<vmem>>, vector<3x8x16xbf16>
    %c0_16 = arith.constant 0 : index
    %c0_17 = arith.constant 0 : index
    %7 = vector.load %arg11[%c0_16, %c0_17] : memref<1x16xf32, #tpu.memory_space<vmem>>, vector<1x16xf32>
    %c0_18 = arith.constant 0 : index
    %c0_19 = arith.constant 0 : index
    %c0_20 = arith.constant 0 : index
    %8 = vector.load %arg12[%c0_18, %c0_19, %c0_20] : memref<3x16x8xbf16, #tpu.memory_space<vmem>>, vector<3x16x8xbf16>
    %c0_21 = arith.constant 0 : index
    %c0_22 = arith.constant 0 : index
    %9 = vector.load %arg13[%c0_21, %c0_22] : memref<1x8xf32, #tpu.memory_space<vmem>>, vector<1x8xf32>
    %c0_23 = arith.constant 0 : index
    %c0_24 = arith.constant 0 : index
    %c0_25 = arith.constant 0 : index
    %10 = vector.load %arg14[%c0_23, %c0_24, %c0_25] : memref<3x8x16xbf16, #tpu.memory_space<vmem>>, vector<3x8x16xbf16>
    %c0_26 = arith.constant 0 : index
    %c0_27 = arith.constant 0 : index
    %11 = vector.load %arg15[%c0_26, %c0_27] : memref<1x16xf32, #tpu.memory_space<vmem>>, vector<1x16xf32>
    %c0_28 = arith.constant 0 : index
    %c0_29 = arith.constant 0 : index
    %c0_30 = arith.constant 0 : index
    %12 = vector.load %arg16[%c0_28, %c0_29, %c0_30] : memref<3x16x8xbf16, #tpu.memory_space<vmem>>, vector<3x16x8xbf16>
    %c0_31 = arith.constant 0 : index
    %c0_32 = arith.constant 0 : index
    %13 = vector.load %arg17[%c0_31, %c0_32] : memref<1x8xf32, #tpu.memory_space<vmem>>, vector<1x8xf32>
    %c0_33 = arith.constant 0 : index
    %c0_34 = arith.constant 0 : index
    %c0_35 = arith.constant 0 : index
    %14 = vector.load %arg18[%c0_33, %c0_34, %c0_35] : memref<3x8x16xbf16, #tpu.memory_space<vmem>>, vector<3x8x16xbf16>
    %c0_36 = arith.constant 0 : index
    %c0_37 = arith.constant 0 : index
    %15 = vector.load %arg19[%c0_36, %c0_37] : memref<1x16xf32, #tpu.memory_space<vmem>>, vector<1x16xf32>
    %c0_38 = arith.constant 0 : index
    %c0_39 = arith.constant 0 : index
    %c0_40 = arith.constant 0 : index
    %16 = vector.load %arg20[%c0_38, %c0_39, %c0_40] : memref<3x16x8xbf16, #tpu.memory_space<vmem>>, vector<3x16x8xbf16>
    %c0_41 = arith.constant 0 : index
    %c0_42 = arith.constant 0 : index
    %17 = vector.load %arg21[%c0_41, %c0_42] : memref<1x8xf32, #tpu.memory_space<vmem>>, vector<1x8xf32>
    %c0_43 = arith.constant 0 : index
    %c0_44 = arith.constant 0 : index
    %18 = vector.load %arg22[%c0_43, %c0_44] : memref<8x5xf32, #tpu.memory_space<vmem>>, vector<8x5xf32>
    %c0_45 = arith.constant 0 : index
    %c0_46 = arith.constant 0 : index
    %19 = vector.load %arg23[%c0_45, %c0_46] : memref<1x5xf32, #tpu.memory_space<vmem>>, vector<1x5xf32>
    %c0_47 = arith.constant 0 : index
    %c0_48 = arith.constant 0 : index
    %c0_49 = arith.constant 0 : index
    %20 = vector.load %arg1[%c0_47, %c0_48, %c0_49] : memref<1x16x4xbf16, #tpu.memory_space<vmem>>, vector<1x16x4xbf16>
    %21 = vector.shape_cast %20 : vector<1x16x4xbf16> to vector<16x4xbf16>
    %c0_50 = arith.constant 0 : index
    %c0_51 = arith.constant 0 : index
    %c0_52 = arith.constant 0 : index
    %22 = vector.load %arg2[%c0_50, %c0_51, %c0_52] : memref<1x16x4xbf16, #tpu.memory_space<vmem>>, vector<1x16x4xbf16>
    %23 = vector.shape_cast %22 : vector<1x16x4xbf16> to vector<16x4xbf16>
    %24 = vector.extract_strided_slice %0 {offsets = [0, 0, 0], sizes = [1, 4, 16], strides = [1, 1, 1]} : vector<3x4x16xbf16> to vector<1x4x16xbf16>
    %25 = vector.shape_cast %24 : vector<1x4x16xbf16> to vector<4x16xbf16>
    %cst = arith.constant dense<0.000000e+00> : vector<16x16xf32>
    %26 = tpu.matmul %21, %25, %cst {dimension_numbers = #tpu.dot_dimension_numbers<[1], [0], [0], [1], [0, 0, 1, 1], [], []>} : vector<16x4xbf16>, vector<4x16xbf16>, vector<16x16xf32> -> vector<16x16xf32>
    %c1_i32 = arith.constant 1 : i32
    %27 = tpu.dynamic_rotate %26 by %c1_i32 dim 0 : vector<16x16xf32>, i32 -> vector<16x16xf32>
    %28 = vector.extract_strided_slice %0 {offsets = [1, 0, 0], sizes = [1, 4, 16], strides = [1, 1, 1]} : vector<3x4x16xbf16> to vector<1x4x16xbf16>
    %29 = vector.shape_cast %28 : vector<1x4x16xbf16> to vector<4x16xbf16>
    %cst_53 = arith.constant dense<0.000000e+00> : vector<16x16xf32>
    %30 = tpu.matmul %21, %29, %cst_53 {dimension_numbers = #tpu.dot_dimension_numbers<[1], [0], [0], [1], [0, 0, 1, 1], [], []>} : vector<16x4xbf16>, vector<4x16xbf16>, vector<16x16xf32> -> vector<16x16xf32>
    %31 = arith.addf %27, %30 : vector<16x16xf32>
    %32 = vector.extract_strided_slice %0 {offsets = [2, 0, 0], sizes = [1, 4, 16], strides = [1, 1, 1]} : vector<3x4x16xbf16> to vector<1x4x16xbf16>
    %33 = vector.shape_cast %32 : vector<1x4x16xbf16> to vector<4x16xbf16>
    %cst_54 = arith.constant dense<0.000000e+00> : vector<16x16xf32>
    %34 = tpu.matmul %21, %33, %cst_54 {dimension_numbers = #tpu.dot_dimension_numbers<[1], [0], [0], [1], [0, 0, 1, 1], [], []>} : vector<16x4xbf16>, vector<4x16xbf16>, vector<16x16xf32> -> vector<16x16xf32>
    %c15_i32 = arith.constant 15 : i32
    %35 = tpu.dynamic_rotate %34 by %c15_i32 dim 0 : vector<16x16xf32>, i32 -> vector<16x16xf32>
    %36 = arith.addf %31, %35 : vector<16x16xf32>
    %37 = vector.broadcast %1 : vector<1x16xf32> to vector<16x16xf32>
    %38 = arith.addf %36, %37 : vector<16x16xf32>
    %cst_55 = arith.constant 0.000000e+00 : f32
    %39 = vector.broadcast %cst_55 : f32 to vector<16x16xf32>
    %40 = arith.maximumf %38, %39 : vector<16x16xf32>
    %41 = arith.truncf %40 : vector<16x16xf32> to vector<16x16xbf16>
    %42 = vector.extract_strided_slice %2 {offsets = [0, 0, 0], sizes = [1, 16, 8], strides = [1, 1, 1]} : vector<3x16x8xbf16> to vector<1x16x8xbf16>
    %43 = vector.shape_cast %42 : vector<1x16x8xbf16> to vector<16x8xbf16>
    %cst_56 = arith.constant dense<0.000000e+00> : vector<16x8xf32>
    %44 = tpu.matmul %41, %43, %cst_56 {dimension_numbers = #tpu.dot_dimension_numbers<[1], [0], [0], [1], [0, 0, 1, 1], [], []>} : vector<16x16xbf16>, vector<16x8xbf16>, vector<16x8xf32> -> vector<16x8xf32>
    %c1_i32_57 = arith.constant 1 : i32
    %45 = tpu.dynamic_rotate %44 by %c1_i32_57 dim 0 : vector<16x8xf32>, i32 -> vector<16x8xf32>
    %46 = vector.extract_strided_slice %2 {offsets = [1, 0, 0], sizes = [1, 16, 8], strides = [1, 1, 1]} : vector<3x16x8xbf16> to vector<1x16x8xbf16>
    %47 = vector.shape_cast %46 : vector<1x16x8xbf16> to vector<16x8xbf16>
    %cst_58 = arith.constant dense<0.000000e+00> : vector<16x8xf32>
    %48 = tpu.matmul %41, %47, %cst_58 {dimension_numbers = #tpu.dot_dimension_numbers<[1], [0], [0], [1], [0, 0, 1, 1], [], []>} : vector<16x16xbf16>, vector<16x8xbf16>, vector<16x8xf32> -> vector<16x8xf32>
    %49 = arith.addf %45, %48 : vector<16x8xf32>
    %50 = vector.extract_strided_slice %2 {offsets = [2, 0, 0], sizes = [1, 16, 8], strides = [1, 1, 1]} : vector<3x16x8xbf16> to vector<1x16x8xbf16>
    %51 = vector.shape_cast %50 : vector<1x16x8xbf16> to vector<16x8xbf16>
    %cst_59 = arith.constant dense<0.000000e+00> : vector<16x8xf32>
    %52 = tpu.matmul %41, %51, %cst_59 {dimension_numbers = #tpu.dot_dimension_numbers<[1], [0], [0], [1], [0, 0, 1, 1], [], []>} : vector<16x16xbf16>, vector<16x8xbf16>, vector<16x8xf32> -> vector<16x8xf32>
    %c15_i32_60 = arith.constant 15 : i32
    %53 = tpu.dynamic_rotate %52 by %c15_i32_60 dim 0 : vector<16x8xf32>, i32 -> vector<16x8xf32>
    %54 = arith.addf %49, %53 : vector<16x8xf32>
    %55 = vector.broadcast %3 : vector<1x8xf32> to vector<16x8xf32>
    %56 = arith.addf %54, %55 : vector<16x8xf32>
    %cst_61 = arith.constant 0.000000e+00 : f32
    %57 = vector.broadcast %cst_61 : f32 to vector<16x8xf32>
    %58 = arith.maximumf %56, %57 : vector<16x8xf32>
    %cst_62 = arith.constant dense<0.000000e+00> : vector<16x8xf32>
    %59 = tpu.matmul %21, %4, %cst_62 {dimension_numbers = #tpu.dot_dimension_numbers<[1], [0], [0], [1], [0, 0, 1, 1], [], []>} : vector<16x4xbf16>, vector<4x8xbf16>, vector<16x8xf32> -> vector<16x8xf32>
    %60 = vector.broadcast %5 : vector<1x8xf32> to vector<16x8xf32>
    %61 = arith.addf %59, %60 : vector<16x8xf32>
    %62 = arith.addf %58, %61 : vector<16x8xf32>
    %63 = arith.truncf %62 : vector<16x8xf32> to vector<16x8xbf16>
    %64 = vector.extract_strided_slice %6 {offsets = [0, 0, 0], sizes = [1, 8, 16], strides = [1, 1, 1]} : vector<3x8x16xbf16> to vector<1x8x16xbf16>
    %65 = vector.shape_cast %64 : vector<1x8x16xbf16> to vector<8x16xbf16>
    %cst_63 = arith.constant dense<0.000000e+00> : vector<16x16xf32>
    %66 = tpu.matmul %63, %65, %cst_63 {dimension_numbers = #tpu.dot_dimension_numbers<[1], [0], [0], [1], [0, 0, 1, 1], [], []>} : vector<16x8xbf16>, vector<8x16xbf16>, vector<16x16xf32> -> vector<16x16xf32>
    %c2_i32 = arith.constant 2 : i32
    %67 = tpu.dynamic_rotate %66 by %c2_i32 dim 0 : vector<16x16xf32>, i32 -> vector<16x16xf32>
    %68 = vector.extract_strided_slice %6 {offsets = [1, 0, 0], sizes = [1, 8, 16], strides = [1, 1, 1]} : vector<3x8x16xbf16> to vector<1x8x16xbf16>
    %69 = vector.shape_cast %68 : vector<1x8x16xbf16> to vector<8x16xbf16>
    %cst_64 = arith.constant dense<0.000000e+00> : vector<16x16xf32>
    %70 = tpu.matmul %63, %69, %cst_64 {dimension_numbers = #tpu.dot_dimension_numbers<[1], [0], [0], [1], [0, 0, 1, 1], [], []>} : vector<16x8xbf16>, vector<8x16xbf16>, vector<16x16xf32> -> vector<16x16xf32>
    %71 = arith.addf %67, %70 : vector<16x16xf32>
    %72 = vector.extract_strided_slice %6 {offsets = [2, 0, 0], sizes = [1, 8, 16], strides = [1, 1, 1]} : vector<3x8x16xbf16> to vector<1x8x16xbf16>
    %73 = vector.shape_cast %72 : vector<1x8x16xbf16> to vector<8x16xbf16>
    %cst_65 = arith.constant dense<0.000000e+00> : vector<16x16xf32>
    %74 = tpu.matmul %63, %73, %cst_65 {dimension_numbers = #tpu.dot_dimension_numbers<[1], [0], [0], [1], [0, 0, 1, 1], [], []>} : vector<16x8xbf16>, vector<8x16xbf16>, vector<16x16xf32> -> vector<16x16xf32>
    %c14_i32 = arith.constant 14 : i32
    %75 = tpu.dynamic_rotate %74 by %c14_i32 dim 0 : vector<16x16xf32>, i32 -> vector<16x16xf32>
    %76 = arith.addf %71, %75 : vector<16x16xf32>
    %77 = vector.broadcast %7 : vector<1x16xf32> to vector<16x16xf32>
    %78 = arith.addf %76, %77 : vector<16x16xf32>
    %cst_66 = arith.constant 0.000000e+00 : f32
    %79 = vector.broadcast %cst_66 : f32 to vector<16x16xf32>
    %80 = arith.maximumf %78, %79 : vector<16x16xf32>
    %81 = arith.truncf %80 : vector<16x16xf32> to vector<16x16xbf16>
    %82 = vector.extract_strided_slice %8 {offsets = [0, 0, 0], sizes = [1, 16, 8], strides = [1, 1, 1]} : vector<3x16x8xbf16> to vector<1x16x8xbf16>
    %83 = vector.shape_cast %82 : vector<1x16x8xbf16> to vector<16x8xbf16>
    %cst_67 = arith.constant dense<0.000000e+00> : vector<16x8xf32>
    %84 = tpu.matmul %81, %83, %cst_67 {dimension_numbers = #tpu.dot_dimension_numbers<[1], [0], [0], [1], [0, 0, 1, 1], [], []>} : vector<16x16xbf16>, vector<16x8xbf16>, vector<16x8xf32> -> vector<16x8xf32>
    %c2_i32_68 = arith.constant 2 : i32
    %85 = tpu.dynamic_rotate %84 by %c2_i32_68 dim 0 : vector<16x8xf32>, i32 -> vector<16x8xf32>
    %86 = vector.extract_strided_slice %8 {offsets = [1, 0, 0], sizes = [1, 16, 8], strides = [1, 1, 1]} : vector<3x16x8xbf16> to vector<1x16x8xbf16>
    %87 = vector.shape_cast %86 : vector<1x16x8xbf16> to vector<16x8xbf16>
    %cst_69 = arith.constant dense<0.000000e+00> : vector<16x8xf32>
    %88 = tpu.matmul %81, %87, %cst_69 {dimension_numbers = #tpu.dot_dimension_numbers<[1], [0], [0], [1], [0, 0, 1, 1], [], []>} : vector<16x16xbf16>, vector<16x8xbf16>, vector<16x8xf32> -> vector<16x8xf32>
    %89 = arith.addf %85, %88 : vector<16x8xf32>
    %90 = vector.extract_strided_slice %8 {offsets = [2, 0, 0], sizes = [1, 16, 8], strides = [1, 1, 1]} : vector<3x16x8xbf16> to vector<1x16x8xbf16>
    %91 = vector.shape_cast %90 : vector<1x16x8xbf16> to vector<16x8xbf16>
    %cst_70 = arith.constant dense<0.000000e+00> : vector<16x8xf32>
    %92 = tpu.matmul %81, %91, %cst_70 {dimension_numbers = #tpu.dot_dimension_numbers<[1], [0], [0], [1], [0, 0, 1, 1], [], []>} : vector<16x16xbf16>, vector<16x8xbf16>, vector<16x8xf32> -> vector<16x8xf32>
    %c14_i32_71 = arith.constant 14 : i32
    %93 = tpu.dynamic_rotate %92 by %c14_i32_71 dim 0 : vector<16x8xf32>, i32 -> vector<16x8xf32>
    %94 = arith.addf %89, %93 : vector<16x8xf32>
    %95 = vector.broadcast %9 : vector<1x8xf32> to vector<16x8xf32>
    %96 = arith.addf %94, %95 : vector<16x8xf32>
    %cst_72 = arith.constant 0.000000e+00 : f32
    %97 = vector.broadcast %cst_72 : f32 to vector<16x8xf32>
    %98 = arith.maximumf %96, %97 : vector<16x8xf32>
    %99 = arith.extf %63 : vector<16x8xbf16> to vector<16x8xf32>
    %100 = arith.addf %98, %99 : vector<16x8xf32>
    %101 = vector.extract_strided_slice %0 {offsets = [0, 0, 0], sizes = [1, 4, 16], strides = [1, 1, 1]} : vector<3x4x16xbf16> to vector<1x4x16xbf16>
    %102 = vector.shape_cast %101 : vector<1x4x16xbf16> to vector<4x16xbf16>
    %cst_73 = arith.constant dense<0.000000e+00> : vector<16x16xf32>
    %103 = tpu.matmul %23, %102, %cst_73 {dimension_numbers = #tpu.dot_dimension_numbers<[1], [0], [0], [1], [0, 0, 1, 1], [], []>} : vector<16x4xbf16>, vector<4x16xbf16>, vector<16x16xf32> -> vector<16x16xf32>
    %c1_i32_74 = arith.constant 1 : i32
    %104 = tpu.dynamic_rotate %103 by %c1_i32_74 dim 0 : vector<16x16xf32>, i32 -> vector<16x16xf32>
    %105 = vector.extract_strided_slice %0 {offsets = [1, 0, 0], sizes = [1, 4, 16], strides = [1, 1, 1]} : vector<3x4x16xbf16> to vector<1x4x16xbf16>
    %106 = vector.shape_cast %105 : vector<1x4x16xbf16> to vector<4x16xbf16>
    %cst_75 = arith.constant dense<0.000000e+00> : vector<16x16xf32>
    %107 = tpu.matmul %23, %106, %cst_75 {dimension_numbers = #tpu.dot_dimension_numbers<[1], [0], [0], [1], [0, 0, 1, 1], [], []>} : vector<16x4xbf16>, vector<4x16xbf16>, vector<16x16xf32> -> vector<16x16xf32>
    %108 = arith.addf %104, %107 : vector<16x16xf32>
    %109 = vector.extract_strided_slice %0 {offsets = [2, 0, 0], sizes = [1, 4, 16], strides = [1, 1, 1]} : vector<3x4x16xbf16> to vector<1x4x16xbf16>
    %110 = vector.shape_cast %109 : vector<1x4x16xbf16> to vector<4x16xbf16>
    %cst_76 = arith.constant dense<0.000000e+00> : vector<16x16xf32>
    %111 = tpu.matmul %23, %110, %cst_76 {dimension_numbers = #tpu.dot_dimension_numbers<[1], [0], [0], [1], [0, 0, 1, 1], [], []>} : vector<16x4xbf16>, vector<4x16xbf16>, vector<16x16xf32> -> vector<16x16xf32>
    %c15_i32_77 = arith.constant 15 : i32
    %112 = tpu.dynamic_rotate %111 by %c15_i32_77 dim 0 : vector<16x16xf32>, i32 -> vector<16x16xf32>
    %113 = arith.addf %108, %112 : vector<16x16xf32>
    %114 = vector.broadcast %1 : vector<1x16xf32> to vector<16x16xf32>
    %115 = arith.addf %113, %114 : vector<16x16xf32>
    %cst_78 = arith.constant 0.000000e+00 : f32
    %116 = vector.broadcast %cst_78 : f32 to vector<16x16xf32>
    %117 = arith.maximumf %115, %116 : vector<16x16xf32>
    %118 = arith.truncf %117 : vector<16x16xf32> to vector<16x16xbf16>
    %119 = vector.extract_strided_slice %2 {offsets = [0, 0, 0], sizes = [1, 16, 8], strides = [1, 1, 1]} : vector<3x16x8xbf16> to vector<1x16x8xbf16>
    %120 = vector.shape_cast %119 : vector<1x16x8xbf16> to vector<16x8xbf16>
    %cst_79 = arith.constant dense<0.000000e+00> : vector<16x8xf32>
    %121 = tpu.matmul %118, %120, %cst_79 {dimension_numbers = #tpu.dot_dimension_numbers<[1], [0], [0], [1], [0, 0, 1, 1], [], []>} : vector<16x16xbf16>, vector<16x8xbf16>, vector<16x8xf32> -> vector<16x8xf32>
    %c1_i32_80 = arith.constant 1 : i32
    %122 = tpu.dynamic_rotate %121 by %c1_i32_80 dim 0 : vector<16x8xf32>, i32 -> vector<16x8xf32>
    %123 = vector.extract_strided_slice %2 {offsets = [1, 0, 0], sizes = [1, 16, 8], strides = [1, 1, 1]} : vector<3x16x8xbf16> to vector<1x16x8xbf16>
    %124 = vector.shape_cast %123 : vector<1x16x8xbf16> to vector<16x8xbf16>
    %cst_81 = arith.constant dense<0.000000e+00> : vector<16x8xf32>
    %125 = tpu.matmul %118, %124, %cst_81 {dimension_numbers = #tpu.dot_dimension_numbers<[1], [0], [0], [1], [0, 0, 1, 1], [], []>} : vector<16x16xbf16>, vector<16x8xbf16>, vector<16x8xf32> -> vector<16x8xf32>
    %126 = arith.addf %122, %125 : vector<16x8xf32>
    %127 = vector.extract_strided_slice %2 {offsets = [2, 0, 0], sizes = [1, 16, 8], strides = [1, 1, 1]} : vector<3x16x8xbf16> to vector<1x16x8xbf16>
    %128 = vector.shape_cast %127 : vector<1x16x8xbf16> to vector<16x8xbf16>
    %cst_82 = arith.constant dense<0.000000e+00> : vector<16x8xf32>
    %129 = tpu.matmul %118, %128, %cst_82 {dimension_numbers = #tpu.dot_dimension_numbers<[1], [0], [0], [1], [0, 0, 1, 1], [], []>} : vector<16x16xbf16>, vector<16x8xbf16>, vector<16x8xf32> -> vector<16x8xf32>
    %c15_i32_83 = arith.constant 15 : i32
    %130 = tpu.dynamic_rotate %129 by %c15_i32_83 dim 0 : vector<16x8xf32>, i32 -> vector<16x8xf32>
    %131 = arith.addf %126, %130 : vector<16x8xf32>
    %132 = vector.broadcast %3 : vector<1x8xf32> to vector<16x8xf32>
    %133 = arith.addf %131, %132 : vector<16x8xf32>
    %cst_84 = arith.constant 0.000000e+00 : f32
    %134 = vector.broadcast %cst_84 : f32 to vector<16x8xf32>
    %135 = arith.maximumf %133, %134 : vector<16x8xf32>
    %cst_85 = arith.constant dense<0.000000e+00> : vector<16x8xf32>
    %136 = tpu.matmul %23, %4, %cst_85 {dimension_numbers = #tpu.dot_dimension_numbers<[1], [0], [0], [1], [0, 0, 1, 1], [], []>} : vector<16x4xbf16>, vector<4x8xbf16>, vector<16x8xf32> -> vector<16x8xf32>
    %137 = vector.broadcast %5 : vector<1x8xf32> to vector<16x8xf32>
    %138 = arith.addf %136, %137 : vector<16x8xf32>
    %139 = arith.addf %135, %138 : vector<16x8xf32>
    %140 = arith.truncf %139 : vector<16x8xf32> to vector<16x8xbf16>
    %141 = vector.extract_strided_slice %6 {offsets = [0, 0, 0], sizes = [1, 8, 16], strides = [1, 1, 1]} : vector<3x8x16xbf16> to vector<1x8x16xbf16>
    %142 = vector.shape_cast %141 : vector<1x8x16xbf16> to vector<8x16xbf16>
    %cst_86 = arith.constant dense<0.000000e+00> : vector<16x16xf32>
    %143 = tpu.matmul %140, %142, %cst_86 {dimension_numbers = #tpu.dot_dimension_numbers<[1], [0], [0], [1], [0, 0, 1, 1], [], []>} : vector<16x8xbf16>, vector<8x16xbf16>, vector<16x16xf32> -> vector<16x16xf32>
    %c2_i32_87 = arith.constant 2 : i32
    %144 = tpu.dynamic_rotate %143 by %c2_i32_87 dim 0 : vector<16x16xf32>, i32 -> vector<16x16xf32>
    %145 = vector.extract_strided_slice %6 {offsets = [1, 0, 0], sizes = [1, 8, 16], strides = [1, 1, 1]} : vector<3x8x16xbf16> to vector<1x8x16xbf16>
    %146 = vector.shape_cast %145 : vector<1x8x16xbf16> to vector<8x16xbf16>
    %cst_88 = arith.constant dense<0.000000e+00> : vector<16x16xf32>
    %147 = tpu.matmul %140, %146, %cst_88 {dimension_numbers = #tpu.dot_dimension_numbers<[1], [0], [0], [1], [0, 0, 1, 1], [], []>} : vector<16x8xbf16>, vector<8x16xbf16>, vector<16x16xf32> -> vector<16x16xf32>
    %148 = arith.addf %144, %147 : vector<16x16xf32>
    %149 = vector.extract_strided_slice %6 {offsets = [2, 0, 0], sizes = [1, 8, 16], strides = [1, 1, 1]} : vector<3x8x16xbf16> to vector<1x8x16xbf16>
    %150 = vector.shape_cast %149 : vector<1x8x16xbf16> to vector<8x16xbf16>
    %cst_89 = arith.constant dense<0.000000e+00> : vector<16x16xf32>
    %151 = tpu.matmul %140, %150, %cst_89 {dimension_numbers = #tpu.dot_dimension_numbers<[1], [0], [0], [1], [0, 0, 1, 1], [], []>} : vector<16x8xbf16>, vector<8x16xbf16>, vector<16x16xf32> -> vector<16x16xf32>
    %c14_i32_90 = arith.constant 14 : i32
    %152 = tpu.dynamic_rotate %151 by %c14_i32_90 dim 0 : vector<16x16xf32>, i32 -> vector<16x16xf32>
    %153 = arith.addf %148, %152 : vector<16x16xf32>
    %154 = vector.broadcast %7 : vector<1x16xf32> to vector<16x16xf32>
    %155 = arith.addf %153, %154 : vector<16x16xf32>
    %cst_91 = arith.constant 0.000000e+00 : f32
    %156 = vector.broadcast %cst_91 : f32 to vector<16x16xf32>
    %157 = arith.maximumf %155, %156 : vector<16x16xf32>
    %158 = arith.truncf %157 : vector<16x16xf32> to vector<16x16xbf16>
    %159 = vector.extract_strided_slice %8 {offsets = [0, 0, 0], sizes = [1, 16, 8], strides = [1, 1, 1]} : vector<3x16x8xbf16> to vector<1x16x8xbf16>
    %160 = vector.shape_cast %159 : vector<1x16x8xbf16> to vector<16x8xbf16>
    %cst_92 = arith.constant dense<0.000000e+00> : vector<16x8xf32>
    %161 = tpu.matmul %158, %160, %cst_92 {dimension_numbers = #tpu.dot_dimension_numbers<[1], [0], [0], [1], [0, 0, 1, 1], [], []>} : vector<16x16xbf16>, vector<16x8xbf16>, vector<16x8xf32> -> vector<16x8xf32>
    %c2_i32_93 = arith.constant 2 : i32
    %162 = tpu.dynamic_rotate %161 by %c2_i32_93 dim 0 : vector<16x8xf32>, i32 -> vector<16x8xf32>
    %163 = vector.extract_strided_slice %8 {offsets = [1, 0, 0], sizes = [1, 16, 8], strides = [1, 1, 1]} : vector<3x16x8xbf16> to vector<1x16x8xbf16>
    %164 = vector.shape_cast %163 : vector<1x16x8xbf16> to vector<16x8xbf16>
    %cst_94 = arith.constant dense<0.000000e+00> : vector<16x8xf32>
    %165 = tpu.matmul %158, %164, %cst_94 {dimension_numbers = #tpu.dot_dimension_numbers<[1], [0], [0], [1], [0, 0, 1, 1], [], []>} : vector<16x16xbf16>, vector<16x8xbf16>, vector<16x8xf32> -> vector<16x8xf32>
    %166 = arith.addf %162, %165 : vector<16x8xf32>
    %167 = vector.extract_strided_slice %8 {offsets = [2, 0, 0], sizes = [1, 16, 8], strides = [1, 1, 1]} : vector<3x16x8xbf16> to vector<1x16x8xbf16>
    %168 = vector.shape_cast %167 : vector<1x16x8xbf16> to vector<16x8xbf16>
    %cst_95 = arith.constant dense<0.000000e+00> : vector<16x8xf32>
    %169 = tpu.matmul %158, %168, %cst_95 {dimension_numbers = #tpu.dot_dimension_numbers<[1], [0], [0], [1], [0, 0, 1, 1], [], []>} : vector<16x16xbf16>, vector<16x8xbf16>, vector<16x8xf32> -> vector<16x8xf32>
    %c14_i32_96 = arith.constant 14 : i32
    %170 = tpu.dynamic_rotate %169 by %c14_i32_96 dim 0 : vector<16x8xf32>, i32 -> vector<16x8xf32>
    %171 = arith.addf %166, %170 : vector<16x8xf32>
    %172 = vector.broadcast %9 : vector<1x8xf32> to vector<16x8xf32>
    %173 = arith.addf %171, %172 : vector<16x8xf32>
    %cst_97 = arith.constant 0.000000e+00 : f32
    %174 = vector.broadcast %cst_97 : f32 to vector<16x8xf32>
    %175 = arith.maximumf %173, %174 : vector<16x8xf32>
    %176 = arith.extf %140 : vector<16x8xbf16> to vector<16x8xf32>
    %177 = arith.addf %175, %176 : vector<16x8xf32>
    %178 = arith.subf %100, %177 : vector<16x8xf32>
    %179 = arith.truncf %178 : vector<16x8xf32> to vector<16x8xbf16>
    %180 = vector.extract_strided_slice %10 {offsets = [0, 0, 0], sizes = [1, 8, 16], strides = [1, 1, 1]} : vector<3x8x16xbf16> to vector<1x8x16xbf16>
    %181 = vector.shape_cast %180 : vector<1x8x16xbf16> to vector<8x16xbf16>
    %cst_98 = arith.constant dense<0.000000e+00> : vector<16x16xf32>
    %182 = tpu.matmul %179, %181, %cst_98 {dimension_numbers = #tpu.dot_dimension_numbers<[1], [0], [0], [1], [0, 0, 1, 1], [], []>} : vector<16x8xbf16>, vector<8x16xbf16>, vector<16x16xf32> -> vector<16x16xf32>
    %c1_i32_99 = arith.constant 1 : i32
    %183 = tpu.dynamic_rotate %182 by %c1_i32_99 dim 0 : vector<16x16xf32>, i32 -> vector<16x16xf32>
    %184 = vector.extract_strided_slice %10 {offsets = [1, 0, 0], sizes = [1, 8, 16], strides = [1, 1, 1]} : vector<3x8x16xbf16> to vector<1x8x16xbf16>
    %185 = vector.shape_cast %184 : vector<1x8x16xbf16> to vector<8x16xbf16>
    %cst_100 = arith.constant dense<0.000000e+00> : vector<16x16xf32>
    %186 = tpu.matmul %179, %185, %cst_100 {dimension_numbers = #tpu.dot_dimension_numbers<[1], [0], [0], [1], [0, 0, 1, 1], [], []>} : vector<16x8xbf16>, vector<8x16xbf16>, vector<16x16xf32> -> vector<16x16xf32>
    %187 = arith.addf %183, %186 : vector<16x16xf32>
    %188 = vector.extract_strided_slice %10 {offsets = [2, 0, 0], sizes = [1, 8, 16], strides = [1, 1, 1]} : vector<3x8x16xbf16> to vector<1x8x16xbf16>
    %189 = vector.shape_cast %188 : vector<1x8x16xbf16> to vector<8x16xbf16>
    %cst_101 = arith.constant dense<0.000000e+00> : vector<16x16xf32>
    %190 = tpu.matmul %179, %189, %cst_101 {dimension_numbers = #tpu.dot_dimension_numbers<[1], [0], [0], [1], [0, 0, 1, 1], [], []>} : vector<16x8xbf16>, vector<8x16xbf16>, vector<16x16xf32> -> vector<16x16xf32>
    %c15_i32_102 = arith.constant 15 : i32
    %191 = tpu.dynamic_rotate %190 by %c15_i32_102 dim 0 : vector<16x16xf32>, i32 -> vector<16x16xf32>
    %192 = arith.addf %187, %191 : vector<16x16xf32>
    %193 = vector.broadcast %11 : vector<1x16xf32> to vector<16x16xf32>
    %194 = arith.addf %192, %193 : vector<16x16xf32>
    %cst_103 = arith.constant 0.000000e+00 : f32
    %195 = vector.broadcast %cst_103 : f32 to vector<16x16xf32>
    %196 = arith.maximumf %194, %195 : vector<16x16xf32>
    %197 = arith.truncf %196 : vector<16x16xf32> to vector<16x16xbf16>
    %198 = vector.extract_strided_slice %12 {offsets = [0, 0, 0], sizes = [1, 16, 8], strides = [1, 1, 1]} : vector<3x16x8xbf16> to vector<1x16x8xbf16>
    %199 = vector.shape_cast %198 : vector<1x16x8xbf16> to vector<16x8xbf16>
    %cst_104 = arith.constant dense<0.000000e+00> : vector<16x8xf32>
    %200 = tpu.matmul %197, %199, %cst_104 {dimension_numbers = #tpu.dot_dimension_numbers<[1], [0], [0], [1], [0, 0, 1, 1], [], []>} : vector<16x16xbf16>, vector<16x8xbf16>, vector<16x8xf32> -> vector<16x8xf32>
    %c1_i32_105 = arith.constant 1 : i32
    %201 = tpu.dynamic_rotate %200 by %c1_i32_105 dim 0 : vector<16x8xf32>, i32 -> vector<16x8xf32>
    %202 = vector.extract_strided_slice %12 {offsets = [1, 0, 0], sizes = [1, 16, 8], strides = [1, 1, 1]} : vector<3x16x8xbf16> to vector<1x16x8xbf16>
    %203 = vector.shape_cast %202 : vector<1x16x8xbf16> to vector<16x8xbf16>
    %cst_106 = arith.constant dense<0.000000e+00> : vector<16x8xf32>
    %204 = tpu.matmul %197, %203, %cst_106 {dimension_numbers = #tpu.dot_dimension_numbers<[1], [0], [0], [1], [0, 0, 1, 1], [], []>} : vector<16x16xbf16>, vector<16x8xbf16>, vector<16x8xf32> -> vector<16x8xf32>
    %205 = arith.addf %201, %204 : vector<16x8xf32>
    %206 = vector.extract_strided_slice %12 {offsets = [2, 0, 0], sizes = [1, 16, 8], strides = [1, 1, 1]} : vector<3x16x8xbf16> to vector<1x16x8xbf16>
    %207 = vector.shape_cast %206 : vector<1x16x8xbf16> to vector<16x8xbf16>
    %cst_107 = arith.constant dense<0.000000e+00> : vector<16x8xf32>
    %208 = tpu.matmul %197, %207, %cst_107 {dimension_numbers = #tpu.dot_dimension_numbers<[1], [0], [0], [1], [0, 0, 1, 1], [], []>} : vector<16x16xbf16>, vector<16x8xbf16>, vector<16x8xf32> -> vector<16x8xf32>
    %c15_i32_108 = arith.constant 15 : i32
    %209 = tpu.dynamic_rotate %208 by %c15_i32_108 dim 0 : vector<16x8xf32>, i32 -> vector<16x8xf32>
    %210 = arith.addf %205, %209 : vector<16x8xf32>
    %211 = vector.broadcast %13 : vector<1x8xf32> to vector<16x8xf32>
    %212 = arith.addf %210, %211 : vector<16x8xf32>
    %cst_109 = arith.constant 0.000000e+00 : f32
    %213 = vector.broadcast %cst_109 : f32 to vector<16x8xf32>
    %214 = arith.maximumf %212, %213 : vector<16x8xf32>
    %215 = arith.extf %179 : vector<16x8xbf16> to vector<16x8xf32>
    %216 = arith.addf %214, %215 : vector<16x8xf32>
    %217 = arith.truncf %216 : vector<16x8xf32> to vector<16x8xbf16>
    %218 = vector.extract_strided_slice %14 {offsets = [0, 0, 0], sizes = [1, 8, 16], strides = [1, 1, 1]} : vector<3x8x16xbf16> to vector<1x8x16xbf16>
    %219 = vector.shape_cast %218 : vector<1x8x16xbf16> to vector<8x16xbf16>
    %cst_110 = arith.constant dense<0.000000e+00> : vector<16x16xf32>
    %220 = tpu.matmul %217, %219, %cst_110 {dimension_numbers = #tpu.dot_dimension_numbers<[1], [0], [0], [1], [0, 0, 1, 1], [], []>} : vector<16x8xbf16>, vector<8x16xbf16>, vector<16x16xf32> -> vector<16x16xf32>
    %c2_i32_111 = arith.constant 2 : i32
    %221 = tpu.dynamic_rotate %220 by %c2_i32_111 dim 0 : vector<16x16xf32>, i32 -> vector<16x16xf32>
    %222 = vector.extract_strided_slice %14 {offsets = [1, 0, 0], sizes = [1, 8, 16], strides = [1, 1, 1]} : vector<3x8x16xbf16> to vector<1x8x16xbf16>
    %223 = vector.shape_cast %222 : vector<1x8x16xbf16> to vector<8x16xbf16>
    %cst_112 = arith.constant dense<0.000000e+00> : vector<16x16xf32>
    %224 = tpu.matmul %217, %223, %cst_112 {dimension_numbers = #tpu.dot_dimension_numbers<[1], [0], [0], [1], [0, 0, 1, 1], [], []>} : vector<16x8xbf16>, vector<8x16xbf16>, vector<16x16xf32> -> vector<16x16xf32>
    %225 = arith.addf %221, %224 : vector<16x16xf32>
    %226 = vector.extract_strided_slice %14 {offsets = [2, 0, 0], sizes = [1, 8, 16], strides = [1, 1, 1]} : vector<3x8x16xbf16> to vector<1x8x16xbf16>
    %227 = vector.shape_cast %226 : vector<1x8x16xbf16> to vector<8x16xbf16>
    %cst_113 = arith.constant dense<0.000000e+00> : vector<16x16xf32>
    %228 = tpu.matmul %217, %227, %cst_113 {dimension_numbers = #tpu.dot_dimension_numbers<[1], [0], [0], [1], [0, 0, 1, 1], [], []>} : vector<16x8xbf16>, vector<8x16xbf16>, vector<16x16xf32> -> vector<16x16xf32>
    %c14_i32_114 = arith.constant 14 : i32
    %229 = tpu.dynamic_rotate %228 by %c14_i32_114 dim 0 : vector<16x16xf32>, i32 -> vector<16x16xf32>
    %230 = arith.addf %225, %229 : vector<16x16xf32>
    %231 = vector.broadcast %15 : vector<1x16xf32> to vector<16x16xf32>
    %232 = arith.addf %230, %231 : vector<16x16xf32>
    %cst_115 = arith.constant 0.000000e+00 : f32
    %233 = vector.broadcast %cst_115 : f32 to vector<16x16xf32>
    %234 = arith.maximumf %232, %233 : vector<16x16xf32>
    %235 = arith.truncf %234 : vector<16x16xf32> to vector<16x16xbf16>
    %236 = vector.extract_strided_slice %16 {offsets = [0, 0, 0], sizes = [1, 16, 8], strides = [1, 1, 1]} : vector<3x16x8xbf16> to vector<1x16x8xbf16>
    %237 = vector.shape_cast %236 : vector<1x16x8xbf16> to vector<16x8xbf16>
    %cst_116 = arith.constant dense<0.000000e+00> : vector<16x8xf32>
    %238 = tpu.matmul %235, %237, %cst_116 {dimension_numbers = #tpu.dot_dimension_numbers<[1], [0], [0], [1], [0, 0, 1, 1], [], []>} : vector<16x16xbf16>, vector<16x8xbf16>, vector<16x8xf32> -> vector<16x8xf32>
    %c2_i32_117 = arith.constant 2 : i32
    %239 = tpu.dynamic_rotate %238 by %c2_i32_117 dim 0 : vector<16x8xf32>, i32 -> vector<16x8xf32>
    %240 = vector.extract_strided_slice %16 {offsets = [1, 0, 0], sizes = [1, 16, 8], strides = [1, 1, 1]} : vector<3x16x8xbf16> to vector<1x16x8xbf16>
    %241 = vector.shape_cast %240 : vector<1x16x8xbf16> to vector<16x8xbf16>
    %cst_118 = arith.constant dense<0.000000e+00> : vector<16x8xf32>
    %242 = tpu.matmul %235, %241, %cst_118 {dimension_numbers = #tpu.dot_dimension_numbers<[1], [0], [0], [1], [0, 0, 1, 1], [], []>} : vector<16x16xbf16>, vector<16x8xbf16>, vector<16x8xf32> -> vector<16x8xf32>
    %243 = arith.addf %239, %242 : vector<16x8xf32>
    %244 = vector.extract_strided_slice %16 {offsets = [2, 0, 0], sizes = [1, 16, 8], strides = [1, 1, 1]} : vector<3x16x8xbf16> to vector<1x16x8xbf16>
    %245 = vector.shape_cast %244 : vector<1x16x8xbf16> to vector<16x8xbf16>
    %cst_119 = arith.constant dense<0.000000e+00> : vector<16x8xf32>
    %246 = tpu.matmul %235, %245, %cst_119 {dimension_numbers = #tpu.dot_dimension_numbers<[1], [0], [0], [1], [0, 0, 1, 1], [], []>} : vector<16x16xbf16>, vector<16x8xbf16>, vector<16x8xf32> -> vector<16x8xf32>
    %c14_i32_120 = arith.constant 14 : i32
    %247 = tpu.dynamic_rotate %246 by %c14_i32_120 dim 0 : vector<16x8xf32>, i32 -> vector<16x8xf32>
    %248 = arith.addf %243, %247 : vector<16x8xf32>
    %249 = vector.broadcast %17 : vector<1x8xf32> to vector<16x8xf32>
    %250 = arith.addf %248, %249 : vector<16x8xf32>
    %cst_121 = arith.constant 0.000000e+00 : f32
    %251 = vector.broadcast %cst_121 : f32 to vector<16x8xf32>
    %252 = arith.maximumf %250, %251 : vector<16x8xf32>
    %253 = arith.extf %217 : vector<16x8xbf16> to vector<16x8xf32>
    %254 = arith.addf %252, %253 : vector<16x8xf32>
    %cst_122 = arith.constant dense<0.000000e+00> : vector<8xf32>
    %255 = vector.multi_reduction <add>, %254, %cst_122 [0] : vector<16x8xf32> to vector<8xf32>
    %256 = vector.shape_cast %255 : vector<8xf32> to vector<1x8xf32>
    %cst_123 = arith.constant 1.600000e+01 : f32
    %257 = vector.broadcast %cst_123 : f32 to vector<1x8xf32>
    %258 = arith.divf %256, %257 : vector<1x8xf32>
    %cst_124 = arith.constant dense<0.000000e+00> : vector<1x5xf32>
    %259 = tpu.matmul %258, %18, %cst_124 {dimension_numbers = #tpu.dot_dimension_numbers<[1], [0], [0], [1], [0, 0, 1, 1], [], []>} : vector<1x8xf32>, vector<8x5xf32>, vector<1x5xf32> -> vector<1x5xf32>
    %260 = arith.addf %259, %19 : vector<1x5xf32>
    %c0_125 = arith.constant 0 : index
    %c0_126 = arith.constant 0 : index
    %c0_127 = arith.constant 0 : index
    %261 = vector.load %arg3[%c0_125, %c0_126, %c0_127] : memref<1x1x5xf32, #tpu.memory_space<vmem>>, vector<1x1x5xf32>
    %262 = vector.shape_cast %261 : vector<1x1x5xf32> to vector<1x5xf32>
    %263 = arith.mulf %260, %262 : vector<1x5xf32>
    %cst_128 = arith.constant dense<0.000000e+00> : vector<1xf32>
    %264 = vector.multi_reduction <add>, %263, %cst_128 [1] : vector<1x5xf32> to vector<1xf32>
    %265 = vector.shape_cast %264 : vector<1xf32> to vector<1x1xf32>
    %c0_129 = arith.constant 0 : index
    %c0_130 = arith.constant 0 : index
    %c0_131 = arith.constant 0 : index
    %266 = vector.load %arg24[%c0_129, %c0_130, %c0_131] : memref<1x1x1xf32, #tpu.memory_space<vmem>>, vector<1x1x1xf32>
    %267 = vector.shape_cast %266 : vector<1x1x1xf32> to vector<1x1xf32>
    %268 = vector.shape_cast %265 : vector<1x1xf32> to vector<1x1x1xf32>
    tpu.vector_store %arg24[%c0_129, %c0_130, %c0_131], %268 {strides = array<i32>} : memref<1x1x1xf32, #tpu.memory_space<vmem>>, vector<1x1x1xf32>,
    return
  }
  func.func @transform_0(%arg0: i32) -> (i32, i32, i32) {
    %c0_i32 = arith.constant 0 : i32
    %c0_i32_0 = arith.constant 0 : i32
    %c0_i32_1 = arith.constant 0 : i32
    return %arg0, %c0_i32, %c0_i32_0 : i32, i32, i32
  }
  func.func @transform_1(%arg0: i32) -> (i32, i32, i32) {
    %c0_i32 = arith.constant 0 : i32
    %c0_i32_0 = arith.constant 0 : i32
    %c0_i32_1 = arith.constant 0 : i32
    return %arg0, %c0_i32, %c0_i32_0 : i32, i32, i32
  }
  func.func @transform_2(%arg0: i32) -> (i32, i32, i32) {
    %c0_i32 = arith.constant 0 : i32
    %c0_i32_0 = arith.constant 0 : i32
    %c0_i32_1 = arith.constant 0 : i32
    return %arg0, %c0_i32, %c0_i32_0 : i32, i32, i32
  }
  func.func @transform_3(%arg0: i32) -> (i32, i32, i32) {
    %c0_i32 = arith.constant 0 : i32
    %c0_i32_0 = arith.constant 0 : i32
    %c0_i32_1 = arith.constant 0 : i32
    %c0_i32_2 = arith.constant 0 : i32
    return %c0_i32, %c0_i32_0, %c0_i32_1 : i32, i32, i32
  }
  func.func @transform_4(%arg0: i32) -> (i32, i32) {
    %c0_i32 = arith.constant 0 : i32
    %c0_i32_0 = arith.constant 0 : i32
    %c0_i32_1 = arith.constant 0 : i32
    return %c0_i32, %c0_i32_0 : i32, i32
  }
  func.func @transform_5(%arg0: i32) -> (i32, i32, i32) {
    %c0_i32 = arith.constant 0 : i32
    %c0_i32_0 = arith.constant 0 : i32
    %c0_i32_1 = arith.constant 0 : i32
    %c0_i32_2 = arith.constant 0 : i32
    return %c0_i32, %c0_i32_0, %c0_i32_1 : i32, i32, i32
  }
  func.func @transform_6(%arg0: i32) -> (i32, i32) {
    %c0_i32 = arith.constant 0 : i32
    %c0_i32_0 = arith.constant 0 : i32
    %c0_i32_1 = arith.constant 0 : i32
    return %c0_i32, %c0_i32_0 : i32, i32
  }
  func.func @transform_7(%arg0: i32) -> (i32, i32) {
    %c0_i32 = arith.constant 0 : i32
    %c0_i32_0 = arith.constant 0 : i32
    %c0_i32_1 = arith.constant 0 : i32
    return %c0_i32, %c0_i32_0 : i32, i32
  }
  func.func @transform_8(%arg0: i32) -> (i32, i32) {
    %c0_i32 = arith.constant 0 : i32
    %c0_i32_0 = arith.constant 0 : i32
    %c0_i32_1 = arith.constant 0 : i32
    return %c0_i32, %c0_i32_0 : i32, i32
  }
  func.func @transform_9(%arg0: i32) -> (i32, i32, i32) {
    %c0_i32 = arith.constant 0 : i32
    %c0_i32_0 = arith.constant 0 : i32
    %c0_i32_1 = arith.constant 0 : i32
    %c0_i32_2 = arith.constant 0 : i32
    return %c0_i32, %c0_i32_0, %c0_i32_1 : i32, i32, i32
  }
  func.func @transform_10(%arg0: i32) -> (i32, i32) {
    %c0_i32 = arith.constant 0 : i32
    %c0_i32_0 = arith.constant 0 : i32
    %c0_i32_1 = arith.constant 0 : i32
    return %c0_i32, %c0_i32_0 : i32, i32
  }
  func.func @transform_11(%arg0: i32) -> (i32, i32, i32) {
    %c0_i32 = arith.constant 0 : i32
    %c0_i32_0 = arith.constant 0 : i32
    %c0_i32_1 = arith.constant 0 : i32
    %c0_i32_2 = arith.constant 0 : i32
    return %c0_i32, %c0_i32_0, %c0_i32_1 : i32, i32, i32
  }
  func.func @transform_12(%arg0: i32) -> (i32, i32) {
    %c0_i32 = arith.constant 0 : i32
    %c0_i32_0 = arith.constant 0 : i32
    %c0_i32_1 = arith.constant 0 : i32
    return %c0_i32, %c0_i32_0 : i32, i32
  }
  func.func @transform_13(%arg0: i32) -> (i32, i32, i32) {
    %c0_i32 = arith.constant 0 : i32
    %c0_i32_0 = arith.constant 0 : i32
    %c0_i32_1 = arith.constant 0 : i32
    %c0_i32_2 = arith.constant 0 : i32
    return %c0_i32, %c0_i32_0, %c0_i32_1 : i32, i32, i32
  }
  func.func @transform_14(%arg0: i32) -> (i32, i32) {
    %c0_i32 = arith.constant 0 : i32
    %c0_i32_0 = arith.constant 0 : i32
    %c0_i32_1 = arith.constant 0 : i32
    return %c0_i32, %c0_i32_0 : i32, i32
  }
  func.func @transform_15(%arg0: i32) -> (i32, i32, i32) {
    %c0_i32 = arith.constant 0 : i32
    %c0_i32_0 = arith.constant 0 : i32
    %c0_i32_1 = arith.constant 0 : i32
    %c0_i32_2 = arith.constant 0 : i32
    return %c0_i32, %c0_i32_0, %c0_i32_1 : i32, i32, i32
  }
  func.func @transform_16(%arg0: i32) -> (i32, i32) {
    %c0_i32 = arith.constant 0 : i32
    %c0_i32_0 = arith.constant 0 : i32
    %c0_i32_1 = arith.constant 0 : i32
    return %c0_i32, %c0_i32_0 : i32, i32
  }
  func.func @transform_17(%arg0: i32) -> (i32, i32, i32) {
    %c0_i32 = arith.constant 0 : i32
    %c0_i32_0 = arith.constant 0 : i32
    %c0_i32_1 = arith.constant 0 : i32
    %c0_i32_2 = arith.constant 0 : i32
    return %c0_i32, %c0_i32_0, %c0_i32_1 : i32, i32, i32
  }
  func.func @transform_18(%arg0: i32) -> (i32, i32) {
    %c0_i32 = arith.constant 0 : i32
    %c0_i32_0 = arith.constant 0 : i32
    %c0_i32_1 = arith.constant 0 : i32
    return %c0_i32, %c0_i32_0 : i32, i32
  }
  func.func @transform_19(%arg0: i32) -> (i32, i32, i32) {
    %c0_i32 = arith.constant 0 : i32
    %c0_i32_0 = arith.constant 0 : i32
    %c0_i32_1 = arith.constant 0 : i32
    %c0_i32_2 = arith.constant 0 : i32
    return %c0_i32, %c0_i32_0, %c0_i32_1 : i32, i32, i32
  }
  func.func @transform_20(%arg0: i32) -> (i32, i32) {
    %c0_i32 = arith.constant 0 : i32
    %c0_i32_0 = arith.constant 0 : i32
    %c0_i32_1 = arith.constant 0 : i32
    return %c0_i32, %c0_i32_0 : i32, i32
  }
  func.func @transform_21(%arg0: i32) -> (i32, i32) {
    %c0_i32 = arith.constant 0 : i32
    %c0_i32_0 = arith.constant 0 : i32
    %c0_i32_1 = arith.constant 0 : i32
    return %c0_i32, %c0_i32_0 : i32, i32
  }
  func.func @transform_22(%arg0: i32) -> (i32, i32) {
    %c0_i32 = arith.constant 0 : i32
    %c0_i32_0 = arith.constant 0 : i32
    %c0_i32_1 = arith.constant 0 : i32
    return %c0_i32, %c0_i32_0 : i32, i32
  }
  func.func @transform_23(%arg0: i32) -> (i32, i32, i32) {
    %c0_i32 = arith.constant 0 : i32
    %c0_i32_0 = arith.constant 0 : i32
    %c0_i32_1 = arith.constant 0 : i32
    return %arg0, %c0_i32, %c0_i32_0 : i32, i32, i32
  }
}

</mosaic_0001>

<llo_original>
// kernel: tpu_custom_call.1
$region0: #{tpu_custom_call.1}
  #allocation0 [shape = 'u32[]', space=smem, size = 0x4, offset = 0x4, fixed_abs, tag = 'smem constant byte address 0x4 - core index']
  #allocation1 [shape = 'u32[144,128]{1,0:T(1,128)}', space=vmem, size = 0x12000, scoped, tag = 'internal scratch']
  %s0 = inlined_call_operand.vmem [shape: bf16[2,16,4], index: 0, kind: input, shape index: {}]
  %s1 = inlined_call_operand.vmem [shape: bf16[2,16,4], index: 1, kind: input, shape index: {}]
  %s2 = inlined_call_operand.vmem [shape: f32[2,1,5], index: 2, kind: input, shape index: {}]
  %s3 = inlined_call_operand.vmem [shape: bf16[3,4,16], index: 3, kind: input, shape index: {}]
  %s4 = inlined_call_operand.vmem [shape: f32[1,16], index: 4, kind: input, shape index: {}]
  %s5 = inlined_call_operand.vmem [shape: bf16[3,16,8], index: 5, kind: input, shape index: {}]
  %s6 = inlined_call_operand.vmem [shape: f32[1,8], index: 6, kind: input, shape index: {}]
  %s7 = inlined_call_operand.vmem [shape: bf16[4,8], index: 7, kind: input, shape index: {}]
  %s8 = inlined_call_operand.vmem [shape: f32[1,8], index: 8, kind: input, shape index: {}]
  %s9 = inlined_call_operand.vmem [shape: bf16[3,8,16], index: 9, kind: input, shape index: {}]
  %s10 = inlined_call_operand.vmem [shape: f32[1,16], index: 10, kind: input, shape index: {}]
  %s11 = inlined_call_operand.vmem [shape: bf16[3,16,8], index: 11, kind: input, shape index: {}]
  %s12 = inlined_call_operand.vmem [shape: f32[1,8], index: 12, kind: input, shape index: {}]
  %s13 = inlined_call_operand.vmem [shape: bf16[3,8,16], index: 13, kind: input, shape index: {}]
  %s14 = inlined_call_operand.vmem [shape: f32[1,16], index: 14, kind: input, shape index: {}]
  %s15 = inlined_call_operand.vmem [shape: bf16[3,16,8], index: 15, kind: input, shape index: {}]
  %s16 = inlined_call_operand.vmem [shape: f32[1,8], index: 16, kind: input, shape index: {}]
  %s17 = inlined_call_operand.vmem [shape: bf16[3,8,16], index: 17, kind: input, shape index: {}]
  %s18 = inlined_call_operand.vmem [shape: f32[1,16], index: 18, kind: input, shape index: {}]
  %s19 = inlined_call_operand.vmem [shape: bf16[3,16,8], index: 19, kind: input, shape index: {}]
  %s20 = inlined_call_operand.vmem [shape: f32[1,8], index: 20, kind: input, shape index: {}]
  %s21 = inlined_call_operand.vmem [shape: f32[8,5], index: 21, kind: input, shape index: {}]
  %s22 = inlined_call_operand.vmem [shape: f32[1,5], index: 22, kind: input, shape index: {}]
  %s23 = inlined_call_operand.vmem [shape: f32[2,1,1], index: 23, kind: output, shape index: {}]
  %s24 = sld [smem:[#allocation0]]
  $region125: #{tpu_custom_call.1} parent=0
    _
  %s26 = ssub.s32 1, %s24
  %s27 = scalar_select 0, %s26, %s24
  loop: start=0, step=1, limit=4
  $region2: #{tpu_custom_call.1} parent=0 // loop_pre_header
    _
  $region3: #{tpu_custom_call.1} parent=0 // loop_header
    %s29 = sphi 0, %s33
    %p30 = scmp.ge.s32.totalorder %s29, 4
    %s39 = sphi 0, %s41
    %s42 = sphi 0, %s39
    %s43 = sphi 0, %s42
    %s59 = sphi 0, %s43
    %s65 = sphi 0, %s67
    %s68 = sphi 0, %s65
    %s69 = sphi 0, %s68
    %s85 = sphi 0, %s69
    %s91 = sphi 0, %s93
    %s94 = sphi 0, %s91
    %s95 = sphi 0, %s94
    %s111 = sphi 0, %s95
    %s115 = sphi 0, %s115
    %s117 = sphi 0, %s115
    %s118 = sphi 0, %s117
    %s132 = sphi 0, %s118
    %s136 = sphi 0, %s136
    %s138 = sphi 0, %s136
    %s139 = sphi 0, %s138
    %s153 = sphi 0, %s139
    %s157 = sphi 0, %s157
    %s159 = sphi 0, %s157
    %s160 = sphi 0, %s159
    %s174 = sphi 0, %s160
    %s178 = sphi 0, %s178
    %s180 = sphi 0, %s178
    %s181 = sphi 0, %s180
    %s195 = sphi 0, %s181
    %s199 = sphi 0, %s199
    %s201 = sphi 0, %s199
    %s202 = sphi 0, %s201
    %s216 = sphi 0, %s202
    %s220 = sphi 0, %s220
    %s222 = sphi 0, %s220
    %s223 = sphi 0, %s222
    %s237 = sphi 0, %s223
    %s241 = sphi 0, %s241
    %s243 = sphi 0, %s241
    %s244 = sphi 0, %s243
    %s258 = sphi 0, %s244
    %s262 = sphi 0, %s262
    %s264 = sphi 0, %s262
    %s265 = sphi 0, %s264
    %s279 = sphi 0, %s265
    %s283 = sphi 0, %s283
    %s285 = sphi 0, %s283
    %s286 = sphi 0, %s285
    %s300 = sphi 0, %s286
    %s304 = sphi 0, %s304
    %s306 = sphi 0, %s304
    %s307 = sphi 0, %s306
    %s321 = sphi 0, %s307
    %s325 = sphi 0, %s325
    %s327 = sphi 0, %s325
    %s328 = sphi 0, %s327
    %s342 = sphi 0, %s328
    %s346 = sphi 0, %s346
    %s348 = sphi 0, %s346
    %s349 = sphi 0, %s348
    %s363 = sphi 0, %s349
    %s367 = sphi 0, %s367
    %s369 = sphi 0, %s367
    %s370 = sphi 0, %s369
    %s384 = sphi 0, %s370
    %s388 = sphi 0, %s388
    %s390 = sphi 0, %s388
    %s391 = sphi 0, %s390
    %s405 = sphi 0, %s391
    %s409 = sphi 0, %s409
    %s411 = sphi 0, %s409
    %s412 = sphi 0, %s411
    %s426 = sphi 0, %s412
    %s430 = sphi 0, %s430
    %s432 = sphi 0, %s430
    %s433 = sphi 0, %s432
    %s447 = sphi 0, %s433
    %s451 = sphi 0, %s451
    %s453 = sphi 0, %s451
    %s454 = sphi 0, %s453
    %s468 = sphi 0, %s454
    %s472 = sphi 0, %s472
    %s474 = sphi 0, %s472
    %s475 = sphi 0, %s474
    %s489 = sphi 0, %s475
    %s493 = sphi 0, %s493
    %s495 = sphi 0, %s493
    %s496 = sphi 0, %s495
    %s510 = sphi 0, %s496
    %s514 = sphi 0, %s514
    %s516 = sphi 0, %s514
    %s517 = sphi 0, %s516
    %s531 = sphi 0, %s517
    %s537 = sphi 0, %s539
    %s540 = sphi 0, %s537
    %s541 = sphi 0, %s540
    %s557 = sphi 0, %s541
  $region4: #{tpu_custom_call.1} parent=0 // loop_header_branch
    %32 = sbr.rel (%p30) target = $region8
  $region5: #{tpu_custom_call.1} parent=0 // loop_body
    %s34 = ssub.s32 %s29, 1
    %s35 = ssub.s32 %s29, 2
    %s36 = sadd.s32 %s29, 1
    %s37 = ssub.s32 %s29, %s36
    %p38 = scmp.eq.s32.totalorder %s37, 0
    %s40 = sadd.s32 %s39, 1
    %s41 = scalar_select %p38, %s39, %s40
    %p44 = pneg %p38
    %p45 = scmp.eq.s32.totalorder %s29, 1
    %p46 = por %p44, %p45
    %p47 = scmp.ne.s32.totalorder %s39, %s42
    %p48 = scmp.eq.s32.totalorder %s29, 0
    %p49 = por %p47, %p48
    %p50 = scmp.ne.s32.totalorder %s39, %s42
    %p51 = scmp.eq.s32.totalorder %s34, 1
    %p52 = por %p50, %p51
    %p53 = scmp.ne.s32.totalorder %s42, %s43
    %p54 = scmp.eq.s32.totalorder %s34, 0
    %p55 = por %p53, %p54
    %p56 = scmp.ne.s32.totalorder %s42, %s43
    %p57 = scmp.eq.s32.totalorder %s35, 1
    %p58 = por %p56, %p57
    %p60 = scmp.ne.s32.totalorder %s43, %s59
    %p61 = scmp.eq.s32.totalorder %s35, 0
    %p62 = por %p60, %p61
    %s63 = ssub.s32 %s29, %s36
    %p64 = scmp.eq.s32.totalorder %s63, 0
    %s66 = sadd.s32 %s65, 1
    %s67 = scalar_select %p64, %s65, %s66
    %p70 = pneg %p64
    %p71 = scmp.eq.s32.totalorder %s29, 1
    %p72 = por %p70, %p71
    %p73 = scmp.ne.s32.totalorder %s65, %s68
    %p74 = scmp.eq.s32.totalorder %s29, 0
    %p75 = por %p73, %p74
    %p76 = scmp.ne.s32.totalorder %s65, %s68
    %p77 = scmp.eq.s32.totalorder %s34, 1
    %p78 = por %p76, %p77
    %p79 = scmp.ne.s32.totalorder %s68, %s69
    %p80 = scmp.eq.s32.totalorder %s34, 0
    %p81 = por %p79, %p80
    %p82 = scmp.ne.s32.totalorder %s68, %s69
    %p83 = scmp.eq.s32.totalorder %s35, 1
    %p84 = por %p82, %p83
    %p86 = scmp.ne.s32.totalorder %s69, %s85
    %p87 = scmp.eq.s32.totalorder %s35, 0
    %p88 = por %p86, %p87
    %s89 = ssub.s32 %s29, %s36
    %p90 = scmp.eq.s32.totalorder %s89, 0
    %s92 = sadd.s32 %s91, 1
    %s93 = scalar_select %p90, %s91, %s92
    %p96 = pneg %p90
    %p97 = scmp.eq.s32.totalorder %s29, 1
    %p98 = por %p96, %p97
    %p99 = scmp.ne.s32.totalorder %s91, %s94
    %p100 = scmp.eq.s32.totalorder %s29, 0
    %p101 = por %p99, %p100
    %p102 = scmp.ne.s32.totalorder %s91, %s94
    %p103 = scmp.eq.s32.totalorder %s34, 1
    %p104 = por %p102, %p103
    %p105 = scmp.ne.s32.totalorder %s94, %s95
    %p106 = scmp.eq.s32.totalorder %s34, 0
    %p107 = por %p105, %p106
    %p108 = scmp.ne.s32.totalorder %s94, %s95
    %p109 = scmp.eq.s32.totalorder %s35, 1
    %p110 = por %p108, %p109
    %p112 = scmp.ne.s32.totalorder %s95, %s111
    %p113 = scmp.eq.s32.totalorder %s35, 0
    %p114 = por %p112, %p113
    %s116 = sadd.s32 %s115, 1
    %p119 = scmp.eq.s32.totalorder %s29, 1
    %p120 = scmp.ne.s32.totalorder %s115, %s117
    %p121 = scmp.eq.s32.totalorder %s29, 0
    %p122 = por %p120, %p121
    %p123 = scmp.ne.s32.totalorder %s115, %s117
    %p124 = scmp.eq.s32.totalorder %s34, 1
    %p125 = por %p123, %p124
    %p126 = scmp.ne.s32.totalorder %s117, %s118
    %p127 = scmp.eq.s32.totalorder %s34, 0
    %p128 = por %p126, %p127
    %p129 = scmp.ne.s32.totalorder %s117, %s118
    %p130 = scmp.eq.s32.totalorder %s35, 1
    %p131 = por %p129, %p130
    %p133 = scmp.ne.s32.totalorder %s118, %s132
    %p134 = scmp.eq.s32.totalorder %s35, 0
    %p135 = por %p133, %p134
    %s137 = sadd.s32 %s136, 1
    %p140 = scmp.eq.s32.totalorder %s29, 1
    %p141 = scmp.ne.s32.totalorder %s136, %s138
    %p142 = scmp.eq.s32.totalorder %s29, 0
    %p143 = por %p141, %p142
    %p144 = scmp.ne.s32.totalorder %s136, %s138
    %p145 = scmp.eq.s32.totalorder %s34, 1
    %p146 = por %p144, %p145
    %p147 = scmp.ne.s32.totalorder %s138, %s139
    %p148 = scmp.eq.s32.totalorder %s34, 0
    %p149 = por %p147, %p148
    %p150 = scmp.ne.s32.totalorder %s138, %s139
    %p151 = scmp.eq.s32.totalorder %s35, 1
    %p152 = por %p150, %p151
    %p154 = scmp.ne.s32.totalorder %s139, %s153
    %p155 = scmp.eq.s32.totalorder %s35, 0
    %p156 = por %p154, %p155
    %s158 = sadd.s32 %s157, 1
    %p161 = scmp.eq.s32.totalorder %s29, 1
    %p162 = scmp.ne.s32.totalorder %s157, %s159
    %p163 = scmp.eq.s32.totalorder %s29, 0
    %p164 = por %p162, %p163
    %p165 = scmp.ne.s32.totalorder %s157, %s159
    %p166 = scmp.eq.s32.totalorder %s34, 1
    %p167 = por %p165, %p166
    %p168 = scmp.ne.s32.totalorder %s159, %s160
    %p169 = scmp.eq.s32.totalorder %s34, 0
    %p170 = por %p168, %p169
    %p171 = scmp.ne.s32.totalorder %s159, %s160
    %p172 = scmp.eq.s32.totalorder %s35, 1
    %p173 = por %p171, %p172
    %p175 = scmp.ne.s32.totalorder %s160, %s174
    %p176 = scmp.eq.s32.totalorder %s35, 0
    %p177 = por %p175, %p176
    %s179 = sadd.s32 %s178, 1
    %p182 = scmp.eq.s32.totalorder %s29, 1
    %p183 = scmp.ne.s32.totalorder %s178, %s180
    %p184 = scmp.eq.s32.totalorder %s29, 0
    %p185 = por %p183, %p184
    %p186 = scmp.ne.s32.totalorder %s178, %s180
    %p187 = scmp.eq.s32.totalorder %s34, 1
    %p188 = por %p186, %p187
    %p189 = scmp.ne.s32.totalorder %s180, %s181
    %p190 = scmp.eq.s32.totalorder %s34, 0
    %p191 = por %p189, %p190
    %p192 = scmp.ne.s32.totalorder %s180, %s181
    %p193 = scmp.eq.s32.totalorder %s35, 1
    %p194 = por %p192, %p193
    %p196 = scmp.ne.s32.totalorder %s181, %s195
    %p197 = scmp.eq.s32.totalorder %s35, 0
    %p198 = por %p196, %p197
    %s200 = sadd.s32 %s199, 1
    %p203 = scmp.eq.s32.totalorder %s29, 1
    %p204 = scmp.ne.s32.totalorder %s199, %s201
    %p205 = scmp.eq.s32.totalorder %s29, 0
    %p206 = por %p204, %p205
    %p207 = scmp.ne.s32.totalorder %s199, %s201
    %p208 = scmp.eq.s32.totalorder %s34, 1
    %p209 = por %p207, %p208
    %p210 = scmp.ne.s32.totalorder %s201, %s202
    %p211 = scmp.eq.s32.totalorder %s34, 0
    %p212 = por %p210, %p211
    %p213 = scmp.ne.s32.totalorder %s201, %s202
    %p214 = scmp.eq.s32.totalorder %s35, 1
    %p215 = por %p213, %p214
    %p217 = scmp.ne.s32.totalorder %s202, %s216
    %p218 = scmp.eq.s32.totalorder %s35, 0
    %p219 = por %p217, %p218
    %s221 = sadd.s32 %s220, 1
    %p224 = scmp.eq.s32.totalorder %s29, 1
    %p225 = scmp.ne.s32.totalorder %s220, %s222
    %p226 = scmp.eq.s32.totalorder %s29, 0
    %p227 = por %p225, %p226
    %p228 = scmp.ne.s32.totalorder %s220, %s222
    %p229 = scmp.eq.s32.totalorder %s34, 1
    %p230 = por %p228, %p229
    %p231 = scmp.ne.s32.totalorder %s222, %s223
    %p232 = scmp.eq.s32.totalorder %s34, 0
    %p233 = por %p231, %p232
    %p234 = scmp.ne.s32.totalorder %s222, %s223
    %p235 = scmp.eq.s32.totalorder %s35, 1
    %p236 = por %p234, %p235
    %p238 = scmp.ne.s32.totalorder %s223, %s237
    %p239 = scmp.eq.s32.totalorder %s35, 0
    %p240 = por %p238, %p239
    %s242 = sadd.s32 %s241, 1
    %p245 = scmp.eq.s32.totalorder %s29, 1
    %p246 = scmp.ne.s32.totalorder %s241, %s243
    %p247 = scmp.eq.s32.totalorder %s29, 0
    %p248 = por %p246, %p247
    %p249 = scmp.ne.s32.totalorder %s241, %s243
    %p250 = scmp.eq.s32.totalorder %s34, 1
    %p251 = por %p249, %p250
    %p252 = scmp.ne.s32.totalorder %s243, %s244
    %p253 = scmp.eq.s32.totalorder %s34, 0
    %p254 = por %p252, %p253
    %p255 = scmp.ne.s32.totalorder %s243, %s244
    %p256 = scmp.eq.s32.totalorder %s35, 1
    %p257 = por %p255, %p256
    %p259 = scmp.ne.s32.totalorder %s244, %s258
    %p260 = scmp.eq.s32.totalorder %s35, 0
    %p261 = por %p259, %p260
    %s263 = sadd.s32 %s262, 1
    %p266 = scmp.eq.s32.totalorder %s29, 1
    %p267 = scmp.ne.s32.totalorder %s262, %s264
    %p268 = scmp.eq.s32.totalorder %s29, 0
    %p269 = por %p267, %p268
    %p270 = scmp.ne.s32.totalorder %s262, %s264
    %p271 = scmp.eq.s32.totalorder %s34, 1
    %p272 = por %p270, %p271
    %p273 = scmp.ne.s32.totalorder %s264, %s265
    %p274 = scmp.eq.s32.totalorder %s34, 0
    %p275 = por %p273, %p274
    %p276 = scmp.ne.s32.totalorder %s264, %s265
    %p277 = scmp.eq.s32.totalorder %s35, 1
    %p278 = por %p276, %p277
    %p280 = scmp.ne.s32.totalorder %s265, %s279
    %p281 = scmp.eq.s32.totalorder %s35, 0
    %p282 = por %p280, %p281
    %s284 = sadd.s32 %s283, 1
    %p287 = scmp.eq.s32.totalorder %s29, 1
    %p288 = scmp.ne.s32.totalorder %s283, %s285
    %p289 = scmp.eq.s32.totalorder %s29, 0
    %p290 = por %p288, %p289
    %p291 = scmp.ne.s32.totalorder %s283, %s285
    %p292 = scmp.eq.s32.totalorder %s34, 1
    %p293 = por %p291, %p292
    %p294 = scmp.ne.s32.totalorder %s285, %s286
    %p295 = scmp.eq.s32.totalorder %s34, 0
    %p296 = por %p294, %p295
    %p297 = scmp.ne.s32.totalorder %s285, %s286
    %p298 = scmp.eq.s32.totalorder %s35, 1
    %p299 = por %p297, %p298
    %p301 = scmp.ne.s32.totalorder %s286, %s300
    %p302 = scmp.eq.s32.totalorder %s35, 0
    %p303 = por %p301, %p302
    %s305 = sadd.s32 %s304, 1
    %p308 = scmp.eq.s32.totalorder %s29, 1
    %p309 = scmp.ne.s32.totalorder %s304, %s306
    %p310 = scmp.eq.s32.totalorder %s29, 0
    %p311 = por %p309, %p310
    %p312 = scmp.ne.s32.totalorder %s304, %s306
    %p313 = scmp.eq.s32.totalorder %s34, 1
    %p314 = por %p312, %p313
    %p315 = scmp.ne.s32.totalorder %s306, %s307
    %p316 = scmp.eq.s32.totalorder %s34, 0
    %p317 = por %p315, %p316
    %p318 = scmp.ne.s32.totalorder %s306, %s307
    %p319 = scmp.eq.s32.totalorder %s35, 1
    %p320 = por %p318, %p319
    %p322 = scmp.ne.s32.totalorder %s307, %s321
    %p323 = scmp.eq.s32.totalorder %s35, 0
    %p324 = por %p322, %p323
    %s326 = sadd.s32 %s325, 1
    %p329 = scmp.eq.s32.totalorder %s29, 1
    %p330 = scmp.ne.s32.totalorder %s325, %s327
    %p331 = scmp.eq.s32.totalorder %s29, 0
    %p332 = por %p330, %p331
    %p333 = scmp.ne.s32.totalorder %s325, %s327
    %p334 = scmp.eq.s32.totalorder %s34, 1
    %p335 = por %p333, %p334
    %p336 = scmp.ne.s32.totalorder %s327, %s328
    %p337 = scmp.eq.s32.totalorder %s34, 0
    %p338 = por %p336, %p337
    %p339 = scmp.ne.s32.totalorder %s327, %s328
    %p340 = scmp.eq.s32.totalorder %s35, 1
    %p341 = por %p339, %p340
    %p343 = scmp.ne.s32.totalorder %s328, %s342
    %p344 = scmp.eq.s32.totalorder %s35, 0
    %p345 = por %p343, %p344
    %s347 = sadd.s32 %s346, 1
    %p350 = scmp.eq.s32.totalorder %s29, 1
    %p351 = scmp.ne.s32.totalorder %s346, %s348
    %p352 = scmp.eq.s32.totalorder %s29, 0
    %p353 = por %p351, %p352
    %p354 = scmp.ne.s32.totalorder %s346, %s348
    %p355 = scmp.eq.s32.totalorder %s34, 1
    %p356 = por %p354, %p355
    %p357 = scmp.ne.s32.totalorder %s348, %s349
    %p358 = scmp.eq.s32.totalorder %s34, 0
    %p359 = por %p357, %p358
    %p360 = scmp.ne.s32.totalorder %s348, %s349
    %p361 = scmp.eq.s32.totalorder %s35, 1
    %p362 = por %p360, %p361
    %p364 = scmp.ne.s32.totalorder %s349, %s363
    %p365 = scmp.eq.s32.totalorder %s35, 0
    %p366 = por %p364, %p365
    %s368 = sadd.s32 %s367, 1
    %p371 = scmp.eq.s32.totalorder %s29, 1
    %p372 = scmp.ne.s32.totalorder %s367, %s369
    %p373 = scmp.eq.s32.totalorder %s29, 0
    %p374 = por %p372, %p373
    %p375 = scmp.ne.s32.totalorder %s367, %s369
    %p376 = scmp.eq.s32.totalorder %s34, 1
    %p377 = por %p375, %p376
    %p378 = scmp.ne.s32.totalorder %s369, %s370
    %p379 = scmp.eq.s32.totalorder %s34, 0
    %p380 = por %p378, %p379
    %p381 = scmp.ne.s32.totalorder %s369, %s370
    %p382 = scmp.eq.s32.totalorder %s35, 1
    %p383 = por %p381, %p382
    %p385 = scmp.ne.s32.totalorder %s370, %s384
    %p386 = scmp.eq.s32.totalorder %s35, 0
    %p387 = por %p385, %p386
    %s389 = sadd.s32 %s388, 1
    %p392 = scmp.eq.s32.totalorder %s29, 1
    %p393 = scmp.ne.s32.totalorder %s388, %s390
    %p394 = scmp.eq.s32.totalorder %s29, 0
    %p395 = por %p393, %p394
    %p396 = scmp.ne.s32.totalorder %s388, %s390
    %p397 = scmp.eq.s32.totalorder %s34, 1
    %p398 = por %p396, %p397
    %p399 = scmp.ne.s32.totalorder %s390, %s391
    %p400 = scmp.eq.s32.totalorder %s34, 0
    %p401 = por %p399, %p400
    %p402 = scmp.ne.s32.totalorder %s390, %s391
    %p403 = scmp.eq.s32.totalorder %s35, 1
    %p404 = por %p402, %p403
    %p406 = scmp.ne.s32.totalorder %s391, %s405
    %p407 = scmp.eq.s32.totalorder %s35, 0
    %p408 = por %p406, %p407
    %s410 = sadd.s32 %s409, 1
    %p413 = scmp.eq.s32.totalorder %s29, 1
    %p414 = scmp.ne.s32.totalorder %s409, %s411
    %p415 = scmp.eq.s32.totalorder %s29, 0
    %p416 = por %p414, %p415
    %p417 = scmp.ne.s32.totalorder %s409, %s411
    %p418 = scmp.eq.s32.totalorder %s34, 1
    %p419 = por %p417, %p418
    %p420 = scmp.ne.s32.totalorder %s411, %s412
    %p421 = scmp.eq.s32.totalorder %s34, 0
    %p422 = por %p420, %p421
    %p423 = scmp.ne.s32.totalorder %s411, %s412
    %p424 = scmp.eq.s32.totalorder %s35, 1
    %p425 = por %p423, %p424
    %p427 = scmp.ne.s32.totalorder %s412, %s426
    %p428 = scmp.eq.s32.totalorder %s35, 0
    %p429 = por %p427, %p428
    %s431 = sadd.s32 %s430, 1
    %p434 = scmp.eq.s32.totalorder %s29, 1
    %p435 = scmp.ne.s32.totalorder %s430, %s432
    %p436 = scmp.eq.s32.totalorder %s29, 0
    %p437 = por %p435, %p436
    %p438 = scmp.ne.s32.totalorder %s430, %s432
    %p439 = scmp.eq.s32.totalorder %s34, 1
    %p440 = por %p438, %p439
    %p441 = scmp.ne.s32.totalorder %s432, %s433
    %p442 = scmp.eq.s32.totalorder %s34, 0
    %p443 = por %p441, %p442
    %p444 = scmp.ne.s32.totalorder %s432, %s433
    %p445 = scmp.eq.s32.totalorder %s35, 1
    %p446 = por %p444, %p445
    %p448 = scmp.ne.s32.totalorder %s433, %s447
    %p449 = scmp.eq.s32.totalorder %s35, 0
    %p450 = por %p448, %p449
    %s452 = sadd.s32 %s451, 1
    %p455 = scmp.eq.s32.totalorder %s29, 1
    %p456 = scmp.ne.s32.totalorder %s451, %s453
    %p457 = scmp.eq.s32.totalorder %s29, 0
    %p458 = por %p456, %p457
    %p459 = scmp.ne.s32.totalorder %s451, %s453
    %p460 = scmp.eq.s32.totalorder %s34, 1
    %p461 = por %p459, %p460
    %p462 = scmp.ne.s32.totalorder %s453, %s454
    %p463 = scmp.eq.s32.totalorder %s34, 0
    %p464 = por %p462, %p463
    %p465 = scmp.ne.s32.totalorder %s453, %s454
    %p466 = scmp.eq.s32.totalorder %s35, 1
    %p467 = por %p465, %p466
    %p469 = scmp.ne.s32.totalorder %s454, %s468
    %p470 = scmp.eq.s32.totalorder %s35, 0
    %p471 = por %p469, %p470
    %s473 = sadd.s32 %s472, 1
    %p476 = scmp.eq.s32.totalorder %s29, 1
    %p477 = scmp.ne.s32.totalorder %s472, %s474
    %p478 = scmp.eq.s32.totalorder %s29, 0
    %p479 = por %p477, %p478
    %p480 = scmp.ne.s32.totalorder %s472, %s474
    %p481 = scmp.eq.s32.totalorder %s34, 1
    %p482 = por %p480, %p481
    %p483 = scmp.ne.s32.totalorder %s474, %s475
    %p484 = scmp.eq.s32.totalorder %s34, 0
    %p485 = por %p483, %p484
    %p486 = scmp.ne.s32.totalorder %s474, %s475
    %p487 = scmp.eq.s32.totalorder %s35, 1
    %p488 = por %p486, %p487
    %p490 = scmp.ne.s32.totalorder %s475, %s489
    %p491 = scmp.eq.s32.totalorder %s35, 0
    %p492 = por %p490, %p491
    %s494 = sadd.s32 %s493, 1
    %p497 = scmp.eq.s32.totalorder %s29, 1
    %p498 = scmp.ne.s32.totalorder %s493, %s495
    %p499 = scmp.eq.s32.totalorder %s29, 0
    %p500 = por %p498, %p499
    %p501 = scmp.ne.s32.totalorder %s493, %s495
    %p502 = scmp.eq.s32.totalorder %s34, 1
    %p503 = por %p501, %p502
    %p504 = scmp.ne.s32.totalorder %s495, %s496
    %p505 = scmp.eq.s32.totalorder %s34, 0
    %p506 = por %p504, %p505
    %p507 = scmp.ne.s32.totalorder %s495, %s496
    %p508 = scmp.eq.s32.totalorder %s35, 1
    %p509 = por %p507, %p508
    %p511 = scmp.ne.s32.totalorder %s496, %s510
    %p512 = scmp.eq.s32.totalorder %s35, 0
    %p513 = por %p511, %p512
    %s515 = sadd.s32 %s514, 1
    %p518 = scmp.eq.s32.totalorder %s29, 1
    %p519 = scmp.ne.s32.totalorder %s514, %s516
    %p520 = scmp.eq.s32.totalorder %s29, 0
    %p521 = por %p519, %p520
    %p522 = scmp.ne.s32.totalorder %s514, %s516
    %p523 = scmp.eq.s32.totalorder %s34, 1
    %p524 = por %p522, %p523
    %p525 = scmp.ne.s32.totalorder %s516, %s517
    %p526 = scmp.eq.s32.totalorder %s34, 0
    %p527 = por %p525, %p526
    %p528 = scmp.ne.s32.totalorder %s516, %s517
    %p529 = scmp.eq.s32.totalorder %s35, 1
    %p530 = por %p528, %p529
    %p532 = scmp.ne.s32.totalorder %s517, %s531
    %p533 = scmp.eq.s32.totalorder %s35, 0
    %p534 = por %p532, %p533
    %s535 = ssub.s32 %s29, %s36
    %p536 = scmp.eq.s32.totalorder %s535, 0
    %s538 = sadd.s32 %s537, 1
    %s539 = scalar_select %p536, %s537, %s538
    %p542 = pneg %p536
    %p543 = scmp.eq.s32.totalorder %s29, 1
    %p544 = por %p542, %p543
    %p545 = scmp.ne.s32.totalorder %s537, %s540
    %p546 = scmp.eq.s32.totalorder %s29, 0
    %p547 = por %p545, %p546
    %p548 = scmp.ne.s32.totalorder %s537, %s540
    %p549 = scmp.eq.s32.totalorder %s34, 1
    %p550 = por %p548, %p549
    %p551 = scmp.ne.s32.totalorder %s540, %s541
    %p552 = scmp.eq.s32.totalorder %s34, 0
    %p553 = por %p551, %p552
    %p554 = scmp.ne.s32.totalorder %s540, %s541
    %p555 = scmp.eq.s32.totalorder %s35, 1
    %p556 = por %p554, %p555
    %p558 = scmp.ne.s32.totalorder %s541, %s557
    %p559 = scmp.eq.s32.totalorder %s35, 0
    %p560 = por %p558, %p559
    %p561 = scmp.le.s32.totalorder 1, %s29
    %p562 = scmp.lt.s32.totalorder %s29, 3
    %p563 = pnand %p561, %p562
    %p564 = pneg %p563
    // Predicated region
    $region9: #{tpu_custom_call.1} parent=5 // pred_check
      _
    $region10: #{tpu_custom_call.1} parent=5 // pred_check_branch
      %566 = sbr.rel (%p563) target = $region12
    $region11: #{tpu_custom_call.1} parent=5 // pred_region
      %s567 = ssub.s32 %s29, 1
      // Predicated region
      $region13: #{tpu_custom_call.1} parent=11 // pred_check
        %p568 = pneg %p128
      $region14: #{tpu_custom_call.1} parent=11 // pred_check_branch
        %570 = sbr.rel (%p568) target = $region16
      $region15: #{tpu_custom_call.1} parent=11 // pred_region
        _
      $region16: #{tpu_custom_call.1} parent=11 // pred_fallthru
        _
      // Predicated region
      $region17: #{tpu_custom_call.1} parent=11 // pred_check
        %p571 = pneg %p149
      $region18: #{tpu_custom_call.1} parent=11 // pred_check_branch
        %573 = sbr.rel (%p571) target = $region20
      $region19: #{tpu_custom_call.1} parent=11 // pred_region
        _
      $region20: #{tpu_custom_call.1} parent=11 // pred_fallthru
        _
      // Predicated region
      $region21: #{tpu_custom_call.1} parent=11 // pred_check
        %p574 = pneg %p170
      $region22: #{tpu_custom_call.1} parent=11 // pred_check_branch
        %576 = sbr.rel (%p574) target = $region24
      $region23: #{tpu_custom_call.1} parent=11 // pred_region
        _
      $region24: #{tpu_custom_call.1} parent=11 // pred_fallthru
        _
      // Predicated region
      $region25: #{tpu_custom_call.1} parent=11 // pred_check
        %p577 = pneg %p191
      $region26: #{tpu_custom_call.1} parent=11 // pred_check_branch
        %579 = sbr.rel (%p577) target = $region28
      $region27: #{tpu_custom_call.1} parent=11 // pred_region
        _
      $region28: #{tpu_custom_call.1} parent=11 // pred_fallthru
        _
      // Predicated region
      $region29: #{tpu_custom_call.1} parent=11 // pred_check
        %p580 = pneg %p212
      $region30: #{tpu_custom_call.1} parent=11 // pred_check_branch
        %582 = sbr.rel (%p580) target = $region32
      $region31: #{tpu_custom_call.1} parent=11 // pred_region
        _
      $region32: #{tpu_custom_call.1} parent=11 // pred_fallthru
        _
      // Predicated region
      $region33: #{tpu_custom_call.1} parent=11 // pred_check
        %p583 = pneg %p233
      $region34: #{tpu_custom_call.1} parent=11 // pred_check_branch
        %585 = sbr.rel (%p583) target = $region36
      $region35: #{tpu_custom_call.1} parent=11 // pred_region
        _
      $region36: #{tpu_custom_call.1} parent=11 // pred_fallthru
        _
      // Predicated region
      $region37: #{tpu_custom_call.1} parent=11 // pred_check
        %p586 = pneg %p254
      $region38: #{tpu_custom_call.1} parent=11 // pred_check_branch
        %588 = sbr.rel (%p586) target = $region40
      $region39: #{tpu_custom_call.1} parent=11 // pred_region
        _
      $region40: #{tpu_custom_call.1} parent=11 // pred_fallthru
        _
      // Predicated region
      $region41: #{tpu_custom_call.1} parent=11 // pred_check
        %p589 = pneg %p275
      $region42: #{tpu_custom_call.1} parent=11 // pred_check_branch
        %591 = sbr.rel (%p589) target = $region44
      $region43: #{tpu_custom_call.1} parent=11 // pred_region
        _
      $region44: #{tpu_custom_call.1} parent=11 // pred_fallthru
        _
      // Predicated region
      $region45: #{tpu_custom_call.1} parent=11 // pred_check
        %p592 = pneg %p296
      $region46: #{tpu_custom_call.1} parent=11 // pred_check_branch
        %594 = sbr.rel (%p592) target = $region48
      $region47: #{tpu_custom_call.1} parent=11 // pred_region
        _
      $region48: #{tpu_custom_call.1} parent=11 // pred_fallthru
        _
      // Predicated region
      $region49: #{tpu_custom_call.1} parent=11 // pred_check
        %p595 = pneg %p317
      $region50: #{tpu_custom_call.1} parent=11 // pred_check_branch
        %597 = sbr.rel (%p595) target = $region52
      $region51: #{tpu_custom_call.1} parent=11 // pred_region
        _
      $region52: #{tpu_custom_call.1} parent=11 // pred_fallthru
        _
      // Predicated region
      $region53: #{tpu_custom_call.1} parent=11 // pred_check
        %p598 = pneg %p338
      $region54: #{tpu_custom_call.1} parent=11 // pred_check_branch
        %600 = sbr.rel (%p598) target = $region56
      $region55: #{tpu_custom_call.1} parent=11 // pred_region
        _
      $region56: #{tpu_custom_call.1} parent=11 // pred_fallthru
        _
      // Predicated region
      $region57: #{tpu_custom_call.1} parent=11 // pred_check
        %p601 = pneg %p359
      $region58: #{tpu_custom_call.1} parent=11 // pred_check_branch
        %603 = sbr.rel (%p601) target = $region60
      $region59: #{tpu_custom_call.1} parent=11 // pred_region
        _
      $region60: #{tpu_custom_call.1} parent=11 // pred_fallthru
        _
      // Predicated region
      $region61: #{tpu_custom_call.1} parent=11 // pred_check
        %p604 = pneg %p380
      $region62: #{tpu_custom_call.1} parent=11 // pred_check_branch
        %606 = sbr.rel (%p604) target = $region64
      $region63: #{tpu_custom_call.1} parent=11 // pred_region
        _
      $region64: #{tpu_custom_call.1} parent=11 // pred_fallthru
        _
      // Predicated region
      $region65: #{tpu_custom_call.1} parent=11 // pred_check
        %p607 = pneg %p401
      $region66: #{tpu_custom_call.1} parent=11 // pred_check_branch
        %609 = sbr.rel (%p607) target = $region68
      $region67: #{tpu_custom_call.1} parent=11 // pred_region
        _
      $region68: #{tpu_custom_call.1} parent=11 // pred_fallthru
        _
      // Predicated region
      $region69: #{tpu_custom_call.1} parent=11 // pred_check
        %p610 = pneg %p422
      $region70: #{tpu_custom_call.1} parent=11 // pred_check_branch
        %612 = sbr.rel (%p610) target = $region72
      $region71: #{tpu_custom_call.1} parent=11 // pred_region
        _
      $region72: #{tpu_custom_call.1} parent=11 // pred_fallthru
        _
      // Predicated region
      $region73: #{tpu_custom_call.1} parent=11 // pred_check
        %p613 = pneg %p443
      $region74: #{tpu_custom_call.1} parent=11 // pred_check_branch
        %615 = sbr.rel (%p613) target = $region76
      $region75: #{tpu_custom_call.1} parent=11 // pred_region
        _
      $region76: #{tpu_custom_call.1} parent=11 // pred_fallthru
        _
      // Predicated region
      $region77: #{tpu_custom_call.1} parent=11 // pred_check
        %p616 = pneg %p464
      $region78: #{tpu_custom_call.1} parent=11 // pred_check_branch
        %618 = sbr.rel (%p616) target = $region80
      $region79: #{tpu_custom_call.1} parent=11 // pred_region
        _
      $region80: #{tpu_custom_call.1} parent=11 // pred_fallthru
        _
      // Predicated region
      $region81: #{tpu_custom_call.1} parent=11 // pred_check
        %p619 = pneg %p485
      $region82: #{tpu_custom_call.1} parent=11 // pred_check_branch
        %621 = sbr.rel (%p619) target = $region84
      $region83: #{tpu_custom_call.1} parent=11 // pred_region
        _
      $region84: #{tpu_custom_call.1} parent=11 // pred_fallthru
        _
      // Predicated region
      $region85: #{tpu_custom_call.1} parent=11 // pred_check
        %p622 = pneg %p506
      $region86: #{tpu_custom_call.1} parent=11 // pred_check_branch
        %624 = sbr.rel (%p622) target = $region88
      $region87: #{tpu_custom_call.1} parent=11 // pred_region
        _
      $region88: #{tpu_custom_call.1} parent=11 // pred_fallthru
        _
      // Predicated region
      $region89: #{tpu_custom_call.1} parent=11 // pred_check
        %p625 = pneg %p527
      $region90: #{tpu_custom_call.1} parent=11 // pred_check_branch
        %627 = sbr.rel (%p625) target = $region92
      $region91: #{tpu_custom_call.1} parent=11 // pred_region
        _
      $region92: #{tpu_custom_call.1} parent=11 // pred_fallthru
        _
    $region12: #{tpu_custom_call.1} parent=5 // pred_fallthru
      _
    %p628 = scmp.lt.s32.totalorder %s29, 2
    // Predicated region
    $region93: #{tpu_custom_call.1} parent=5 // pred_check
      %p629 = pneg %p628
    $region94: #{tpu_custom_call.1} parent=5 // pred_check_branch
      %631 = sbr.rel (%p629) target = $region96
    $region95: #{tpu_custom_call.1} parent=5 // pred_region
      // Predicated region
      $region97: #{tpu_custom_call.1} parent=95 // pred_check
        %p632 = pneg %p49
      $region98: #{tpu_custom_call.1} parent=95 // pred_check_branch
        %634 = sbr.rel (%p632) target = $region100
      $region99: #{tpu_custom_call.1} parent=95 // pred_region
        %p635 = scmp.lt.s32.totalorder %s29, 1
        %s636 = scalar_select %p635, %s29, 1
        %s637 = smul.addr %s636, 2
        %s638 = smul.addr %s637, 4
        %s639 = scalar_lea.vmem %s0, %s638
      $region100: #{tpu_custom_call.1} parent=95 // pred_fallthru
        _
      // Predicated region
      $region101: #{tpu_custom_call.1} parent=95 // pred_check
        %p640 = pneg %p75
      $region102: #{tpu_custom_call.1} parent=95 // pred_check_branch
        %642 = sbr.rel (%p640) target = $region104
      $region103: #{tpu_custom_call.1} parent=95 // pred_region
        %p643 = scmp.lt.s32.totalorder %s29, 1
        %s644 = scalar_select %p643, %s29, 1
        %s645 = smul.addr %s644, 2
        %s646 = smul.addr %s645, 4
        %s647 = scalar_lea.vmem %s1, %s646
      $region104: #{tpu_custom_call.1} parent=95 // pred_fallthru
        _
      // Predicated region
      $region105: #{tpu_custom_call.1} parent=95 // pred_check
        %p648 = pneg %p101
      $region106: #{tpu_custom_call.1} parent=95 // pred_check_branch
        %650 = sbr.rel (%p648) target = $region108
      $region107: #{tpu_custom_call.1} parent=95 // pred_region
        %p651 = scmp.lt.s32.totalorder %s29, 1
        %s652 = scalar_select %p651, %s29, 1
        %s653 = scalar_lea.vmem %s2, %s652
      $region108: #{tpu_custom_call.1} parent=95 // pred_fallthru
        _
    $region96: #{tpu_custom_call.1} parent=5 // pred_fallthru
      _
    %p654 = scmp.le.s32.totalorder 1, %s29
    %p655 = scmp.lt.s32.totalorder %s29, 3
    %p656 = pnand %p654, %p655
    %p657 = pneg %p656
    // Predicated region
    $region109: #{tpu_custom_call.1} parent=5 // pred_check
      _
    $region110: #{tpu_custom_call.1} parent=5 // pred_check_branch
      %659 = sbr.rel (%p656) target = $region112
    $region111: #{tpu_custom_call.1} parent=5 // pred_region
      %s660 = ssub.s32 %s29, 1
      %p661 = scmp.lt.s32.totalorder %s34, 1
      %s662 = scalar_select %p661, %s34, 1
      %s663 = smul.addr %s662, 2
      %s664 = smul.addr %s663, 4
      %s665 = scalar_lea.vmem %s0, %s664
      %p666 = pneg %p55
      %p667 = pneg %p52
      %p668 = scmp.lt.s32.totalorder %s34, 1
      %s669 = scalar_select %p668, %s34, 1
      %s670 = smul.addr %s669, 2
      %s671 = smul.addr %s670, 4
      %s672 = scalar_lea.vmem %s1, %s671
      %p673 = pneg %p81
      %p674 = pneg %p78
      %p675 = scmp.lt.s32.totalorder %s34, 1
      %s676 = scalar_select %p675, %s34, 1
      %s677 = scalar_lea.vmem %s2, %s676
      %p678 = pneg %p107
      %p679 = pneg %p104
      %p680 = pneg %p128
      %p681 = pneg %p125
      %p682 = pneg %p149
      %p683 = pneg %p146
      %p684 = pneg %p170
      %p685 = pneg %p167
      %p686 = pneg %p191
      %p687 = pneg %p188
      %p688 = pneg %p212
      %p689 = pneg %p209
      %p690 = pneg %p233
      %p691 = pneg %p230
      %p692 = pneg %p254
      %p693 = pneg %p251
      %p694 = pneg %p275
      %p695 = pneg %p272
      %p696 = pneg %p296
      %p697 = pneg %p293
      %p698 = pneg %p317
      %p699 = pneg %p314
      %p700 = pneg %p338
      %p701 = pneg %p335
      %p702 = pneg %p359
      %p703 = pneg %p356
      %p704 = pneg %p380
      %p705 = pneg %p377
      %p706 = pneg %p401
      %p707 = pneg %p398
      %p708 = pneg %p422
      %p709 = pneg %p419
      %p710 = pneg %p443
      %p711 = pneg %p440
      %p712 = pneg %p464
      %p713 = pneg %p461
      %p714 = pneg %p485
      %p715 = pneg %p482
      %p716 = pneg %p506
      %p717 = pneg %p503
      %p718 = pneg %p527
      %p719 = pneg %p524
      %p720 = pneg %p553
      %p721 = pneg %p550
      %p722 = scmp.lt.s32.totalorder %s34, 1
      %s723 = scalar_select %p722, %s34, 1
      %s724 = scalar_lea.vmem %s23, %s723
      %p725 = scmp.lt.s32.totalorder %s34, 1
      %s726 = scalar_select %p725, %s34, 1
      %s727 = smul.addr %s726, 2
      %s728 = smul.addr %s727, 4
      %s729 = scalar_lea.vmem %s0, %s728
      %p730 = scmp.lt.s32.totalorder %s34, 1
      %s731 = scalar_select %p730, %s34, 1
      %s732 = smul.addr %s731, 2
      %s733 = smul.addr %s732, 4
      %s734 = scalar_lea.vmem %s1, %s733
      %p735 = scmp.lt.s32.totalorder %s34, 1
      %s736 = scalar_select %p735, %s34, 1
      %s737 = scalar_lea.vmem %s2, %s736
      %p738 = scmp.lt.s32.totalorder %s34, 1
      %s739 = scalar_select %p738, %s34, 1
      %s740 = scalar_lea.vmem %s23, %s739
      %v742 = vld [vmem:[%s3] sm:$0x3]
      %v743 = vld [vmem:[%s3 + $0x2] sm:$0x3]
      %v744 = vld [vmem:[%s3 + $0x4] sm:$0x3]
      %v745 = vld [vmem:[%s4] sm:$0x1]
      %v746 = vld [vmem:[%s5] sm:$0xf]
      %v747 = vld [vmem:[%s5 + $0x4] sm:$0xf]
      %v748 = vld [vmem:[%s5 + $0x8] sm:$0xf]
      %v749 = vld [vmem:[%s5 + $0xc] sm:$0xf]
      %v750 = vld [vmem:[%s5 + $0x10] sm:$0xf]
      %v751 = vld [vmem:[%s5 + $0x14] sm:$0xf]
      %v752 = vld [vmem:[%s6] sm:$0x1]
      %v753 = vld [vmem:[%s7] sm:$0x3]
      %v754 = vld [vmem:[%s8] sm:$0x1]
      %v755 = vld [vmem:[%s9] sm:$0xf]
      %v756 = vld [vmem:[%s9 + $0x4] sm:$0xf]
      %v757 = vld [vmem:[%s9 + $0x8] sm:$0xf]
      %v758 = vld [vmem:[%s10] sm:$0x1]
      %v759 = vld [vmem:[%s11] sm:$0xf]
      %v760 = vld [vmem:[%s11 + $0x4] sm:$0xf]
      %v761 = vld [vmem:[%s11 + $0x8] sm:$0xf]
      %v762 = vld [vmem:[%s11 + $0xc] sm:$0xf]
      %v763 = vld [vmem:[%s11 + $0x10] sm:$0xf]
      %v764 = vld [vmem:[%s11 + $0x14] sm:$0xf]
      %v765 = vld [vmem:[%s12] sm:$0x1]
      %v766 = vld [vmem:[%s13] sm:$0xf]
      %v767 = vld [vmem:[%s13 + $0x4] sm:$0xf]
      %v768 = vld [vmem:[%s13 + $0x8] sm:$0xf]
      %v769 = vld [vmem:[%s14] sm:$0x1]
      %v770 = vld [vmem:[%s15] sm:$0xf]
      %v771 = vld [vmem:[%s15 + $0x4] sm:$0xf]
      %v772 = vld [vmem:[%s15 + $0x8] sm:$0xf]
      %v773 = vld [vmem:[%s15 + $0xc] sm:$0xf]
      %v774 = vld [vmem:[%s15 + $0x10] sm:$0xf]
      %v775 = vld [vmem:[%s15 + $0x14] sm:$0xf]
      %v776 = vld [vmem:[%s16] sm:$0x1]
      %v777 = vld [vmem:[%s17] sm:$0xf]
      %v778 = vld [vmem:[%s17 + $0x4] sm:$0xf]
      %v779 = vld [vmem:[%s17 + $0x8] sm:$0xf]
      %v780 = vld [vmem:[%s18] sm:$0x1]
      %v781 = vld [vmem:[%s19] sm:$0xf]
      %v782 = vld [vmem:[%s19 + $0x4] sm:$0xf]
      %v783 = vld [vmem:[%s19 + $0x8] sm:$0xf]
      %v784 = vld [vmem:[%s19 + $0xc] sm:$0xf]
      %v785 = vld [vmem:[%s19 + $0x10] sm:$0xf]
      %v786 = vld [vmem:[%s19 + $0x14] sm:$0xf]
      %v787 = vld [vmem:[%s20] sm:$0x1]
      %v788 = vld [vmem:[%s21] sm:$0xff]
      %v789 = vld [vmem:[%s22] sm:$0x1]
      %v790 = vld [vmem:[%s729] sm:$0xf]
      %v791 = vld [vmem:[%s729 + $0x4] sm:$0xf]
      %v792 = vld [vmem:[%s734] sm:$0xf]
      %v793 = vld [vmem:[%s734 + $0x4] sm:$0xf]
      %v796 = vunpack.c.l.b16 %v790
      %v797 = vunpack.c.l.b16 %v791
      %v798 = vpack.c.b16 %v797, %v796
      %vm799 = vcmask 31744
      %v801 = vsel %vm799, %v798, 0
      %vm803 = vcmask 1041408
      %v805 = vsel %vm803, %v742, 0
      %807 = vmatprep.subr.bf16.mxu0 0
      %808 = vmatpush1.bf16.msra.mxu0 %v805
      %809 = vmatprep.subr.bf16.mxu0 0
      %810 = vmatpush1.bf16.msra.mxu0 0
      %811 = vmatprep.subr.bf16.mxu0 0
      %812 = vmatpush1.bf16.msra.mxu0 0
      %813 = vmatprep.subr.bf16.mxu0 0
      %814 = vmatpush1.bf16.msra.mxu0 0
      %815 = vmatprep.subr.bf16.mxu0 0
      %816 = vmatpush1.bf16.msra.mxu0 0
      %817 = vmatprep.subr.bf16.mxu0 0
      %818 = vmatpush1.bf16.msra.mxu0 0
      %819 = vmatprep.subr.bf16.mxu0 0
      %820 = vmatpush1.bf16.msra.mxu0 0
      %821 = vmatprep.subr.bf16.mxu0 0
      %822 = vmatpush1.bf16.msra.mxu0 0
      %823 = vmatprep.subr.bf16.mxu0 0
      %824 = vmatpush1.bf16.msra.mxu0 0
      %825 = vmatprep.subr.bf16.mxu0 0
      %826 = vmatpush1.bf16.msra.mxu0 0
      %827 = vmatprep.subr.bf16.mxu0 0
      %828 = vmatpush1.bf16.msra.mxu0 0
      %829 = vmatprep.subr.bf16.mxu0 0
      %830 = vmatpush1.bf16.msra.mxu0 0
      %831 = vmatprep.subr.bf16.mxu0 0
      %832 = vmatpush1.bf16.msra.mxu0 0
      %833 = vmatprep.subr.bf16.mxu0 0
      %834 = vmatpush1.bf16.msra.mxu0 0
      %835 = vmatprep.subr.bf16.mxu0 0
      %836 = vmatpush1.bf16.msra.mxu0 0
      %837 = vmatprep.subr.bf16.mxu0 0
      %838 = vmatpush1.bf16.msra.mxu0 0
      %839 = vmatprep.mubr.bf16.mxu0 0
      %840 = vmatmul.mubr.bf16.gmra.mrb[0].mxu0 %v801
      %v841 = vpop.f32.mrb[0].mxu0
      %v842 = vadd.f32 0.0, %v841
      %v843 = vpop.f32.mrb[0].mxu0
      %v844 = vpop.f32.mrb[0].mxu0
      %v845 = vadd.f32 0.0, %v844
      %v846 = vpop.f32.mrb[0].mxu0
      %847 = vdwg.mxu0
      %v848 = vrot.slane %v842, 7
      %v849 = vrot.slane %v845, 7
      %v850 = vlaneseq
      %v851 = vshrl.u32 %v850, 7
      %vm852 = vcmp.lt.s32.totalorder %v851, 1
      %v853 = vsel %vm852, %v848, %v849
      %v854 = vsel %vm852, %v849, %v848
      %v856 = vsel %vm803, %v743, 0
      %858 = vmatprep.subr.bf16.mxu0 0
      %859 = vmatpush1.bf16.msra.mxu0 %v856
      %860 = vmatprep.subr.bf16.mxu0 0
      %861 = vmatpush1.bf16.msra.mxu0 0
      %862 = vmatprep.subr.bf16.mxu0 0
      %863 = vmatpush1.bf16.msra.mxu0 0
      %864 = vmatprep.subr.bf16.mxu0 0
      %865 = vmatpush1.bf16.msra.mxu0 0
      %866 = vmatprep.subr.bf16.mxu0 0
      %867 = vmatpush1.bf16.msra.mxu0 0
      %868 = vmatprep.subr.bf16.mxu0 0
      %869 = vmatpush1.bf16.msra.mxu0 0
      %870 = vmatprep.subr.bf16.mxu0 0
      %871 = vmatpush1.bf16.msra.mxu0 0
      %872 = vmatprep.subr.bf16.mxu0 0
      %873 = vmatpush1.bf16.msra.mxu0 0
      %874 = vmatprep.subr.bf16.mxu0 0
      %875 = vmatpush1.bf16.msra.mxu0 0
      %876 = vmatprep.subr.bf16.mxu0 0
      %877 = vmatpush1.bf16.msra.mxu0 0
      %878 = vmatprep.subr.bf16.mxu0 0
      %879 = vmatpush1.bf16.msra.mxu0 0
      %880 = vmatprep.subr.bf16.mxu0 0
      %881 = vmatpush1.bf16.msra.mxu0 0
      %882 = vmatprep.subr.bf16.mxu0 0
      %883 = vmatpush1.bf16.msra.mxu0 0
      %884 = vmatprep.subr.bf16.mxu0 0
      %885 = vmatpush1.bf16.msra.mxu0 0
      %886 = vmatprep.subr.bf16.mxu0 0
      %887 = vmatpush1.bf16.msra.mxu0 0
      %888 = vmatprep.subr.bf16.mxu0 0
      %889 = vmatpush1.bf16.msra.mxu0 0
      %890 = vmatprep.mubr.bf16.mxu0 0
      %891 = vmatmul.mubr.bf16.gmra.mrb[0].mxu0 %v801
      %v892 = vpop.f32.mrb[0].mxu0
      %v893 = vadd.f32 0.0, %v892
      %v894 = vpop.f32.mrb[0].mxu0
      %v895 = vpop.f32.mrb[0].mxu0
      %v896 = vadd.f32 0.0, %v895
      %v897 = vpop.f32.mrb[0].mxu0
      %898 = vdwg.mxu0
      %v899 = vadd.f32 %v854, %v893
      %v900 = vadd.f32 %v853, %v896
      %v902 = vsel %vm803, %v744, 0
      %904 = vmatprep.subr.bf16.mxu0 0
      %905 = vmatpush1.bf16.msra.mxu0 %v902
      %906 = vmatprep.subr.bf16.mxu0 0
      %907 = vmatpush1.bf16.msra.mxu0 0
      %908 = vmatprep.subr.bf16.mxu0 0
      %909 = vmatpush1.bf16.msra.mxu0 0
      %910 = vmatprep.subr.bf16.mxu0 0
      %911 = vmatpush1.bf16.msra.mxu0 0
      %912 = vmatprep.subr.bf16.mxu0 0
      %913 = vmatpush1.bf16.msra.mxu0 0
      %914 = vmatprep.subr.bf16.mxu0 0
      %915 = vmatpush1.bf16.msra.mxu0 0
      %916 = vmatprep.subr.bf16.mxu0 0
      %917 = vmatpush1.bf16.msra.mxu0 0
      %918 = vmatprep.subr.bf16.mxu0 0
      %919 = vmatpush1.bf16.msra.mxu0 0
      %920 = vmatprep.subr.bf16.mxu0 0
      %921 = vmatpush1.bf16.msra.mxu0 0
      %922 = vmatprep.subr.bf16.mxu0 0
      %923 = vmatpush1.bf16.msra.mxu0 0
      %924 = vmatprep.subr.bf16.mxu0 0
      %925 = vmatpush1.bf16.msra.mxu0 0
      %926 = vmatprep.subr.bf16.mxu0 0
      %927 = vmatpush1.bf16.msra.mxu0 0
      %928 = vmatprep.subr.bf16.mxu0 0
      %929 = vmatpush1.bf16.msra.mxu0 0
      %930 = vmatprep.subr.bf16.mxu0 0
      %931 = vmatpush1.bf16.msra.mxu0 0
      %932 = vmatprep.subr.bf16.mxu0 0
      %933 = vmatpush1.bf16.msra.mxu0 0
      %934 = vmatprep.subr.bf16.mxu0 0
      %935 = vmatpush1.bf16.msra.mxu0 0
      %936 = vmatprep.mubr.bf16.mxu0 0
      %937 = vmatmul.mubr.bf16.gmra.mrb[0].mxu0 %v801
      %v938 = vpop.f32.mrb[0].mxu0
      %v939 = vadd.f32 0.0, %v938
      %v940 = vpop.f32.mrb[0].mxu0
      %v941 = vpop.f32.mrb[0].mxu0
      %v942 = vadd.f32 0.0, %v941
      %v943 = vpop.f32.mrb[0].mxu0
      %944 = vdwg.mxu0
      %v945 = vrot.slane %v939, 1
      %v946 = vrot.slane %v942, 1
      %vm947 = vcmp.lt.s32.totalorder %v851, 7
      %v948 = vsel %vm947, %v945, %v946
      %v949 = vsel %vm947, %v946, %v945
      %v950 = vadd.f32 %v899, %v948
      %v951 = vadd.f32 %v900, %v949
      %v953 = vlaneseq
      %v954 = vshrl.u32 %v953, 7
      %v955 = vsub.s32 0, %v954
      %v956 = vrot.slane %v745, %v955
      %v958 = vadd.f32 %v950, %v956
      %v959 = vadd.f32 %v951, %v956
      %v960 = vmax.f32 %v958, 0.0
      %v961 = vmax.f32 %v959, 0.0
      %v962 = vpack.c.bf16 %v961, %v960
      %v965 = vunpack.c.l.b16 %v746
      %v966 = vunpack.c.l.b16 %v747
      %v967 = vpack.c.b16 %v966, %v965
      %vm969 = vcmask 130048
      %v971 = vsel %vm969, %v962, 0
      %973 = vmatprep.subr.bf16.mxu0 0
      %974 = vmatpush1.bf16.msra.mxu0 %v967
      %975 = vmatprep.subr.bf16.mxu0 0
      %976 = vmatpush1.bf16.msra.mxu0 0
      %977 = vmatprep.subr.bf16.mxu0 0
      %978 = vmatpush1.bf16.msra.mxu0 0
      %979 = vmatprep.subr.bf16.mxu0 0
      %980 = vmatpush1.bf16.msra.mxu0 0
      %981 = vmatprep.subr.bf16.mxu0 0
      %982 = vmatpush1.bf16.msra.mxu0 0
      %983 = vmatprep.subr.bf16.mxu0 0
      %984 = vmatpush1.bf16.msra.mxu0 0
      %985 = vmatprep.subr.bf16.mxu0 0
      %986 = vmatpush1.bf16.msra.mxu0 0
      %987 = vmatprep.subr.bf16.mxu0 0
      %988 = vmatpush1.bf16.msra.mxu0 0
      %989 = vmatprep.subr.bf16.mxu0 0
      %990 = vmatpush1.bf16.msra.mxu0 0
      %991 = vmatprep.subr.bf16.mxu0 0
      %992 = vmatpush1.bf16.msra.mxu0 0
      %993 = vmatprep.subr.bf16.mxu0 0
      %994 = vmatpush1.bf16.msra.mxu0 0
      %995 = vmatprep.subr.bf16.mxu0 0
      %996 = vmatpush1.bf16.msra.mxu0 0
      %997 = vmatprep.subr.bf16.mxu0 0
      %998 = vmatpush1.bf16.msra.mxu0 0
      %999 = vmatprep.subr.bf16.mxu0 0
      %1000 = vmatpush1.bf16.msra.mxu0 0
      %1001 = vmatprep.subr.bf16.mxu0 0
      %1002 = vmatpush1.bf16.msra.mxu0 0
      %1003 = vmatprep.subr.bf16.mxu0 0
      %1004 = vmatpush1.bf16.msra.mxu0 0
      %1005 = vmatprep.mubr.bf16.mxu0 0
      %1006 = vmatmul.mubr.bf16.gmra.mrb[0].mxu0 %v971
      %v1007 = vpop.f32.mrb[0].mxu0
      %v1008 = vadd.f32 0.0, %v1007
      %v1009 = vpop.f32.mrb[0].mxu0
      %v1010 = vpop.f32.mrb[0].mxu0
      %v1011 = vadd.f32 0.0, %v1010
      %v1012 = vpop.f32.mrb[0].mxu0
      %1013 = vdwg.mxu0
      %v1014 = vrot.slane %v1008, 7
      %v1015 = vrot.slane %v1011, 7
      %v1016 = vsel %vm852, %v1014, %v1015
      %v1017 = vsel %vm852, %v1015, %v1014
      %v1020 = vunpack.c.l.b16 %v748
      %v1021 = vunpack.c.l.b16 %v749
      %v1022 = vpack.c.b16 %v1021, %v1020
      %1024 = vmatprep.subr.bf16.mxu0 0
      %1025 = vmatpush1.bf16.msra.mxu0 %v1022
      %1026 = vmatprep.subr.bf16.mxu0 0
      %1027 = vmatpush1.bf16.msra.mxu0 0
      %1028 = vmatprep.subr.bf16.mxu0 0
      %1029 = vmatpush1.bf16.msra.mxu0 0
      %1030 = vmatprep.subr.bf16.mxu0 0
      %1031 = vmatpush1.bf16.msra.mxu0 0
      %1032 = vmatprep.subr.bf16.mxu0 0
      %1033 = vmatpush1.bf16.msra.mxu0 0
      %1034 = vmatprep.subr.bf16.mxu0 0
      %1035 = vmatpush1.bf16.msra.mxu0 0
      %1036 = vmatprep.subr.bf16.mxu0 0
      %1037 = vmatpush1.bf16.msra.mxu0 0
      %1038 = vmatprep.subr.bf16.mxu0 0
      %1039 = vmatpush1.bf16.msra.mxu0 0
      %1040 = vmatprep.subr.bf16.mxu0 0
      %1041 = vmatpush1.bf16.msra.mxu0 0
      %1042 = vmatprep.subr.bf16.mxu0 0
      %1043 = vmatpush1.bf16.msra.mxu0 0
      %1044 = vmatprep.subr.bf16.mxu0 0
      %1045 = vmatpush1.bf16.msra.mxu0 0
      %1046 = vmatprep.subr.bf16.mxu0 0
      %1047 = vmatpush1.bf16.msra.mxu0 0
      %1048 = vmatprep.subr.bf16.mxu0 0
      %1049 = vmatpush1.bf16.msra.mxu0 0
      %1050 = vmatprep.subr.bf16.mxu0 0
      %1051 = vmatpush1.bf16.msra.mxu0 0
      %1052 = vmatprep.subr.bf16.mxu0 0
      %1053 = vmatpush1.bf16.msra.mxu0 0
      %1054 = vmatprep.subr.bf16.mxu0 0
      %1055 = vmatpush1.bf16.msra.mxu0 0
      %1056 = vmatprep.mubr.bf16.mxu0 0
      %1057 = vmatmul.mubr.bf16.gmra.mrb[0].mxu0 %v971
      %v1058 = vpop.f32.mrb[0].mxu0
      %v1059 = vadd.f32 0.0, %v1058
      %v1060 = vpop.f32.mrb[0].mxu0
      %v1061 = vpop.f32.mrb[0].mxu0
      %v1062 = vadd.f32 0.0, %v1061
      %v1063 = vpop.f32.mrb[0].mxu0
      %1064 = vdwg.mxu0
      %v1065 = vadd.f32 %v1017, %v1059
      %v1066 = vadd.f32 %v1016, %v1062
      %v1069 = vunpack.c.l.b16 %v750
      %v1070 = vunpack.c.l.b16 %v751
      %v1071 = vpack.c.b16 %v1070, %v1069
      %1073 = vmatprep.subr.bf16.mxu0 0
      %1074 = vmatpush1.bf16.msra.mxu0 %v1071
      %1075 = vmatprep.subr.bf16.mxu0 0
      %1076 = vmatpush1.bf16.msra.mxu0 0
      %1077 = vmatprep.subr.bf16.mxu0 0
      %1078 = vmatpush1.bf16.msra.mxu0 0
      %1079 = vmatprep.subr.bf16.mxu0 0
      %1080 = vmatpush1.bf16.msra.mxu0 0
      %1081 = vmatprep.subr.bf16.mxu0 0
      %1082 = vmatpush1.bf16.msra.mxu0 0
      %1083 = vmatprep.subr.bf16.mxu0 0
      %1084 = vmatpush1.bf16.msra.mxu0 0
      %1085 = vmatprep.subr.bf16.mxu0 0
      %1086 = vmatpush1.bf16.msra.mxu0 0
      %1087 = vmatprep.subr.bf16.mxu0 0
      %1088 = vmatpush1.bf16.msra.mxu0 0
      %1089 = vmatprep.subr.bf16.mxu0 0
      %1090 = vmatpush1.bf16.msra.mxu0 0
      %1091 = vmatprep.subr.bf16.mxu0 0
      %1092 = vmatpush1.bf16.msra.mxu0 0
      %1093 = vmatprep.subr.bf16.mxu0 0
      %1094 = vmatpush1.bf16.msra.mxu0 0
      %1095 = vmatprep.subr.bf16.mxu0 0
      %1096 = vmatpush1.bf16.msra.mxu0 0
      %1097 = vmatprep.subr.bf16.mxu0 0
      %1098 = vmatpush1.bf16.msra.mxu0 0
      %1099 = vmatprep.subr.bf16.mxu0 0
      %1100 = vmatpush1.bf16.msra.mxu0 0
      %1101 = vmatprep.subr.bf16.mxu0 0
      %1102 = vmatpush1.bf16.msra.mxu0 0
      %1103 = vmatprep.subr.bf16.mxu0 0
      %1104 = vmatpush1.bf16.msra.mxu0 0
      %1105 = vmatprep.mubr.bf16.mxu0 0
      %1106 = vmatmul.mubr.bf16.gmra.mrb[0].mxu0 %v971
      %v1107 = vpop.f32.mrb[0].mxu0
      %v1108 = vadd.f32 0.0, %v1107
      %v1109 = vpop.f32.mrb[0].mxu0
      %v1110 = vpop.f32.mrb[0].mxu0
      %v1111 = vadd.f32 0.0, %v1110
      %v1112 = vpop.f32.mrb[0].mxu0
      %1113 = vdwg.mxu0
      %v1114 = vrot.slane %v1108, 1
      %v1115 = vrot.slane %v1111, 1
      %v1116 = vsel %vm947, %v1114, %v1115
      %v1117 = vsel %vm947, %v1115, %v1114
      %v1118 = vadd.f32 %v1065, %v1116
      %v1119 = vadd.f32 %v1066, %v1117
      %v1121 = vlaneseq
      %v1122 = vshrl.u32 %v1121, 7
      %v1123 = vsub.s32 0, %v1122
      %v1124 = vrot.slane %v752, %v1123
      %v1126 = vadd.f32 %v1118, %v1124
      %v1127 = vadd.f32 %v1119, %v1124
      %v1128 = vmax.f32 %v1126, 0.0
      %v1129 = vmax.f32 %v1127, 0.0
      %v1131 = vlaneseq
      %v1132 = vshrl.u32 %v1131, 7
      %v1133 = vsub.s32 0, %v1132
      %v1134 = vrot.slane %v754, %v1133
      %v1137 = vsel %vm803, %v753, 0
      %1139 = vmatprep.subr.bf16.mxu0 0
      %1140 = vmatpush1.bf16.msra.mxu0 %v1137
      %1141 = vmatprep.subr.bf16.mxu0 0
      %1142 = vmatpush1.bf16.msra.mxu0 0
      %1143 = vmatprep.subr.bf16.mxu0 0
      %1144 = vmatpush1.bf16.msra.mxu0 0
      %1145 = vmatprep.subr.bf16.mxu0 0
      %1146 = vmatpush1.bf16.msra.mxu0 0
      %1147 = vmatprep.subr.bf16.mxu0 0
      %1148 = vmatpush1.bf16.msra.mxu0 0
      %1149 = vmatprep.subr.bf16.mxu0 0
      %1150 = vmatpush1.bf16.msra.mxu0 0
      %1151 = vmatprep.subr.bf16.mxu0 0
      %1152 = vmatpush1.bf16.msra.mxu0 0
      %1153 = vmatprep.subr.bf16.mxu0 0
      %1154 = vmatpush1.bf16.msra.mxu0 0
      %1155 = vmatprep.subr.bf16.mxu0 0
      %1156 = vmatpush1.bf16.msra.mxu0 0
      %1157 = vmatprep.subr.bf16.mxu0 0
      %1158 = vmatpush1.bf16.msra.mxu0 0
      %1159 = vmatprep.subr.bf16.mxu0 0
      %1160 = vmatpush1.bf16.msra.mxu0 0
      %1161 = vmatprep.subr.bf16.mxu0 0
      %1162 = vmatpush1.bf16.msra.mxu0 0
      %1163 = vmatprep.subr.bf16.mxu0 0
      %1164 = vmatpush1.bf16.msra.mxu0 0
      %1165 = vmatprep.subr.bf16.mxu0 0
      %1166 = vmatpush1.bf16.msra.mxu0 0
      %1167 = vmatprep.subr.bf16.mxu0 0
      %1168 = vmatpush1.bf16.msra.mxu0 0
      %1169 = vmatprep.subr.bf16.mxu0 0
      %1170 = vmatpush1.bf16.msra.mxu0 0
      %1171 = vmatprep.mubr.bf16.mxu0 0
      %1172 = vmatmul.mubr.bf16.gmra.mrb[0].mxu0 %v801
      %v1173 = vpop.f32.mrb[0].mxu0
      %v1174 = vadd.f32 %v1134, %v1173
      %v1175 = vpop.f32.mrb[0].mxu0
      %v1176 = vpop.f32.mrb[0].mxu0
      %v1177 = vadd.f32 %v1134, %v1176
      %v1178 = vpop.f32.mrb[0].mxu0
      %1179 = vdwg.mxu0
      %v1180 = vadd.f32 %v1128, %v1174
      %v1181 = vadd.f32 %v1129, %v1177
      %v1182 = vpack.c.bf16 %v1181, %v1180
      %vm1183 = vcmask 64512
      %v1185 = vsel %vm1183, %v1182, 0
      %vm1187 = vcmask 1043456
      %v1189 = vsel %vm1187, %v755, 0
      %1191 = vmatprep.subr.bf16.mxu0 0
      %1192 = vmatpush1.bf16.msra.mxu0 %v1189
      %1193 = vmatprep.subr.bf16.mxu0 0
      %1194 = vmatpush1.bf16.msra.mxu0 0
      %1195 = vmatprep.subr.bf16.mxu0 0
      %1196 = vmatpush1.bf16.msra.mxu0 0
      %1197 = vmatprep.subr.bf16.mxu0 0
      %1198 = vmatpush1.bf16.msra.mxu0 0
      %1199 = vmatprep.subr.bf16.mxu0 0
      %1200 = vmatpush1.bf16.msra.mxu0 0
      %1201 = vmatprep.subr.bf16.mxu0 0
      %1202 = vmatpush1.bf16.msra.mxu0 0
      %1203 = vmatprep.subr.bf16.mxu0 0
      %1204 = vmatpush1.bf16.msra.mxu0 0
      %1205 = vmatprep.subr.bf16.mxu0 0
      %1206 = vmatpush1.bf16.msra.mxu0 0
      %1207 = vmatprep.subr.bf16.mxu0 0
      %1208 = vmatpush1.bf16.msra.mxu0 0
      %1209 = vmatprep.subr.bf16.mxu0 0
      %1210 = vmatpush1.bf16.msra.mxu0 0
      %1211 = vmatprep.subr.bf16.mxu0 0
      %1212 = vmatpush1.bf16.msra.mxu0 0
      %1213 = vmatprep.subr.bf16.mxu0 0
      %1214 = vmatpush1.bf16.msra.mxu0 0
      %1215 = vmatprep.subr.bf16.mxu0 0
      %1216 = vmatpush1.bf16.msra.mxu0 0
      %1217 = vmatprep.subr.bf16.mxu0 0
      %1218 = vmatpush1.bf16.msra.mxu0 0
      %1219 = vmatprep.subr.bf16.mxu0 0
      %1220 = vmatpush1.bf16.msra.mxu0 0
      %1221 = vmatprep.subr.bf16.mxu0 0
      %1222 = vmatpush1.bf16.msra.mxu0 0
      %1223 = vmatprep.mubr.bf16.mxu0 0
      %1224 = vmatmul.mubr.bf16.gmra.mrb[0].mxu0 %v1185
      %v1225 = vpop.f32.mrb[0].mxu0
      %v1226 = vadd.f32 0.0, %v1225
      %v1227 = vpop.f32.mrb[0].mxu0
      %v1228 = vpop.f32.mrb[0].mxu0
      %v1229 = vadd.f32 0.0, %v1228
      %v1230 = vpop.f32.mrb[0].mxu0
      %1231 = vdwg.mxu0
      %v1232 = vrot.slane %v1226, 6
      %v1233 = vrot.slane %v1229, 6
      %vm1234 = vcmp.lt.s32.totalorder %v851, 2
      %v1235 = vsel %vm1234, %v1232, %v1233
      %v1236 = vsel %vm1234, %v1233, %v1232
      %v1238 = vsel %vm1187, %v756, 0
      %1240 = vmatprep.subr.bf16.mxu0 0
      %1241 = vmatpush1.bf16.msra.mxu0 %v1238
      %1242 = vmatprep.subr.bf16.mxu0 0
      %1243 = vmatpush1.bf16.msra.mxu0 0
      %1244 = vmatprep.subr.bf16.mxu0 0
      %1245 = vmatpush1.bf16.msra.mxu0 0
      %1246 = vmatprep.subr.bf16.mxu0 0
      %1247 = vmatpush1.bf16.msra.mxu0 0
      %1248 = vmatprep.subr.bf16.mxu0 0
      %1249 = vmatpush1.bf16.msra.mxu0 0
      %1250 = vmatprep.subr.bf16.mxu0 0
      %1251 = vmatpush1.bf16.msra.mxu0 0
      %1252 = vmatprep.subr.bf16.mxu0 0
      %1253 = vmatpush1.bf16.msra.mxu0 0
      %1254 = vmatprep.subr.bf16.mxu0 0
      %1255 = vmatpush1.bf16.msra.mxu0 0
      %1256 = vmatprep.subr.bf16.mxu0 0
      %1257 = vmatpush1.bf16.msra.mxu0 0
      %1258 = vmatprep.subr.bf16.mxu0 0
      %1259 = vmatpush1.bf16.msra.mxu0 0
      %1260 = vmatprep.subr.bf16.mxu0 0
      %1261 = vmatpush1.bf16.msra.mxu0 0
      %1262 = vmatprep.subr.bf16.mxu0 0
      %1263 = vmatpush1.bf16.msra.mxu0 0
      %1264 = vmatprep.subr.bf16.mxu0 0
      %1265 = vmatpush1.bf16.msra.mxu0 0
      %1266 = vmatprep.subr.bf16.mxu0 0
      %1267 = vmatpush1.bf16.msra.mxu0 0
      %1268 = vmatprep.subr.bf16.mxu0 0
      %1269 = vmatpush1.bf16.msra.mxu0 0
      %1270 = vmatprep.subr.bf16.mxu0 0
      %1271 = vmatpush1.bf16.msra.mxu0 0
      %1272 = vmatprep.mubr.bf16.mxu0 0
      %1273 = vmatmul.mubr.bf16.gmra.mrb[0].mxu0 %v1185
      %v1274 = vpop.f32.mrb[0].mxu0
      %v1275 = vadd.f32 0.0, %v1274
      %v1276 = vpop.f32.mrb[0].mxu0
      %v1277 = vpop.f32.mrb[0].mxu0
      %v1278 = vadd.f32 0.0, %v1277
      %v1279 = vpop.f32.mrb[0].mxu0
      %1280 = vdwg.mxu0
      %v1281 = vadd.f32 %v1236, %v1275
      %v1282 = vadd.f32 %v1235, %v1278
      %v1284 = vsel %vm1187, %v757, 0
      %1286 = vmatprep.subr.bf16.mxu0 0
      %1287 = vmatpush1.bf16.msra.mxu0 %v1284
      %1288 = vmatprep.subr.bf16.mxu0 0
      %1289 = vmatpush1.bf16.msra.mxu0 0
      %1290 = vmatprep.subr.bf16.mxu0 0
      %1291 = vmatpush1.bf16.msra.mxu0 0
      %1292 = vmatprep.subr.bf16.mxu0 0
      %1293 = vmatpush1.bf16.msra.mxu0 0
      %1294 = vmatprep.subr.bf16.mxu0 0
      %1295 = vmatpush1.bf16.msra.mxu0 0
      %1296 = vmatprep.subr.bf16.mxu0 0
      %1297 = vmatpush1.bf16.msra.mxu0 0
      %1298 = vmatprep.subr.bf16.mxu0 0
      %1299 = vmatpush1.bf16.msra.mxu0 0
      %1300 = vmatprep.subr.bf16.mxu0 0
      %1301 = vmatpush1.bf16.msra.mxu0 0
      %1302 = vmatprep.subr.bf16.mxu0 0
      %1303 = vmatpush1.bf16.msra.mxu0 0
      %1304 = vmatprep.subr.bf16.mxu0 0
      %1305 = vmatpush1.bf16.msra.mxu0 0
      %1306 = vmatprep.subr.bf16.mxu0 0
      %1307 = vmatpush1.bf16.msra.mxu0 0
      %1308 = vmatprep.subr.bf16.mxu0 0
      %1309 = vmatpush1.bf16.msra.mxu0 0
      %1310 = vmatprep.subr.bf16.mxu0 0
      %1311 = vmatpush1.bf16.msra.mxu0 0
      %1312 = vmatprep.subr.bf16.mxu0 0
      %1313 = vmatpush1.bf16.msra.mxu0 0
      %1314 = vmatprep.subr.bf16.mxu0 0
      %1315 = vmatpush1.bf16.msra.mxu0 0
      %1316 = vmatprep.subr.bf16.mxu0 0
      %1317 = vmatpush1.bf16.msra.mxu0 0
      %1318 = vmatprep.mubr.bf16.mxu0 0
      %1319 = vmatmul.mubr.bf16.gmra.mrb[0].mxu0 %v1185
      %v1320 = vpop.f32.mrb[0].mxu0
      %v1321 = vadd.f32 0.0, %v1320
      %v1322 = vpop.f32.mrb[0].mxu0
      %v1323 = vpop.f32.mrb[0].mxu0
      %v1324 = vadd.f32 0.0, %v1323
      %v1325 = vpop.f32.mrb[0].mxu0
      %1326 = vdwg.mxu0
      %v1327 = vrot.slane %v1321, 2
      %v1328 = vrot.slane %v1324, 2
      %vm1329 = vcmp.lt.s32.totalorder %v851, 6
      %v1330 = vsel %vm1329, %v1327, %v1328
      %v1331 = vsel %vm1329, %v1328, %v1327
      %v1332 = vadd.f32 %v1281, %v1330
      %v1333 = vadd.f32 %v1282, %v1331
      %v1335 = vlaneseq
      %v1336 = vshrl.u32 %v1335, 7
      %v1337 = vsub.s32 0, %v1336
      %v1338 = vrot.slane %v758, %v1337
      %v1340 = vadd.f32 %v1332, %v1338
      %v1341 = vadd.f32 %v1333, %v1338
      %v1342 = vmax.f32 %v1340, 0.0
      %v1343 = vmax.f32 %v1341, 0.0
      %v1344 = vpack.c.bf16 %v1343, %v1342
      %v1347 = vunpack.c.l.b16 %v759
      %v1348 = vunpack.c.l.b16 %v760
      %v1349 = vpack.c.b16 %v1348, %v1347
      %v1352 = vsel %vm969, %v1344, 0
      %1354 = vmatprep.subr.bf16.mxu0 0
      %1355 = vmatpush1.bf16.msra.mxu0 %v1349
      %1356 = vmatprep.subr.bf16.mxu0 0
      %1357 = vmatpush1.bf16.msra.mxu0 0
      %1358 = vmatprep.subr.bf16.mxu0 0
      %1359 = vmatpush1.bf16.msra.mxu0 0
      %1360 = vmatprep.subr.bf16.mxu0 0
      %1361 = vmatpush1.bf16.msra.mxu0 0
      %1362 = vmatprep.subr.bf16.mxu0 0
      %1363 = vmatpush1.bf16.msra.mxu0 0
      %1364 = vmatprep.subr.bf16.mxu0 0
      %1365 = vmatpush1.bf16.msra.mxu0 0
      %1366 = vmatprep.subr.bf16.mxu0 0
      %1367 = vmatpush1.bf16.msra.mxu0 0
      %1368 = vmatprep.subr.bf16.mxu0 0
      %1369 = vmatpush1.bf16.msra.mxu0 0
      %1370 = vmatprep.subr.bf16.mxu0 0
      %1371 = vmatpush1.bf16.msra.mxu0 0
      %1372 = vmatprep.subr.bf16.mxu0 0
      %1373 = vmatpush1.bf16.msra.mxu0 0
      %1374 = vmatprep.subr.bf16.mxu0 0
      %1375 = vmatpush1.bf16.msra.mxu0 0
      %1376 = vmatprep.subr.bf16.mxu0 0
      %1377 = vmatpush1.bf16.msra.mxu0 0
      %1378 = vmatprep.subr.bf16.mxu0 0
      %1379 = vmatpush1.bf16.msra.mxu0 0
      %1380 = vmatprep.subr.bf16.mxu0 0
      %1381 = vmatpush1.bf16.msra.mxu0 0
      %1382 = vmatprep.subr.bf16.mxu0 0
      %1383 = vmatpush1.bf16.msra.mxu0 0
      %1384 = vmatprep.subr.bf16.mxu0 0
      %1385 = vmatpush1.bf16.msra.mxu0 0
      %1386 = vmatprep.mubr.bf16.mxu0 0
      %1387 = vmatmul.mubr.bf16.gmra.mrb[0].mxu0 %v1352
      %v1388 = vpop.f32.mrb[0].mxu0
      %v1389 = vadd.f32 0.0, %v1388
      %v1390 = vpop.f32.mrb[0].mxu0
      %v1391 = vpop.f32.mrb[0].mxu0
      %v1392 = vadd.f32 0.0, %v1391
      %v1393 = vpop.f32.mrb[0].mxu0
      %1394 = vdwg.mxu0
      %v1395 = vrot.slane %v1389, 6
      %v1396 = vrot.slane %v1392, 6
      %v1397 = vsel %vm1234, %v1395, %v1396
      %v1398 = vsel %vm1234, %v1396, %v1395
      %v1401 = vunpack.c.l.b16 %v761
      %v1402 = vunpack.c.l.b16 %v762
      %v1403 = vpack.c.b16 %v1402, %v1401
      %1405 = vmatprep.subr.bf16.mxu0 0
      %1406 = vmatpush1.bf16.msra.mxu0 %v1403
      %1407 = vmatprep.subr.bf16.mxu0 0
      %1408 = vmatpush1.bf16.msra.mxu0 0
      %1409 = vmatprep.subr.bf16.mxu0 0
      %1410 = vmatpush1.bf16.msra.mxu0 0
      %1411 = vmatprep.subr.bf16.mxu0 0
      %1412 = vmatpush1.bf16.msra.mxu0 0
      %1413 = vmatprep.subr.bf16.mxu0 0
      %1414 = vmatpush1.bf16.msra.mxu0 0
      %1415 = vmatprep.subr.bf16.mxu0 0
      %1416 = vmatpush1.bf16.msra.mxu0 0
      %1417 = vmatprep.subr.bf16.mxu0 0
      %1418 = vmatpush1.bf16.msra.mxu0 0
      %1419 = vmatprep.subr.bf16.mxu0 0
      %1420 = vmatpush1.bf16.msra.mxu0 0
      %1421 = vmatprep.subr.bf16.mxu0 0
      %1422 = vmatpush1.bf16.msra.mxu0 0
      %1423 = vmatprep.subr.bf16.mxu0 0
      %1424 = vmatpush1.bf16.msra.mxu0 0
      %1425 = vmatprep.subr.bf16.mxu0 0
      %1426 = vmatpush1.bf16.msra.mxu0 0
      %1427 = vmatprep.subr.bf16.mxu0 0
      %1428 = vmatpush1.bf16.msra.mxu0 0
      %1429 = vmatprep.subr.bf16.mxu0 0
      %1430 = vmatpush1.bf16.msra.mxu0 0
      %1431 = vmatprep.subr.bf16.mxu0 0
      %1432 = vmatpush1.bf16.msra.mxu0 0
      %1433 = vmatprep.subr.bf16.mxu0 0
      %1434 = vmatpush1.bf16.msra.mxu0 0
      %1435 = vmatprep.subr.bf16.mxu0 0
      %1436 = vmatpush1.bf16.msra.mxu0 0
      %1437 = vmatprep.mubr.bf16.mxu0 0
      %1438 = vmatmul.mubr.bf16.gmra.mrb[0].mxu0 %v1352
      %v1439 = vpop.f32.mrb[0].mxu0
      %v1440 = vadd.f32 0.0, %v1439
      %v1441 = vpop.f32.mrb[0].mxu0
      %v1442 = vpop.f32.mrb[0].mxu0
      %v1443 = vadd.f32 0.0, %v1442
      %v1444 = vpop.f32.mrb[0].mxu0
      %1445 = vdwg.mxu0
      %v1446 = vadd.f32 %v1398, %v1440
      %v1447 = vadd.f32 %v1397, %v1443
      %v1450 = vunpack.c.l.b16 %v763
      %v1451 = vunpack.c.l.b16 %v764
      %v1452 = vpack.c.b16 %v1451, %v1450
      %1454 = vmatprep.subr.bf16.mxu0 0
      %1455 = vmatpush1.bf16.msra.mxu0 %v1452
      %1456 = vmatprep.subr.bf16.mxu0 0
      %1457 = vmatpush1.bf16.msra.mxu0 0
      %1458 = vmatprep.subr.bf16.mxu0 0
      %1459 = vmatpush1.bf16.msra.mxu0 0
      %1460 = vmatprep.subr.bf16.mxu0 0
      %1461 = vmatpush1.bf16.msra.mxu0 0
      %1462 = vmatprep.subr.bf16.mxu0 0
      %1463 = vmatpush1.bf16.msra.mxu0 0
      %1464 = vmatprep.subr.bf16.mxu0 0
      %1465 = vmatpush1.bf16.msra.mxu0 0
      %1466 = vmatprep.subr.bf16.mxu0 0
      %1467 = vmatpush1.bf16.msra.mxu0 0
      %1468 = vmatprep.subr.bf16.mxu0 0
      %1469 = vmatpush1.bf16.msra.mxu0 0
      %1470 = vmatprep.subr.bf16.mxu0 0
      %1471 = vmatpush1.bf16.msra.mxu0 0
      %1472 = vmatprep.subr.bf16.mxu0 0
      %1473 = vmatpush1.bf16.msra.mxu0 0
      %1474 = vmatprep.subr.bf16.mxu0 0
      %1475 = vmatpush1.bf16.msra.mxu0 0
      %1476 = vmatprep.subr.bf16.mxu0 0
      %1477 = vmatpush1.bf16.msra.mxu0 0
      %1478 = vmatprep.subr.bf16.mxu0 0
      %1479 = vmatpush1.bf16.msra.mxu0 0
      %1480 = vmatprep.subr.bf16.mxu0 0
      %1481 = vmatpush1.bf16.msra.mxu0 0
      %1482 = vmatprep.subr.bf16.mxu0 0
      %1483 = vmatpush1.bf16.msra.mxu0 0
      %1484 = vmatprep.subr.bf16.mxu0 0
      %1485 = vmatpush1.bf16.msra.mxu0 0
      %1486 = vmatprep.mubr.bf16.mxu0 0
      %1487 = vmatmul.mubr.bf16.gmra.mrb[0].mxu0 %v1352
      %v1488 = vpop.f32.mrb[0].mxu0
      %v1489 = vadd.f32 0.0, %v1488
      %v1490 = vpop.f32.mrb[0].mxu0
      %v1491 = vpop.f32.mrb[0].mxu0
      %v1492 = vadd.f32 0.0, %v1491
      %v1493 = vpop.f32.mrb[0].mxu0
      %1494 = vdwg.mxu0
      %v1495 = vrot.slane %v1489, 2
      %v1496 = vrot.slane %v1492, 2
      %v1497 = vsel %vm1329, %v1495, %v1496
      %v1498 = vsel %vm1329, %v1496, %v1495
      %v1499 = vadd.f32 %v1446, %v1497
      %v1500 = vadd.f32 %v1447, %v1498
      %v1502 = vlaneseq
      %v1503 = vshrl.u32 %v1502, 7
      %v1504 = vsub.s32 0, %v1503
      %v1505 = vrot.slane %v765, %v1504
      %v1507 = vadd.f32 %v1499, %v1505
      %v1508 = vadd.f32 %v1500, %v1505
      %v1509 = vmax.f32 %v1507, 0.0
      %v1510 = vmax.f32 %v1508, 0.0
      %v1511 = vunpack.c.l.bf16 %v1182
      %v1512 = vunpack.c.h.bf16 %v1182
      %v1513 = vadd.f32 %v1509, %v1511
      %v1514 = vadd.f32 %v1510, %v1512
      %v1517 = vunpack.c.l.b16 %v792
      %v1518 = vunpack.c.l.b16 %v793
      %v1519 = vpack.c.b16 %v1518, %v1517
      %v1521 = vsel %vm799, %v1519, 0
      %1523 = vmatprep.subr.bf16.mxu0 0
      %1524 = vmatpush1.bf16.msra.mxu0 %v805
      %1525 = vmatprep.subr.bf16.mxu0 0
      %1526 = vmatpush1.bf16.msra.mxu0 0
      %1527 = vmatprep.subr.bf16.mxu0 0
      %1528 = vmatpush1.bf16.msra.mxu0 0
      %1529 = vmatprep.subr.bf16.mxu0 0
      %1530 = vmatpush1.bf16.msra.mxu0 0
      %1531 = vmatprep.subr.bf16.mxu0 0
      %1532 = vmatpush1.bf16.msra.mxu0 0
      %1533 = vmatprep.subr.bf16.mxu0 0
      %1534 = vmatpush1.bf16.msra.mxu0 0
      %1535 = vmatprep.subr.bf16.mxu0 0
      %1536 = vmatpush1.bf16.msra.mxu0 0
      %1537 = vmatprep.subr.bf16.mxu0 0
      %1538 = vmatpush1.bf16.msra.mxu0 0
      %1539 = vmatprep.subr.bf16.mxu0 0
      %1540 = vmatpush1.bf16.msra.mxu0 0
      %1541 = vmatprep.subr.bf16.mxu0 0
      %1542 = vmatpush1.bf16.msra.mxu0 0
      %1543 = vmatprep.subr.bf16.mxu0 0
      %1544 = vmatpush1.bf16.msra.mxu0 0
      %1545 = vmatprep.subr.bf16.mxu0 0
      %1546 = vmatpush1.bf16.msra.mxu0 0
      %1547 = vmatprep.subr.bf16.mxu0 0
      %1548 = vmatpush1.bf16.msra.mxu0 0
      %1549 = vmatprep.subr.bf16.mxu0 0
      %1550 = vmatpush1.bf16.msra.mxu0 0
      %1551 = vmatprep.subr.bf16.mxu0 0
      %1552 = vmatpush1.bf16.msra.mxu0 0
      %1553 = vmatprep.subr.bf16.mxu0 0
      %1554 = vmatpush1.bf16.msra.mxu0 0
      %1555 = vmatprep.mubr.bf16.mxu0 0
      %1556 = vmatmul.mubr.bf16.gmra.mrb[0].mxu0 %v1521
      %v1557 = vpop.f32.mrb[0].mxu0
      %v1558 = vadd.f32 0.0, %v1557
      %v1559 = vpop.f32.mrb[0].mxu0
      %v1560 = vpop.f32.mrb[0].mxu0
      %v1561 = vadd.f32 0.0, %v1560
      %v1562 = vpop.f32.mrb[0].mxu0
      %1563 = vdwg.mxu0
      %v1564 = vrot.slane %v1558, 7
      %v1565 = vrot.slane %v1561, 7
      %v1566 = vsel %vm852, %v1564, %v1565
      %v1567 = vsel %vm852, %v1565, %v1564
      %1568 = vmatprep.subr.bf16.mxu0 0
      %1569 = vmatpush1.bf16.msra.mxu0 %v856
      %1570 = vmatprep.subr.bf16.mxu0 0
      %1571 = vmatpush1.bf16.msra.mxu0 0
      %1572 = vmatprep.subr.bf16.mxu0 0
      %1573 = vmatpush1.bf16.msra.mxu0 0
      %1574 = vmatprep.subr.bf16.mxu0 0
      %1575 = vmatpush1.bf16.msra.mxu0 0
      %1576 = vmatprep.subr.bf16.mxu0 0
      %1577 = vmatpush1.bf16.msra.mxu0 0
      %1578 = vmatprep.subr.bf16.mxu0 0
      %1579 = vmatpush1.bf16.msra.mxu0 0
      %1580 = vmatprep.subr.bf16.mxu0 0
      %1581 = vmatpush1.bf16.msra.mxu0 0
      %1582 = vmatprep.subr.bf16.mxu0 0
      %1583 = vmatpush1.bf16.msra.mxu0 0
      %1584 = vmatprep.subr.bf16.mxu0 0
      %1585 = vmatpush1.bf16.msra.mxu0 0
      %1586 = vmatprep.subr.bf16.mxu0 0
      %1587 = vmatpush1.bf16.msra.mxu0 0
      %1588 = vmatprep.subr.bf16.mxu0 0
      %1589 = vmatpush1.bf16.msra.mxu0 0
      %1590 = vmatprep.subr.bf16.mxu0 0
      %1591 = vmatpush1.bf16.msra.mxu0 0
      %1592 = vmatprep.subr.bf16.mxu0 0
      %1593 = vmatpush1.bf16.msra.mxu0 0
      %1594 = vmatprep.subr.bf16.mxu0 0
      %1595 = vmatpush1.bf16.msra.mxu0 0
      %1596 = vmatprep.subr.bf16.mxu0 0
      %1597 = vmatpush1.bf16.msra.mxu0 0
      %1598 = vmatprep.subr.bf16.mxu0 0
      %1599 = vmatpush1.bf16.msra.mxu0 0
      %1600 = vmatprep.mubr.bf16.mxu0 0
      %1601 = vmatmul.mubr.bf16.gmra.mrb[0].mxu0 %v1521
      %v1602 = vpop.f32.mrb[0].mxu0
      %v1603 = vadd.f32 0.0, %v1602
      %v1604 = vpop.f32.mrb[0].mxu0
      %v1605 = vpop.f32.mrb[0].mxu0
      %v1606 = vadd.f32 0.0, %v1605
      %v1607 = vpop.f32.mrb[0].mxu0
      %1608 = vdwg.mxu0
      %v1609 = vadd.f32 %v1567, %v1603
      %v1610 = vadd.f32 %v1566, %v1606
      %1611 = vmatprep.subr.bf16.mxu0 0
      %1612 = vmatpush1.bf16.msra.mxu0 %v902
      %1613 = vmatprep.subr.bf16.mxu0 0
      %1614 = vmatpush1.bf16.msra.mxu0 0
      %1615 = vmatprep.subr.bf16.mxu0 0
      %1616 = vmatpush1.bf16.msra.mxu0 0
      %1617 = vmatprep.subr.bf16.mxu0 0
      %1618 = vmatpush1.bf16.msra.mxu0 0
      %1619 = vmatprep.subr.bf16.mxu0 0
      %1620 = vmatpush1.bf16.msra.mxu0 0
      %1621 = vmatprep.subr.bf16.mxu0 0
      %1622 = vmatpush1.bf16.msra.mxu0 0
      %1623 = vmatprep.subr.bf16.mxu0 0
      %1624 = vmatpush1.bf16.msra.mxu0 0
      %1625 = vmatprep.subr.bf16.mxu0 0
      %1626 = vmatpush1.bf16.msra.mxu0 0
      %1627 = vmatprep.subr.bf16.mxu0 0
      %1628 = vmatpush1.bf16.msra.mxu0 0
      %1629 = vmatprep.subr.bf16.mxu0 0
      %1630 = vmatpush1.bf16.msra.mxu0 0
      %1631 = vmatprep.subr.bf16.mxu0 0
      %1632 = vmatpush1.bf16.msra.mxu0 0
      %1633 = vmatprep.subr.bf16.mxu0 0
      %1634 = vmatpush1.bf16.msra.mxu0 0
      %1635 = vmatprep.subr.bf16.mxu0 0
      %1636 = vmatpush1.bf16.msra.mxu0 0
      %1637 = vmatprep.subr.bf16.mxu0 0
      %1638 = vmatpush1.bf16.msra.mxu0 0
      %1639 = vmatprep.subr.bf16.mxu0 0
      %1640 = vmatpush1.bf16.msra.mxu0 0
      %1641 = vmatprep.subr.bf16.mxu0 0
      %1642 = vmatpush1.bf16.msra.mxu0 0
      %1643 = vmatprep.mubr.bf16.mxu0 0
      %1644 = vmatmul.mubr.bf16.gmra.mrb[0].mxu0 %v1521
      %v1645 = vpop.f32.mrb[0].mxu0
      %v1646 = vadd.f32 0.0, %v1645
      %v1647 = vpop.f32.mrb[0].mxu0
      %v1648 = vpop.f32.mrb[0].mxu0
      %v1649 = vadd.f32 0.0, %v1648
      %v1650 = vpop.f32.mrb[0].mxu0
      %1651 = vdwg.mxu0
      %v1652 = vrot.slane %v1646, 1
      %v1653 = vrot.slane %v1649, 1
      %v1654 = vsel %vm947, %v1652, %v1653
      %v1655 = vsel %vm947, %v1653, %v1652
      %v1656 = vadd.f32 %v1609, %v1654
      %v1657 = vadd.f32 %v1610, %v1655
      %v1658 = vadd.f32 %v1656, %v956
      %v1659 = vadd.f32 %v1657, %v956
      %v1660 = vmax.f32 %v1658, 0.0
      %v1661 = vmax.f32 %v1659, 0.0
      %v1662 = vpack.c.bf16 %v1661, %v1660
      %v1664 = vsel %vm969, %v1662, 0
      %1666 = vmatprep.subr.bf16.mxu0 0
      %1667 = vmatpush1.bf16.msra.mxu0 %v967
      %1668 = vmatprep.subr.bf16.mxu0 0
      %1669 = vmatpush1.bf16.msra.mxu0 0
      %1670 = vmatprep.subr.bf16.mxu0 0
      %1671 = vmatpush1.bf16.msra.mxu0 0
      %1672 = vmatprep.subr.bf16.mxu0 0
      %1673 = vmatpush1.bf16.msra.mxu0 0
      %1674 = vmatprep.subr.bf16.mxu0 0
      %1675 = vmatpush1.bf16.msra.mxu0 0
      %1676 = vmatprep.subr.bf16.mxu0 0
      %1677 = vmatpush1.bf16.msra.mxu0 0
      %1678 = vmatprep.subr.bf16.mxu0 0
      %1679 = vmatpush1.bf16.msra.mxu0 0
      %1680 = vmatprep.subr.bf16.mxu0 0
      %1681 = vmatpush1.bf16.msra.mxu0 0
      %1682 = vmatprep.subr.bf16.mxu0 0
      %1683 = vmatpush1.bf16.msra.mxu0 0
      %1684 = vmatprep.subr.bf16.mxu0 0
      %1685 = vmatpush1.bf16.msra.mxu0 0
      %1686 = vmatprep.subr.bf16.mxu0 0
      %1687 = vmatpush1.bf16.msra.mxu0 0
      %1688 = vmatprep.subr.bf16.mxu0 0
      %1689 = vmatpush1.bf16.msra.mxu0 0
      %1690 = vmatprep.subr.bf16.mxu0 0
      %1691 = vmatpush1.bf16.msra.mxu0 0
      %1692 = vmatprep.subr.bf16.mxu0 0
      %1693 = vmatpush1.bf16.msra.mxu0 0
      %1694 = vmatprep.subr.bf16.mxu0 0
      %1695 = vmatpush1.bf16.msra.mxu0 0
      %1696 = vmatprep.subr.bf16.mxu0 0
      %1697 = vmatpush1.bf16.msra.mxu0 0
      %1698 = vmatprep.mubr.bf16.mxu0 0
      %1699 = vmatmul.mubr.bf16.gmra.mrb[0].mxu0 %v1664
      %v1700 = vpop.f32.mrb[0].mxu0
      %v1701 = vadd.f32 0.0, %v1700
      %v1702 = vpop.f32.mrb[0].mxu0
      %v1703 = vpop.f32.mrb[0].mxu0
      %v1704 = vadd.f32 0.0, %v1703
      %v1705 = vpop.f32.mrb[0].mxu0
      %1706 = vdwg.mxu0
      %v1707 = vrot.slane %v1701, 7
      %v1708 = vrot.slane %v1704, 7
      %v1709 = vsel %vm852, %v1707, %v1708
      %v1710 = vsel %vm852, %v1708, %v1707
      %1711 = vmatprep.subr.bf16.mxu0 0
      %1712 = vmatpush1.bf16.msra.mxu0 %v1022
      %1713 = vmatprep.subr.bf16.mxu0 0
      %1714 = vmatpush1.bf16.msra.mxu0 0
      %1715 = vmatprep.subr.bf16.mxu0 0
      %1716 = vmatpush1.bf16.msra.mxu0 0
      %1717 = vmatprep.subr.bf16.mxu0 0
      %1718 = vmatpush1.bf16.msra.mxu0 0
      %1719 = vmatprep.subr.bf16.mxu0 0
      %1720 = vmatpush1.bf16.msra.mxu0 0
      %1721 = vmatprep.subr.bf16.mxu0 0
      %1722 = vmatpush1.bf16.msra.mxu0 0
      %1723 = vmatprep.subr.bf16.mxu0 0
      %1724 = vmatpush1.bf16.msra.mxu0 0
      %1725 = vmatprep.subr.bf16.mxu0 0
      %1726 = vmatpush1.bf16.msra.mxu0 0
      %1727 = vmatprep.subr.bf16.mxu0 0
      %1728 = vmatpush1.bf16.msra.mxu0 0
      %1729 = vmatprep.subr.bf16.mxu0 0
      %1730 = vmatpush1.bf16.msra.mxu0 0
      %1731 = vmatprep.subr.bf16.mxu0 0
      %1732 = vmatpush1.bf16.msra.mxu0 0
      %1733 = vmatprep.subr.bf16.mxu0 0
      %1734 = vmatpush1.bf16.msra.mxu0 0
      %1735 = vmatprep.subr.bf16.mxu0 0
      %1736 = vmatpush1.bf16.msra.mxu0 0
      %1737 = vmatprep.subr.bf16.mxu0 0
      %1738 = vmatpush1.bf16.msra.mxu0 0
      %1739 = vmatprep.subr.bf16.mxu0 0
      %1740 = vmatpush1.bf16.msra.mxu0 0
      %1741 = vmatprep.subr.bf16.mxu0 0
      %1742 = vmatpush1.bf16.msra.mxu0 0
      %1743 = vmatprep.mubr.bf16.mxu0 0
      %1744 = vmatmul.mubr.bf16.gmra.mrb[0].mxu0 %v1664
      %v1745 = vpop.f32.mrb[0].mxu0
      %v1746 = vadd.f32 0.0, %v1745
      %v1747 = vpop.f32.mrb[0].mxu0
      %v1748 = vpop.f32.mrb[0].mxu0
      %v1749 = vadd.f32 0.0, %v1748
      %v1750 = vpop.f32.mrb[0].mxu0
      %1751 = vdwg.mxu0
      %v1752 = vadd.f32 %v1710, %v1746
      %v1753 = vadd.f32 %v1709, %v1749
      %1754 = vmatprep.subr.bf16.mxu0 0
      %1755 = vmatpush1.bf16.msra.mxu0 %v1071
      %1756 = vmatprep.subr.bf16.mxu0 0
      %1757 = vmatpush1.bf16.msra.mxu0 0
      %1758 = vmatprep.subr.bf16.mxu0 0
      %1759 = vmatpush1.bf16.msra.mxu0 0
      %1760 = vmatprep.subr.bf16.mxu0 0
      %1761 = vmatpush1.bf16.msra.mxu0 0
      %1762 = vmatprep.subr.bf16.mxu0 0
      %1763 = vmatpush1.bf16.msra.mxu0 0
      %1764 = vmatprep.subr.bf16.mxu0 0
      %1765 = vmatpush1.bf16.msra.mxu0 0
      %1766 = vmatprep.subr.bf16.mxu0 0
      %1767 = vmatpush1.bf16.msra.mxu0 0
      %1768 = vmatprep.subr.bf16.mxu0 0
      %1769 = vmatpush1.bf16.msra.mxu0 0
      %1770 = vmatprep.subr.bf16.mxu0 0
      %1771 = vmatpush1.bf16.msra.mxu0 0
      %1772 = vmatprep.subr.bf16.mxu0 0
      %1773 = vmatpush1.bf16.msra.mxu0 0
      %1774 = vmatprep.subr.bf16.mxu0 0
      %1775 = vmatpush1.bf16.msra.mxu0 0
      %1776 = vmatprep.subr.bf16.mxu0 0
      %1777 = vmatpush1.bf16.msra.mxu0 0
      %1778 = vmatprep.subr.bf16.mxu0 0
      %1779 = vmatpush1.bf16.msra.mxu0 0
      %1780 = vmatprep.subr.bf16.mxu0 0
      %1781 = vmatpush1.bf16.msra.mxu0 0
      %1782 = vmatprep.subr.bf16.mxu0 0
      %1783 = vmatpush1.bf16.msra.mxu0 0
      %1784 = vmatprep.subr.bf16.mxu0 0
      %1785 = vmatpush1.bf16.msra.mxu0 0
      %1786 = vmatprep.mubr.bf16.mxu0 0
      %1787 = vmatmul.mubr.bf16.gmra.mrb[0].mxu0 %v1664
      %v1788 = vpop.f32.mrb[0].mxu0
      %v1789 = vadd.f32 0.0, %v1788
      %v1790 = vpop.f32.mrb[0].mxu0
      %v1791 = vpop.f32.mrb[0].mxu0
      %v1792 = vadd.f32 0.0, %v1791
      %v1793 = vpop.f32.mrb[0].mxu0
      %1794 = vdwg.mxu0
      %v1795 = vrot.slane %v1789, 1
      %v1796 = vrot.slane %v1792, 1
      %v1797 = vsel %vm947, %v1795, %v1796
      %v1798 = vsel %vm947, %v1796, %v1795
      %v1799 = vadd.f32 %v1752, %v1797
      %v1800 = vadd.f32 %v1753, %v1798
      %v1801 = vadd.f32 %v1799, %v1124
      %v1802 = vadd.f32 %v1800, %v1124
      %v1803 = vmax.f32 %v1801, 0.0
      %v1804 = vmax.f32 %v1802, 0.0
      %1805 = vmatprep.subr.bf16.mxu0 0
      %1806 = vmatpush1.bf16.msra.mxu0 %v1137
      %1807 = vmatprep.subr.bf16.mxu0 0
      %1808 = vmatpush1.bf16.msra.mxu0 0
      %1809 = vmatprep.subr.bf16.mxu0 0
      %1810 = vmatpush1.bf16.msra.mxu0 0
      %1811 = vmatprep.subr.bf16.mxu0 0
      %1812 = vmatpush1.bf16.msra.mxu0 0
      %1813 = vmatprep.subr.bf16.mxu0 0
      %1814 = vmatpush1.bf16.msra.mxu0 0
      %1815 = vmatprep.subr.bf16.mxu0 0
      %1816 = vmatpush1.bf16.msra.mxu0 0
      %1817 = vmatprep.subr.bf16.mxu0 0
      %1818 = vmatpush1.bf16.msra.mxu0 0
      %1819 = vmatprep.subr.bf16.mxu0 0
      %1820 = vmatpush1.bf16.msra.mxu0 0
      %1821 = vmatprep.subr.bf16.mxu0 0
      %1822 = vmatpush1.bf16.msra.mxu0 0
      %1823 = vmatprep.subr.bf16.mxu0 0
      %1824 = vmatpush1.bf16.msra.mxu0 0
      %1825 = vmatprep.subr.bf16.mxu0 0
      %1826 = vmatpush1.bf16.msra.mxu0 0
      %1827 = vmatprep.subr.bf16.mxu0 0
      %1828 = vmatpush1.bf16.msra.mxu0 0
      %1829 = vmatprep.subr.bf16.mxu0 0
      %1830 = vmatpush1.bf16.msra.mxu0 0
      %1831 = vmatprep.subr.bf16.mxu0 0
      %1832 = vmatpush1.bf16.msra.mxu0 0
      %1833 = vmatprep.subr.bf16.mxu0 0
      %1834 = vmatpush1.bf16.msra.mxu0 0
      %1835 = vmatprep.subr.bf16.mxu0 0
      %1836 = vmatpush1.bf16.msra.mxu0 0
      %1837 = vmatprep.mubr.bf16.mxu0 0
      %1838 = vmatmul.mubr.bf16.gmra.mrb[0].mxu0 %v1521
      %v1839 = vpop.f32.mrb[0].mxu0
      %v1840 = vadd.f32 %v1134, %v1839
      %v1841 = vpop.f32.mrb[0].mxu0
      %v1842 = vpop.f32.mrb[0].mxu0
      %v1843 = vadd.f32 %v1134, %v1842
      %v1844 = vpop.f32.mrb[0].mxu0
      %1845 = vdwg.mxu0
      %v1846 = vadd.f32 %v1803, %v1840
      %v1847 = vadd.f32 %v1804, %v1843
      %v1848 = vpack.c.bf16 %v1847, %v1846
      %v1850 = vsel %vm1183, %v1848, 0
      %1852 = vmatprep.subr.bf16.mxu0 0
      %1853 = vmatpush1.bf16.msra.mxu0 %v1189
      %1854 = vmatprep.subr.bf16.mxu0 0
      %1855 = vmatpush1.bf16.msra.mxu0 0
      %1856 = vmatprep.subr.bf16.mxu0 0
      %1857 = vmatpush1.bf16.msra.mxu0 0
      %1858 = vmatprep.subr.bf16.mxu0 0
      %1859 = vmatpush1.bf16.msra.mxu0 0
      %1860 = vmatprep.subr.bf16.mxu0 0
      %1861 = vmatpush1.bf16.msra.mxu0 0
      %1862 = vmatprep.subr.bf16.mxu0 0
      %1863 = vmatpush1.bf16.msra.mxu0 0
      %1864 = vmatprep.subr.bf16.mxu0 0
      %1865 = vmatpush1.bf16.msra.mxu0 0
      %1866 = vmatprep.subr.bf16.mxu0 0
      %1867 = vmatpush1.bf16.msra.mxu0 0
      %1868 = vmatprep.subr.bf16.mxu0 0
      %1869 = vmatpush1.bf16.msra.mxu0 0
      %1870 = vmatprep.subr.bf16.mxu0 0
      %1871 = vmatpush1.bf16.msra.mxu0 0
      %1872 = vmatprep.subr.bf16.mxu0 0
      %1873 = vmatpush1.bf16.msra.mxu0 0
      %1874 = vmatprep.subr.bf16.mxu0 0
      %1875 = vmatpush1.bf16.msra.mxu0 0
      %1876 = vmatprep.subr.bf16.mxu0 0
      %1877 = vmatpush1.bf16.msra.mxu0 0
      %1878 = vmatprep.subr.bf16.mxu0 0
      %1879 = vmatpush1.bf16.msra.mxu0 0
      %1880 = vmatprep.subr.bf16.mxu0 0
      %1881 = vmatpush1.bf16.msra.mxu0 0
      %1882 = vmatprep.subr.bf16.mxu0 0
      %1883 = vmatpush1.bf16.msra.mxu0 0
      %1884 = vmatprep.mubr.bf16.mxu0 0
      %1885 = vmatmul.mubr.bf16.gmra.mrb[0].mxu0 %v1850
      %v1886 = vpop.f32.mrb[0].mxu0
      %v1887 = vadd.f32 0.0, %v1886
      %v1888 = vpop.f32.mrb[0].mxu0
      %v1889 = vpop.f32.mrb[0].mxu0
      %v1890 = vadd.f32 0.0, %v1889
      %v1891 = vpop.f32.mrb[0].mxu0
      %1892 = vdwg.mxu0
      %v1893 = vrot.slane %v1887, 6
      %v1894 = vrot.slane %v1890, 6
      %v1895 = vsel %vm1234, %v1893, %v1894
      %v1896 = vsel %vm1234, %v1894, %v1893
      %1897 = vmatprep.subr.bf16.mxu0 0
      %1898 = vmatpush1.bf16.msra.mxu0 %v1238
      %1899 = vmatprep.subr.bf16.mxu0 0
      %1900 = vmatpush1.bf16.msra.mxu0 0
      %1901 = vmatprep.subr.bf16.mxu0 0
      %1902 = vmatpush1.bf16.msra.mxu0 0
      %1903 = vmatprep.subr.bf16.mxu0 0
      %1904 = vmatpush1.bf16.msra.mxu0 0
      %1905 = vmatprep.subr.bf16.mxu0 0
      %1906 = vmatpush1.bf16.msra.mxu0 0
      %1907 = vmatprep.subr.bf16.mxu0 0
      %1908 = vmatpush1.bf16.msra.mxu0 0
      %1909 = vmatprep.subr.bf16.mxu0 0
      %1910 = vmatpush1.bf16.msra.mxu0 0
      %1911 = vmatprep.subr.bf16.mxu0 0
      %1912 = vmatpush1.bf16.msra.mxu0 0
      %1913 = vmatprep.subr.bf16.mxu0 0
      %1914 = vmatpush1.bf16.msra.mxu0 0
      %1915 = vmatprep.subr.bf16.mxu0 0
      %1916 = vmatpush1.bf16.msra.mxu0 0
      %1917 = vmatprep.subr.bf16.mxu0 0
      %1918 = vmatpush1.bf16.msra.mxu0 0
      %1919 = vmatprep.subr.bf16.mxu0 0
      %1920 = vmatpush1.bf16.msra.mxu0 0
      %1921 = vmatprep.subr.bf16.mxu0 0
      %1922 = vmatpush1.bf16.msra.mxu0 0
      %1923 = vmatprep.subr.bf16.mxu0 0
      %1924 = vmatpush1.bf16.msra.mxu0 0
      %1925 = vmatprep.subr.bf16.mxu0 0
      %1926 = vmatpush1.bf16.msra.mxu0 0
      %1927 = vmatprep.subr.bf16.mxu0 0
      %1928 = vmatpush1.bf16.msra.mxu0 0
      %1929 = vmatprep.mubr.bf16.mxu0 0
      %1930 = vmatmul.mubr.bf16.gmra.mrb[0].mxu0 %v1850
      %v1931 = vpop.f32.mrb[0].mxu0
      %v1932 = vadd.f32 0.0, %v1931
      %v1933 = vpop.f32.mrb[0].mxu0
      %v1934 = vpop.f32.mrb[0].mxu0
      %v1935 = vadd.f32 0.0, %v1934
      %v1936 = vpop.f32.mrb[0].mxu0
      %1937 = vdwg.mxu0
      %v1938 = vadd.f32 %v1896, %v1932
      %v1939 = vadd.f32 %v1895, %v1935
      %1940 = vmatprep.subr.bf16.mxu0 0
      %1941 = vmatpush1.bf16.msra.mxu0 %v1284
      %1942 = vmatprep.subr.bf16.mxu0 0
      %1943 = vmatpush1.bf16.msra.mxu0 0
      %1944 = vmatprep.subr.bf16.mxu0 0
      %1945 = vmatpush1.bf16.msra.mxu0 0
      %1946 = vmatprep.subr.bf16.mxu0 0
      %1947 = vmatpush1.bf16.msra.mxu0 0
      %1948 = vmatprep.subr.bf16.mxu0 0
      %1949 = vmatpush1.bf16.msra.mxu0 0
      %1950 = vmatprep.subr.bf16.mxu0 0
      %1951 = vmatpush1.bf16.msra.mxu0 0
      %1952 = vmatprep.subr.bf16.mxu0 0
      %1953 = vmatpush1.bf16.msra.mxu0 0
      %1954 = vmatprep.subr.bf16.mxu0 0
      %1955 = vmatpush1.bf16.msra.mxu0 0
      %1956 = vmatprep.subr.bf16.mxu0 0
      %1957 = vmatpush1.bf16.msra.mxu0 0
      %1958 = vmatprep.subr.bf16.mxu0 0
      %1959 = vmatpush1.bf16.msra.mxu0 0
      %1960 = vmatprep.subr.bf16.mxu0 0
      %1961 = vmatpush1.bf16.msra.mxu0 0
      %1962 = vmatprep.subr.bf16.mxu0 0
      %1963 = vmatpush1.bf16.msra.mxu0 0
      %1964 = vmatprep.subr.bf16.mxu0 0
      %1965 = vmatpush1.bf16.msra.mxu0 0
      %1966 = vmatprep.subr.bf16.mxu0 0
      %1967 = vmatpush1.bf16.msra.mxu0 0
      %1968 = vmatprep.subr.bf16.mxu0 0
      %1969 = vmatpush1.bf16.msra.mxu0 0
      %1970 = vmatprep.subr.bf16.mxu0 0
      %1971 = vmatpush1.bf16.msra.mxu0 0
      %1972 = vmatprep.mubr.bf16.mxu0 0
      %1973 = vmatmul.mubr.bf16.gmra.mrb[0].mxu0 %v1850
      %v1974 = vpop.f32.mrb[0].mxu0
      %v1975 = vadd.f32 0.0, %v1974
      %v1976 = vpop.f32.mrb[0].mxu0
      %v1977 = vpop.f32.mrb[0].mxu0
      %v1978 = vadd.f32 0.0, %v1977
      %v1979 = vpop.f32.mrb[0].mxu0
      %1980 = vdwg.mxu0
      %v1981 = vrot.slane %v1975, 2
      %v1982 = vrot.slane %v1978, 2
      %v1983 = vsel %vm1329, %v1981, %v1982
      %v1984 = vsel %vm1329, %v1982, %v1981
      %v1985 = vadd.f32 %v1938, %v1983
      %v1986 = vadd.f32 %v1939, %v1984
      %v1987 = vadd.f32 %v1985, %v1338
      %v1988 = vadd.f32 %v1986, %v1338
      %v1989 = vmax.f32 %v1987, 0.0
      %v1990 = vmax.f32 %v1988, 0.0
      %v1991 = vpack.c.bf16 %v1990, %v1989
      %v1993 = vsel %vm969, %v1991, 0
      %1995 = vmatprep.subr.bf16.mxu0 0
      %1996 = vmatpush1.bf16.msra.mxu0 %v1349
      %1997 = vmatprep.subr.bf16.mxu0 0
      %1998 = vmatpush1.bf16.msra.mxu0 0
      %1999 = vmatprep.subr.bf16.mxu0 0
      %2000 = vmatpush1.bf16.msra.mxu0 0
      %2001 = vmatprep.subr.bf16.mxu0 0
      %2002 = vmatpush1.bf16.msra.mxu0 0
      %2003 = vmatprep.subr.bf16.mxu0 0
      %2004 = vmatpush1.bf16.msra.mxu0 0
      %2005 = vmatprep.subr.bf16.mxu0 0
      %2006 = vmatpush1.bf16.msra.mxu0 0
      %2007 = vmatprep.subr.bf16.mxu0 0
      %2008 = vmatpush1.bf16.msra.mxu0 0
      %2009 = vmatprep.subr.bf16.mxu0 0
      %2010 = vmatpush1.bf16.msra.mxu0 0
      %2011 = vmatprep.subr.bf16.mxu0 0
      %2012 = vmatpush1.bf16.msra.mxu0 0
      %2013 = vmatprep.subr.bf16.mxu0 0
      %2014 = vmatpush1.bf16.msra.mxu0 0
      %2015 = vmatprep.subr.bf16.mxu0 0
      %2016 = vmatpush1.bf16.msra.mxu0 0
      %2017 = vmatprep.subr.bf16.mxu0 0
      %2018 = vmatpush1.bf16.msra.mxu0 0
      %2019 = vmatprep.subr.bf16.mxu0 0
      %2020 = vmatpush1.bf16.msra.mxu0 0
      %2021 = vmatprep.subr.bf16.mxu0 0
      %2022 = vmatpush1.bf16.msra.mxu0 0
      %2023 = vmatprep.subr.bf16.mxu0 0
      %2024 = vmatpush1.bf16.msra.mxu0 0
      %2025 = vmatprep.subr.bf16.mxu0 0
      %2026 = vmatpush1.bf16.msra.mxu0 0
      %2027 = vmatprep.mubr.bf16.mxu0 0
      %2028 = vmatmul.mubr.bf16.gmra.mrb[0].mxu0 %v1993
      %v2029 = vpop.f32.mrb[0].mxu0
      %v2030 = vadd.f32 0.0, %v2029
      %v2031 = vpop.f32.mrb[0].mxu0
      %v2032 = vpop.f32.mrb[0].mxu0
      %v2033 = vadd.f32 0.0, %v2032
      %v2034 = vpop.f32.mrb[0].mxu0
      %2035 = vdwg.mxu0
      %v2036 = vrot.slane %v2030, 6
      %v2037 = vrot.slane %v2033, 6
      %v2038 = vsel %vm1234, %v2036, %v2037
      %v2039 = vsel %vm1234, %v2037, %v2036
      %2040 = vmatprep.subr.bf16.mxu0 0
      %2041 = vmatpush1.bf16.msra.mxu0 %v1403
      %2042 = vmatprep.subr.bf16.mxu0 0
      %2043 = vmatpush1.bf16.msra.mxu0 0
      %2044 = vmatprep.subr.bf16.mxu0 0
      %2045 = vmatpush1.bf16.msra.mxu0 0
      %2046 = vmatprep.subr.bf16.mxu0 0
      %2047 = vmatpush1.bf16.msra.mxu0 0
      %2048 = vmatprep.subr.bf16.mxu0 0
      %2049 = vmatpush1.bf16.msra.mxu0 0
      %2050 = vmatprep.subr.bf16.mxu0 0
      %2051 = vmatpush1.bf16.msra.mxu0 0
      %2052 = vmatprep.subr.bf16.mxu0 0
      %2053 = vmatpush1.bf16.msra.mxu0 0
      %2054 = vmatprep.subr.bf16.mxu0 0
      %2055 = vmatpush1.bf16.msra.mxu0 0
      %2056 = vmatprep.subr.bf16.mxu0 0
      %2057 = vmatpush1.bf16.msra.mxu0 0
      %2058 = vmatprep.subr.bf16.mxu0 0
      %2059 = vmatpush1.bf16.msra.mxu0 0
      %2060 = vmatprep.subr.bf16.mxu0 0
      %2061 = vmatpush1.bf16.msra.mxu0 0
      %2062 = vmatprep.subr.bf16.mxu0 0
      %2063 = vmatpush1.bf16.msra.mxu0 0
      %2064 = vmatprep.subr.bf16.mxu0 0
      %2065 = vmatpush1.bf16.msra.mxu0 0
      %2066 = vmatprep.subr.bf16.mxu0 0
      %2067 = vmatpush1.bf16.msra.mxu0 0
      %2068 = vmatprep.subr.bf16.mxu0 0
      %2069 = vmatpush1.bf16.msra.mxu0 0
      %2070 = vmatprep.subr.bf16.mxu0 0
      %2071 = vmatpush1.bf16.msra.mxu0 0
      %2072 = vmatprep.mubr.bf16.mxu0 0
      %2073 = vmatmul.mubr.bf16.gmra.mrb[0].mxu0 %v1993
      %v2074 = vpop.f32.mrb[0].mxu0
      %v2075 = vadd.f32 0.0, %v2074
      %v2076 = vpop.f32.mrb[0].mxu0
      %v2077 = vpop.f32.mrb[0].mxu0
      %v2078 = vadd.f32 0.0, %v2077
      %v2079 = vpop.f32.mrb[0].mxu0
      %2080 = vdwg.mxu0
      %v2081 = vadd.f32 %v2039, %v2075
      %v2082 = vadd.f32 %v2038, %v2078
      %2083 = vmatprep.subr.bf16.mxu0 0
      %2084 = vmatpush1.bf16.msra.mxu0 %v1452
      %2085 = vmatprep.subr.bf16.mxu0 0
      %2086 = vmatpush1.bf16.msra.mxu0 0
      %2087 = vmatprep.subr.bf16.mxu0 0
      %2088 = vmatpush1.bf16.msra.mxu0 0
      %2089 = vmatprep.subr.bf16.mxu0 0
      %2090 = vmatpush1.bf16.msra.mxu0 0
      %2091 = vmatprep.subr.bf16.mxu0 0
      %2092 = vmatpush1.bf16.msra.mxu0 0
      %2093 = vmatprep.subr.bf16.mxu0 0
      %2094 = vmatpush1.bf16.msra.mxu0 0
      %2095 = vmatprep.subr.bf16.mxu0 0
      %2096 = vmatpush1.bf16.msra.mxu0 0
      %2097 = vmatprep.subr.bf16.mxu0 0
      %2098 = vmatpush1.bf16.msra.mxu0 0
      %2099 = vmatprep.subr.bf16.mxu0 0
      %2100 = vmatpush1.bf16.msra.mxu0 0
      %2101 = vmatprep.subr.bf16.mxu0 0
      %2102 = vmatpush1.bf16.msra.mxu0 0
      %2103 = vmatprep.subr.bf16.mxu0 0
      %2104 = vmatpush1.bf16.msra.mxu0 0
      %2105 = vmatprep.subr.bf16.mxu0 0
      %2106 = vmatpush1.bf16.msra.mxu0 0
      %2107 = vmatprep.subr.bf16.mxu0 0
      %2108 = vmatpush1.bf16.msra.mxu0 0
      %2109 = vmatprep.subr.bf16.mxu0 0
      %2110 = vmatpush1.bf16.msra.mxu0 0
      %2111 = vmatprep.subr.bf16.mxu0 0
      %2112 = vmatpush1.bf16.msra.mxu0 0
      %2113 = vmatprep.subr.bf16.mxu0 0
      %2114 = vmatpush1.bf16.msra.mxu0 0
      %2115 = vmatprep.mubr.bf16.mxu0 0
      %2116 = vmatmul.mubr.bf16.gmra.mrb[0].mxu0 %v1993
      %v2117 = vpop.f32.mrb[0].mxu0
      %v2118 = vadd.f32 0.0, %v2117
      %v2119 = vpop.f32.mrb[0].mxu0
      %v2120 = vpop.f32.mrb[0].mxu0
      %v2121 = vadd.f32 0.0, %v2120
      %v2122 = vpop.f32.mrb[0].mxu0
      %2123 = vdwg.mxu0
      %v2124 = vrot.slane %v2118, 2
      %v2125 = vrot.slane %v2121, 2
      %v2126 = vsel %vm1329, %v2124, %v2125
      %v2127 = vsel %vm1329, %v2125, %v2124
      %v2128 = vadd.f32 %v2081, %v2126
      %v2129 = vadd.f32 %v2082, %v2127
      %v2130 = vadd.f32 %v2128, %v1505
      %v2131 = vadd.f32 %v2129, %v1505
      %v2132 = vmax.f32 %v2130, 0.0
      %v2133 = vmax.f32 %v2131, 0.0
      %v2134 = vunpack.c.l.bf16 %v1848
      %v2135 = vunpack.c.h.bf16 %v1848
      %v2136 = vadd.f32 %v2132, %v2134
      %v2137 = vadd.f32 %v2133, %v2135
      %v2138 = vsub.f32 %v1513, %v2136
      %v2139 = vsub.f32 %v1514, %v2137
      %v2140 = vpack.c.bf16 %v2139, %v2138
      %v2142 = vsel %vm1183, %v2140, 0
      %v2145 = vsel %vm1187, %v766, 0
      %2147 = vmatprep.subr.bf16.mxu0 0
      %2148 = vmatpush1.bf16.msra.mxu0 %v2145
      %2149 = vmatprep.subr.bf16.mxu0 0
      %2150 = vmatpush1.bf16.msra.mxu0 0
      %2151 = vmatprep.subr.bf16.mxu0 0
      %2152 = vmatpush1.bf16.msra.mxu0 0
      %2153 = vmatprep.subr.bf16.mxu0 0
      %2154 = vmatpush1.bf16.msra.mxu0 0
      %2155 = vmatprep.subr.bf16.mxu0 0
      %2156 = vmatpush1.bf16.msra.mxu0 0
      %2157 = vmatprep.subr.bf16.mxu0 0
      %2158 = vmatpush1.bf16.msra.mxu0 0
      %2159 = vmatprep.subr.bf16.mxu0 0
      %2160 = vmatpush1.bf16.msra.mxu0 0
      %2161 = vmatprep.subr.bf16.mxu0 0
      %2162 = vmatpush1.bf16.msra.mxu0 0
      %2163 = vmatprep.subr.bf16.mxu0 0
      %2164 = vmatpush1.bf16.msra.mxu0 0
      %2165 = vmatprep.subr.bf16.mxu0 0
      %2166 = vmatpush1.bf16.msra.mxu0 0
      %2167 = vmatprep.subr.bf16.mxu0 0
      %2168 = vmatpush1.bf16.msra.mxu0 0
      %2169 = vmatprep.subr.bf16.mxu0 0
      %2170 = vmatpush1.bf16.msra.mxu0 0
      %2171 = vmatprep.subr.bf16.mxu0 0
      %2172 = vmatpush1.bf16.msra.mxu0 0
      %2173 = vmatprep.subr.bf16.mxu0 0
      %2174 = vmatpush1.bf16.msra.mxu0 0
      %2175 = vmatprep.subr.bf16.mxu0 0
      %2176 = vmatpush1.bf16.msra.mxu0 0
      %2177 = vmatprep.subr.bf16.mxu0 0
      %2178 = vmatpush1.bf16.msra.mxu0 0
      %2179 = vmatprep.mubr.bf16.mxu0 0
      %2180 = vmatmul.mubr.bf16.gmra.mrb[0].mxu0 %v2142
      %v2181 = vpop.f32.mrb[0].mxu0
      %v2182 = vadd.f32 0.0, %v2181
      %v2183 = vpop.f32.mrb[0].mxu0
      %v2184 = vpop.f32.mrb[0].mxu0
      %v2185 = vadd.f32 0.0, %v2184
      %v2186 = vpop.f32.mrb[0].mxu0
      %2187 = vdwg.mxu0
      %v2188 = vrot.slane %v2182, 7
      %v2189 = vrot.slane %v2185, 7
      %v2190 = vsel %vm852, %v2188, %v2189
      %v2191 = vsel %vm852, %v2189, %v2188
      %v2193 = vsel %vm1187, %v767, 0
      %2195 = vmatprep.subr.bf16.mxu0 0
      %2196 = vmatpush1.bf16.msra.mxu0 %v2193
      %2197 = vmatprep.subr.bf16.mxu0 0
      %2198 = vmatpush1.bf16.msra.mxu0 0
      %2199 = vmatprep.subr.bf16.mxu0 0
      %2200 = vmatpush1.bf16.msra.mxu0 0
      %2201 = vmatprep.subr.bf16.mxu0 0
      %2202 = vmatpush1.bf16.msra.mxu0 0
      %2203 = vmatprep.subr.bf16.mxu0 0
      %2204 = vmatpush1.bf16.msra.mxu0 0
      %2205 = vmatprep.subr.bf16.mxu0 0
      %2206 = vmatpush1.bf16.msra.mxu0 0
      %2207 = vmatprep.subr.bf16.mxu0 0
      %2208 = vmatpush1.bf16.msra.mxu0 0
      %2209 = vmatprep.subr.bf16.mxu0 0
      %2210 = vmatpush1.bf16.msra.mxu0 0
      %2211 = vmatprep.subr.bf16.mxu0 0
      %2212 = vmatpush1.bf16.msra.mxu0 0
      %2213 = vmatprep.subr.bf16.mxu0 0
      %2214 = vmatpush1.bf16.msra.mxu0 0
      %2215 = vmatprep.subr.bf16.mxu0 0
      %2216 = vmatpush1.bf16.msra.mxu0 0
      %2217 = vmatprep.subr.bf16.mxu0 0
      %2218 = vmatpush1.bf16.msra.mxu0 0
      %2219 = vmatprep.subr.bf16.mxu0 0
      %2220 = vmatpush1.bf16.msra.mxu0 0
      %2221 = vmatprep.subr.bf16.mxu0 0
      %2222 = vmatpush1.bf16.msra.mxu0 0
      %2223 = vmatprep.subr.bf16.mxu0 0
      %2224 = vmatpush1.bf16.msra.mxu0 0
      %2225 = vmatprep.subr.bf16.mxu0 0
      %2226 = vmatpush1.bf16.msra.mxu0 0
      %2227 = vmatprep.mubr.bf16.mxu0 0
      %2228 = vmatmul.mubr.bf16.gmra.mrb[0].mxu0 %v2142
      %v2229 = vpop.f32.mrb[0].mxu0
      %v2230 = vadd.f32 0.0, %v2229
      %v2231 = vpop.f32.mrb[0].mxu0
      %v2232 = vpop.f32.mrb[0].mxu0
      %v2233 = vadd.f32 0.0, %v2232
      %v2234 = vpop.f32.mrb[0].mxu0
      %2235 = vdwg.mxu0
      %v2236 = vadd.f32 %v2191, %v2230
      %v2237 = vadd.f32 %v2190, %v2233
      %v2239 = vsel %vm1187, %v768, 0
      %2241 = vmatprep.subr.bf16.mxu0 0
      %2242 = vmatpush1.bf16.msra.mxu0 %v2239
      %2243 = vmatprep.subr.bf16.mxu0 0
      %2244 = vmatpush1.bf16.msra.mxu0 0
      %2245 = vmatprep.subr.bf16.mxu0 0
      %2246 = vmatpush1.bf16.msra.mxu0 0
      %2247 = vmatprep.subr.bf16.mxu0 0
      %2248 = vmatpush1.bf16.msra.mxu0 0
      %2249 = vmatprep.subr.bf16.mxu0 0
      %2250 = vmatpush1.bf16.msra.mxu0 0
      %2251 = vmatprep.subr.bf16.mxu0 0
      %2252 = vmatpush1.bf16.msra.mxu0 0
      %2253 = vmatprep.subr.bf16.mxu0 0
      %2254 = vmatpush1.bf16.msra.mxu0 0
      %2255 = vmatprep.subr.bf16.mxu0 0
      %2256 = vmatpush1.bf16.msra.mxu0 0
      %2257 = vmatprep.subr.bf16.mxu0 0
      %2258 = vmatpush1.bf16.msra.mxu0 0
      %2259 = vmatprep.subr.bf16.mxu0 0
      %2260 = vmatpush1.bf16.msra.mxu0 0
      %2261 = vmatprep.subr.bf16.mxu0 0
      %2262 = vmatpush1.bf16.msra.mxu0 0
      %2263 = vmatprep.subr.bf16.mxu0 0
      %2264 = vmatpush1.bf16.msra.mxu0 0
      %2265 = vmatprep.subr.bf16.mxu0 0
      %2266 = vmatpush1.bf16.msra.mxu0 0
      %2267 = vmatprep.subr.bf16.mxu0 0
      %2268 = vmatpush1.bf16.msra.mxu0 0
      %2269 = vmatprep.subr.bf16.mxu0 0
      %2270 = vmatpush1.bf16.msra.mxu0 0
      %2271 = vmatprep.subr.bf16.mxu0 0
      %2272 = vmatpush1.bf16.msra.mxu0 0
      %2273 = vmatprep.mubr.bf16.mxu0 0
      %2274 = vmatmul.mubr.bf16.gmra.mrb[0].mxu0 %v2142
      %v2275 = vpop.f32.mrb[0].mxu0
      %v2276 = vadd.f32 0.0, %v2275
      %v2277 = vpop.f32.mrb[0].mxu0
      %v2278 = vpop.f32.mrb[0].mxu0
      %v2279 = vadd.f32 0.0, %v2278
      %v2280 = vpop.f32.mrb[0].mxu0
      %2281 = vdwg.mxu0
      %v2282 = vrot.slane %v2276, 1
      %v2283 = vrot.slane %v2279, 1
      %v2284 = vsel %vm947, %v2282, %v2283
      %v2285 = vsel %vm947, %v2283, %v2282
      %v2286 = vadd.f32 %v2236, %v2284
      %v2287 = vadd.f32 %v2237, %v2285
      %v2289 = vlaneseq
      %v2290 = vshrl.u32 %v2289, 7
      %v2291 = vsub.s32 0, %v2290
      %v2292 = vrot.slane %v769, %v2291
      %v2294 = vadd.f32 %v2286, %v2292
      %v2295 = vadd.f32 %v2287, %v2292
      %v2296 = vmax.f32 %v2294, 0.0
      %v2297 = vmax.f32 %v2295, 0.0
      %v2298 = vpack.c.bf16 %v2297, %v2296
      %v2301 = vunpack.c.l.b16 %v770
      %v2302 = vunpack.c.l.b16 %v771
      %v2303 = vpack.c.b16 %v2302, %v2301
      %v2306 = vsel %vm969, %v2298, 0
      %2308 = vmatprep.subr.bf16.mxu0 0
      %2309 = vmatpush1.bf16.msra.mxu0 %v2303
      %2310 = vmatprep.subr.bf16.mxu0 0
      %2311 = vmatpush1.bf16.msra.mxu0 0
      %2312 = vmatprep.subr.bf16.mxu0 0
      %2313 = vmatpush1.bf16.msra.mxu0 0
      %2314 = vmatprep.subr.bf16.mxu0 0
      %2315 = vmatpush1.bf16.msra.mxu0 0
      %2316 = vmatprep.subr.bf16.mxu0 0
      %2317 = vmatpush1.bf16.msra.mxu0 0
      %2318 = vmatprep.subr.bf16.mxu0 0
      %2319 = vmatpush1.bf16.msra.mxu0 0
      %2320 = vmatprep.subr.bf16.mxu0 0
      %2321 = vmatpush1.bf16.msra.mxu0 0
      %2322 = vmatprep.subr.bf16.mxu0 0
      %2323 = vmatpush1.bf16.msra.mxu0 0
      %2324 = vmatprep.subr.bf16.mxu0 0
      %2325 = vmatpush1.bf16.msra.mxu0 0
      %2326 = vmatprep.subr.bf16.mxu0 0
      %2327 = vmatpush1.bf16.msra.mxu0 0
      %2328 = vmatprep.subr.bf16.mxu0 0
      %2329 = vmatpush1.bf16.msra.mxu0 0
      %2330 = vmatprep.subr.bf16.mxu0 0
      %2331 = vmatpush1.bf16.msra.mxu0 0
      %2332 = vmatprep.subr.bf16.mxu0 0
      %2333 = vmatpush1.bf16.msra.mxu0 0
      %2334 = vmatprep.subr.bf16.mxu0 0
      %2335 = vmatpush1.bf16.msra.mxu0 0
      %2336 = vmatprep.subr.bf16.mxu0 0
      %2337 = vmatpush1.bf16.msra.mxu0 0
      %2338 = vmatprep.subr.bf16.mxu0 0
      %2339 = vmatpush1.bf16.msra.mxu0 0
      %2340 = vmatprep.mubr.bf16.mxu0 0
      %2341 = vmatmul.mubr.bf16.gmra.mrb[0].mxu0 %v2306
      %v2342 = vpop.f32.mrb[0].mxu0
      %v2343 = vadd.f32 0.0, %v2342
      %v2344 = vpop.f32.mrb[0].mxu0
      %v2345 = vpop.f32.mrb[0].mxu0
      %v2346 = vadd.f32 0.0, %v2345
      %v2347 = vpop.f32.mrb[0].mxu0
      %2348 = vdwg.mxu0
      %v2349 = vrot.slane %v2343, 7
      %v2350 = vrot.slane %v2346, 7
      %v2351 = vsel %vm852, %v2349, %v2350
      %v2352 = vsel %vm852, %v2350, %v2349
      %v2355 = vunpack.c.l.b16 %v772
      %v2356 = vunpack.c.l.b16 %v773
      %v2357 = vpack.c.b16 %v2356, %v2355
      %2359 = vmatprep.subr.bf16.mxu0 0
      %2360 = vmatpush1.bf16.msra.mxu0 %v2357
      %2361 = vmatprep.subr.bf16.mxu0 0
      %2362 = vmatpush1.bf16.msra.mxu0 0
      %2363 = vmatprep.subr.bf16.mxu0 0
      %2364 = vmatpush1.bf16.msra.mxu0 0
      %2365 = vmatprep.subr.bf16.mxu0 0
      %2366 = vmatpush1.bf16.msra.mxu0 0
      %2367 = vmatprep.subr.bf16.mxu0 0
      %2368 = vmatpush1.bf16.msra.mxu0 0
      %2369 = vmatprep.subr.bf16.mxu0 0
      %2370 = vmatpush1.bf16.msra.mxu0 0
      %2371 = vmatprep.subr.bf16.mxu0 0
      %2372 = vmatpush1.bf16.msra.mxu0 0
      %2373 = vmatprep.subr.bf16.mxu0 0
      %2374 = vmatpush1.bf16.msra.mxu0 0
      %2375 = vmatprep.subr.bf16.mxu0 0
      %2376 = vmatpush1.bf16.msra.mxu0 0
      %2377 = vmatprep.subr.bf16.mxu0 0
      %2378 = vmatpush1.bf16.msra.mxu0 0
      %2379 = vmatprep.subr.bf16.mxu0 0
      %2380 = vmatpush1.bf16.msra.mxu0 0
      %2381 = vmatprep.subr.bf16.mxu0 0
      %2382 = vmatpush1.bf16.msra.mxu0 0
      %2383 = vmatprep.subr.bf16.mxu0 0
      %2384 = vmatpush1.bf16.msra.mxu0 0
      %2385 = vmatprep.subr.bf16.mxu0 0
      %2386 = vmatpush1.bf16.msra.mxu0 0
      %2387 = vmatprep.subr.bf16.mxu0 0
      %2388 = vmatpush1.bf16.msra.mxu0 0
      %2389 = vmatprep.subr.bf16.mxu0 0
      %2390 = vmatpush1.bf16.msra.mxu0 0
      %2391 = vmatprep.mubr.bf16.mxu0 0
      %2392 = vmatmul.mubr.bf16.gmra.mrb[0].mxu0 %v2306
      %v2393 = vpop.f32.mrb[0].mxu0
      %v2394 = vadd.f32 0.0, %v2393
      %v2395 = vpop.f32.mrb[0].mxu0
      %v2396 = vpop.f32.mrb[0].mxu0
      %v2397 = vadd.f32 0.0, %v2396
      %v2398 = vpop.f32.mrb[0].mxu0
      %2399 = vdwg.mxu0
      %v2400 = vadd.f32 %v2352, %v2394
      %v2401 = vadd.f32 %v2351, %v2397
      %v2404 = vunpack.c.l.b16 %v774
      %v2405 = vunpack.c.l.b16 %v775
      %v2406 = vpack.c.b16 %v2405, %v2404
      %2408 = vmatprep.subr.bf16.mxu0 0
      %2409 = vmatpush1.bf16.msra.mxu0 %v2406
      %2410 = vmatprep.subr.bf16.mxu0 0
      %2411 = vmatpush1.bf16.msra.mxu0 0
      %2412 = vmatprep.subr.bf16.mxu0 0
      %2413 = vmatpush1.bf16.msra.mxu0 0
      %2414 = vmatprep.subr.bf16.mxu0 0
      %2415 = vmatpush1.bf16.msra.mxu0 0
      %2416 = vmatprep.subr.bf16.mxu0 0
      %2417 = vmatpush1.bf16.msra.mxu0 0
      %2418 = vmatprep.subr.bf16.mxu0 0
      %2419 = vmatpush1.bf16.msra.mxu0 0
      %2420 = vmatprep.subr.bf16.mxu0 0
      %2421 = vmatpush1.bf16.msra.mxu0 0
      %2422 = vmatprep.subr.bf16.mxu0 0
      %2423 = vmatpush1.bf16.msra.mxu0 0
      %2424 = vmatprep.subr.bf16.mxu0 0
      %2425 = vmatpush1.bf16.msra.mxu0 0
      %2426 = vmatprep.subr.bf16.mxu0 0
      %2427 = vmatpush1.bf16.msra.mxu0 0
      %2428 = vmatprep.subr.bf16.mxu0 0
      %2429 = vmatpush1.bf16.msra.mxu0 0
      %2430 = vmatprep.subr.bf16.mxu0 0
      %2431 = vmatpush1.bf16.msra.mxu0 0
      %2432 = vmatprep.subr.bf16.mxu0 0
      %2433 = vmatpush1.bf16.msra.mxu0 0
      %2434 = vmatprep.subr.bf16.mxu0 0
      %2435 = vmatpush1.bf16.msra.mxu0 0
      %2436 = vmatprep.subr.bf16.mxu0 0
      %2437 = vmatpush1.bf16.msra.mxu0 0
      %2438 = vmatprep.subr.bf16.mxu0 0
      %2439 = vmatpush1.bf16.msra.mxu0 0
      %2440 = vmatprep.mubr.bf16.mxu0 0
      %2441 = vmatmul.mubr.bf16.gmra.mrb[0].mxu0 %v2306
      %v2442 = vpop.f32.mrb[0].mxu0
      %v2443 = vadd.f32 0.0, %v2442
      %v2444 = vpop.f32.mrb[0].mxu0
      %v2445 = vpop.f32.mrb[0].mxu0
      %v2446 = vadd.f32 0.0, %v2445
      %v2447 = vpop.f32.mrb[0].mxu0
      %2448 = vdwg.mxu0
      %v2449 = vrot.slane %v2443, 1
      %v2450 = vrot.slane %v2446, 1
      %v2451 = vsel %vm947, %v2449, %v2450
      %v2452 = vsel %vm947, %v2450, %v2449
      %v2453 = vadd.f32 %v2400, %v2451
      %v2454 = vadd.f32 %v2401, %v2452
      %v2456 = vlaneseq
      %v2457 = vshrl.u32 %v2456, 7
      %v2458 = vsub.s32 0, %v2457
      %v2459 = vrot.slane %v776, %v2458
      %v2461 = vadd.f32 %v2453, %v2459
      %v2462 = vadd.f32 %v2454, %v2459
      %v2463 = vmax.f32 %v2461, 0.0
      %v2464 = vmax.f32 %v2462, 0.0
      %v2465 = vunpack.c.l.bf16 %v2140
      %v2466 = vunpack.c.h.bf16 %v2140
      %v2467 = vadd.f32 %v2463, %v2465
      %v2468 = vadd.f32 %v2464, %v2466
      %v2469 = vpack.c.bf16 %v2468, %v2467
      %v2471 = vsel %vm1183, %v2469, 0
      %v2474 = vsel %vm1187, %v777, 0
      %2476 = vmatprep.subr.bf16.mxu0 0
      %2477 = vmatpush1.bf16.msra.mxu0 %v2474
      %2478 = vmatprep.subr.bf16.mxu0 0
      %2479 = vmatpush1.bf16.msra.mxu0 0
      %2480 = vmatprep.subr.bf16.mxu0 0
      %2481 = vmatpush1.bf16.msra.mxu0 0
      %2482 = vmatprep.subr.bf16.mxu0 0
      %2483 = vmatpush1.bf16.msra.mxu0 0
      %2484 = vmatprep.subr.bf16.mxu0 0
      %2485 = vmatpush1.bf16.msra.mxu0 0
      %2486 = vmatprep.subr.bf16.mxu0 0
      %2487 = vmatpush1.bf16.msra.mxu0 0
      %2488 = vmatprep.subr.bf16.mxu0 0
      %2489 = vmatpush1.bf16.msra.mxu0 0
      %2490 = vmatprep.subr.bf16.mxu0 0
      %2491 = vmatpush1.bf16.msra.mxu0 0
      %2492 = vmatprep.subr.bf16.mxu0 0
      %2493 = vmatpush1.bf16.msra.mxu0 0
      %2494 = vmatprep.subr.bf16.mxu0 0
      %2495 = vmatpush1.bf16.msra.mxu0 0
      %2496 = vmatprep.subr.bf16.mxu0 0
      %2497 = vmatpush1.bf16.msra.mxu0 0
      %2498 = vmatprep.subr.bf16.mxu0 0
      %2499 = vmatpush1.bf16.msra.mxu0 0
      %2500 = vmatprep.subr.bf16.mxu0 0
      %2501 = vmatpush1.bf16.msra.mxu0 0
      %2502 = vmatprep.subr.bf16.mxu0 0
      %2503 = vmatpush1.bf16.msra.mxu0 0
      %2504 = vmatprep.subr.bf16.mxu0 0
      %2505 = vmatpush1.bf16.msra.mxu0 0
      %2506 = vmatprep.subr.bf16.mxu0 0
      %2507 = vmatpush1.bf16.msra.mxu0 0
      %2508 = vmatprep.mubr.bf16.mxu0 0
      %2509 = vmatmul.mubr.bf16.gmra.mrb[0].mxu0 %v2471
      %v2510 = vpop.f32.mrb[0].mxu0
      %v2511 = vadd.f32 0.0, %v2510
      %v2512 = vpop.f32.mrb[0].mxu0
      %v2513 = vpop.f32.mrb[0].mxu0
      %v2514 = vadd.f32 0.0, %v2513
      %v2515 = vpop.f32.mrb[0].mxu0
      %2516 = vdwg.mxu0
      %v2517 = vrot.slane %v2511, 6
      %v2518 = vrot.slane %v2514, 6
      %v2519 = vsel %vm1234, %v2517, %v2518
      %v2520 = vsel %vm1234, %v2518, %v2517
      %v2522 = vsel %vm1187, %v778, 0
      %2524 = vmatprep.subr.bf16.mxu0 0
      %2525 = vmatpush1.bf16.msra.mxu0 %v2522
      %2526 = vmatprep.subr.bf16.mxu0 0
      %2527 = vmatpush1.bf16.msra.mxu0 0
      %2528 = vmatprep.subr.bf16.mxu0 0
      %2529 = vmatpush1.bf16.msra.mxu0 0
      %2530 = vmatprep.subr.bf16.mxu0 0
      %2531 = vmatpush1.bf16.msra.mxu0 0
      %2532 = vmatprep.subr.bf16.mxu0 0
      %2533 = vmatpush1.bf16.msra.mxu0 0
      %2534 = vmatprep.subr.bf16.mxu0 0
      %2535 = vmatpush1.bf16.msra.mxu0 0
      %2536 = vmatprep.subr.bf16.mxu0 0
      %2537 = vmatpush1.bf16.msra.mxu0 0
      %2538 = vmatprep.subr.bf16.mxu0 0
      %2539 = vmatpush1.bf16.msra.mxu0 0
      %2540 = vmatprep.subr.bf16.mxu0 0
      %2541 = vmatpush1.bf16.msra.mxu0 0
      %2542 = vmatprep.subr.bf16.mxu0 0
      %2543 = vmatpush1.bf16.msra.mxu0 0
      %2544 = vmatprep.subr.bf16.mxu0 0
      %2545 = vmatpush1.bf16.msra.mxu0 0
      %2546 = vmatprep.subr.bf16.mxu0 0
      %2547 = vmatpush1.bf16.msra.mxu0 0
      %2548 = vmatprep.subr.bf16.mxu0 0
      %2549 = vmatpush1.bf16.msra.mxu0 0
      %2550 = vmatprep.subr.bf16.mxu0 0
      %2551 = vmatpush1.bf16.msra.mxu0 0
      %2552 = vmatprep.subr.bf16.mxu0 0
      %2553 = vmatpush1.bf16.msra.mxu0 0
      %2554 = vmatprep.subr.bf16.mxu0 0
      %2555 = vmatpush1.bf16.msra.mxu0 0
      %2556 = vmatprep.mubr.bf16.mxu0 0
      %2557 = vmatmul.mubr.bf16.gmra.mrb[0].mxu0 %v2471
      %v2558 = vpop.f32.mrb[0].mxu0
      %v2559 = vadd.f32 0.0, %v2558
      %v2560 = vpop.f32.mrb[0].mxu0
      %v2561 = vpop.f32.mrb[0].mxu0
      %v2562 = vadd.f32 0.0, %v2561
      %v2563 = vpop.f32.mrb[0].mxu0
      %2564 = vdwg.mxu0
      %v2565 = vadd.f32 %v2520, %v2559
      %v2566 = vadd.f32 %v2519, %v2562
      %v2568 = vsel %vm1187, %v779, 0
      %2570 = vmatprep.subr.bf16.mxu0 0
      %2571 = vmatpush1.bf16.msra.mxu0 %v2568
      %2572 = vmatprep.subr.bf16.mxu0 0
      %2573 = vmatpush1.bf16.msra.mxu0 0
      %2574 = vmatprep.subr.bf16.mxu0 0
      %2575 = vmatpush1.bf16.msra.mxu0 0
      %2576 = vmatprep.subr.bf16.mxu0 0
      %2577 = vmatpush1.bf16.msra.mxu0 0
      %2578 = vmatprep.subr.bf16.mxu0 0
      %2579 = vmatpush1.bf16.msra.mxu0 0
      %2580 = vmatprep.subr.bf16.mxu0 0
      %2581 = vmatpush1.bf16.msra.mxu0 0
      %2582 = vmatprep.subr.bf16.mxu0 0
      %2583 = vmatpush1.bf16.msra.mxu0 0
      %2584 = vmatprep.subr.bf16.mxu0 0
      %2585 = vmatpush1.bf16.msra.mxu0 0
      %2586 = vmatprep.subr.bf16.mxu0 0
      %2587 = vmatpush1.bf16.msra.mxu0 0
      %2588 = vmatprep.subr.bf16.mxu0 0
      %2589 = vmatpush1.bf16.msra.mxu0 0
      %2590 = vmatprep.subr.bf16.mxu0 0
      %2591 = vmatpush1.bf16.msra.mxu0 0
      %2592 = vmatprep.subr.bf16.mxu0 0
      %2593 = vmatpush1.bf16.msra.mxu0 0
      %2594 = vmatprep.subr.bf16.mxu0 0
      %2595 = vmatpush1.bf16.msra.mxu0 0
      %2596 = vmatprep.subr.bf16.mxu0 0
      %2597 = vmatpush1.bf16.msra.mxu0 0
      %2598 = vmatprep.subr.bf16.mxu0 0
      %2599 = vmatpush1.bf16.msra.mxu0 0
      %2600 = vmatprep.subr.bf16.mxu0 0
      %2601 = vmatpush1.bf16.msra.mxu0 0
      %2602 = vmatprep.mubr.bf16.mxu0 0
      %2603 = vmatmul.mubr.bf16.gmra.mrb[0].mxu0 %v2471
      %v2604 = vpop.f32.mrb[0].mxu0
      %v2605 = vadd.f32 0.0, %v2604
      %v2606 = vpop.f32.mrb[0].mxu0
      %v2607 = vpop.f32.mrb[0].mxu0
      %v2608 = vadd.f32 0.0, %v2607
      %v2609 = vpop.f32.mrb[0].mxu0
      %2610 = vdwg.mxu0
      %v2611 = vrot.slane %v2605, 2
      %v2612 = vrot.slane %v2608, 2
      %v2613 = vsel %vm1329, %v2611, %v2612
      %v2614 = vsel %vm1329, %v2612, %v2611
      %v2615 = vadd.f32 %v2565, %v2613
      %v2616 = vadd.f32 %v2566, %v2614
      %v2618 = vlaneseq
      %v2619 = vshrl.u32 %v2618, 7
      %v2620 = vsub.s32 0, %v2619
      %v2621 = vrot.slane %v780, %v2620
      %v2623 = vadd.f32 %v2615, %v2621
      %v2624 = vadd.f32 %v2616, %v2621
      %v2625 = vmax.f32 %v2623, 0.0
      %v2626 = vmax.f32 %v2624, 0.0
      %v2627 = vpack.c.bf16 %v2626, %v2625
      %v2630 = vunpack.c.l.b16 %v781
      %v2631 = vunpack.c.l.b16 %v782
      %v2632 = vpack.c.b16 %v2631, %v2630
      %v2635 = vsel %vm969, %v2627, 0
      %2637 = vmatprep.subr.bf16.mxu0 0
      %2638 = vmatpush1.bf16.msra.mxu0 %v2632
      %2639 = vmatprep.subr.bf16.mxu0 0
      %2640 = vmatpush1.bf16.msra.mxu0 0
      %2641 = vmatprep.subr.bf16.mxu0 0
      %2642 = vmatpush1.bf16.msra.mxu0 0
      %2643 = vmatprep.subr.bf16.mxu0 0
      %2644 = vmatpush1.bf16.msra.mxu0 0
      %2645 = vmatprep.subr.bf16.mxu0 0
      %2646 = vmatpush1.bf16.msra.mxu0 0
      %2647 = vmatprep.subr.bf16.mxu0 0
      %2648 = vmatpush1.bf16.msra.mxu0 0
      %2649 = vmatprep.subr.bf16.mxu0 0
      %2650 = vmatpush1.bf16.msra.mxu0 0
      %2651 = vmatprep.subr.bf16.mxu0 0
      %2652 = vmatpush1.bf16.msra.mxu0 0
      %2653 = vmatprep.subr.bf16.mxu0 0
      %2654 = vmatpush1.bf16.msra.mxu0 0
      %2655 = vmatprep.subr.bf16.mxu0 0
      %2656 = vmatpush1.bf16.msra.mxu0 0
      %2657 = vmatprep.subr.bf16.mxu0 0
      %2658 = vmatpush1.bf16.msra.mxu0 0
      %2659 = vmatprep.subr.bf16.mxu0 0
      %2660 = vmatpush1.bf16.msra.mxu0 0
      %2661 = vmatprep.subr.bf16.mxu0 0
      %2662 = vmatpush1.bf16.msra.mxu0 0
      %2663 = vmatprep.subr.bf16.mxu0 0
      %2664 = vmatpush1.bf16.msra.mxu0 0
      %2665 = vmatprep.subr.bf16.mxu0 0
      %2666 = vmatpush1.bf16.msra.mxu0 0
      %2667 = vmatprep.subr.bf16.mxu0 0
      %2668 = vmatpush1.bf16.msra.mxu0 0
      %2669 = vmatprep.mubr.bf16.mxu0 0
      %2670 = vmatmul.mubr.bf16.gmra.mrb[0].mxu0 %v2635
      %v2671 = vpop.f32.mrb[0].mxu0
      %v2672 = vadd.f32 0.0, %v2671
      %v2673 = vpop.f32.mrb[0].mxu0
      %v2674 = vpop.f32.mrb[0].mxu0
      %v2675 = vadd.f32 0.0, %v2674
      %v2676 = vpop.f32.mrb[0].mxu0
      %2677 = vdwg.mxu0
      %v2678 = vrot.slane %v2672, 6
      %v2679 = vrot.slane %v2675, 6
      %v2680 = vsel %vm1234, %v2678, %v2679
      %v2681 = vsel %vm1234, %v2679, %v2678
      %v2684 = vunpack.c.l.b16 %v783
      %v2685 = vunpack.c.l.b16 %v784
      %v2686 = vpack.c.b16 %v2685, %v2684
      %2688 = vmatprep.subr.bf16.mxu0 0
      %2689 = vmatpush1.bf16.msra.mxu0 %v2686
      %2690 = vmatprep.subr.bf16.mxu0 0
      %2691 = vmatpush1.bf16.msra.mxu0 0
      %2692 = vmatprep.subr.bf16.mxu0 0
      %2693 = vmatpush1.bf16.msra.mxu0 0
      %2694 = vmatprep.subr.bf16.mxu0 0
      %2695 = vmatpush1.bf16.msra.mxu0 0
      %2696 = vmatprep.subr.bf16.mxu0 0
      %2697 = vmatpush1.bf16.msra.mxu0 0
      %2698 = vmatprep.subr.bf16.mxu0 0
      %2699 = vmatpush1.bf16.msra.mxu0 0
      %2700 = vmatprep.subr.bf16.mxu0 0
      %2701 = vmatpush1.bf16.msra.mxu0 0
      %2702 = vmatprep.subr.bf16.mxu0 0
      %2703 = vmatpush1.bf16.msra.mxu0 0
      %2704 = vmatprep.subr.bf16.mxu0 0
      %2705 = vmatpush1.bf16.msra.mxu0 0
      %2706 = vmatprep.subr.bf16.mxu0 0
      %2707 = vmatpush1.bf16.msra.mxu0 0
      %2708 = vmatprep.subr.bf16.mxu0 0
      %2709 = vmatpush1.bf16.msra.mxu0 0
      %2710 = vmatprep.subr.bf16.mxu0 0
      %2711 = vmatpush1.bf16.msra.mxu0 0
      %2712 = vmatprep.subr.bf16.mxu0 0
      %2713 = vmatpush1.bf16.msra.mxu0 0
      %2714 = vmatprep.subr.bf16.mxu0 0
      %2715 = vmatpush1.bf16.msra.mxu0 0
      %2716 = vmatprep.subr.bf16.mxu0 0
      %2717 = vmatpush1.bf16.msra.mxu0 0
      %2718 = vmatprep.subr.bf16.mxu0 0
      %2719 = vmatpush1.bf16.msra.mxu0 0
      %2720 = vmatprep.mubr.bf16.mxu0 0
      %2721 = vmatmul.mubr.bf16.gmra.mrb[0].mxu0 %v2635
      %v2722 = vpop.f32.mrb[0].mxu0
      %v2723 = vadd.f32 0.0, %v2722
      %v2724 = vpop.f32.mrb[0].mxu0
      %v2725 = vpop.f32.mrb[0].mxu0
      %v2726 = vadd.f32 0.0, %v2725
      %v2727 = vpop.f32.mrb[0].mxu0
      %2728 = vdwg.mxu0
      %v2729 = vadd.f32 %v2681, %v2723
      %v2730 = vadd.f32 %v2680, %v2726
      %v2733 = vunpack.c.l.b16 %v785
      %v2734 = vunpack.c.l.b16 %v786
      %v2735 = vpack.c.b16 %v2734, %v2733
      %2737 = vmatprep.subr.bf16.mxu0 0
      %2738 = vmatpush1.bf16.msra.mxu0 %v2735
      %2739 = vmatprep.subr.bf16.mxu0 0
      %2740 = vmatpush1.bf16.msra.mxu0 0
      %2741 = vmatprep.subr.bf16.mxu0 0
      %2742 = vmatpush1.bf16.msra.mxu0 0
      %2743 = vmatprep.subr.bf16.mxu0 0
      %2744 = vmatpush1.bf16.msra.mxu0 0
      %2745 = vmatprep.subr.bf16.mxu0 0
      %2746 = vmatpush1.bf16.msra.mxu0 0
      %2747 = vmatprep.subr.bf16.mxu0 0
      %2748 = vmatpush1.bf16.msra.mxu0 0
      %2749 = vmatprep.subr.bf16.mxu0 0
      %2750 = vmatpush1.bf16.msra.mxu0 0
      %2751 = vmatprep.subr.bf16.mxu0 0
      %2752 = vmatpush1.bf16.msra.mxu0 0
      %2753 = vmatprep.subr.bf16.mxu0 0
      %2754 = vmatpush1.bf16.msra.mxu0 0
      %2755 = vmatprep.subr.bf16.mxu0 0
      %2756 = vmatpush1.bf16.msra.mxu0 0
      %2757 = vmatprep.subr.bf16.mxu0 0
      %2758 = vmatpush1.bf16.msra.mxu0 0
      %2759 = vmatprep.subr.bf16.mxu0 0
      %2760 = vmatpush1.bf16.msra.mxu0 0
      %2761 = vmatprep.subr.bf16.mxu0 0
      %2762 = vmatpush1.bf16.msra.mxu0 0
      %2763 = vmatprep.subr.bf16.mxu0 0
      %2764 = vmatpush1.bf16.msra.mxu0 0
      %2765 = vmatprep.subr.bf16.mxu0 0
      %2766 = vmatpush1.bf16.msra.mxu0 0
      %2767 = vmatprep.subr.bf16.mxu0 0
      %2768 = vmatpush1.bf16.msra.mxu0 0
      %2769 = vmatprep.mubr.bf16.mxu0 0
      %2770 = vmatmul.mubr.bf16.gmra.mrb[0].mxu0 %v2635
      %v2771 = vpop.f32.mrb[0].mxu0
      %v2772 = vadd.f32 0.0, %v2771
      %v2773 = vpop.f32.mrb[0].mxu0
      %v2774 = vpop.f32.mrb[0].mxu0
      %v2775 = vadd.f32 0.0, %v2774
      %v2776 = vpop.f32.mrb[0].mxu0
      %2777 = vdwg.mxu0
      %v2778 = vrot.slane %v2772, 2
      %v2779 = vrot.slane %v2775, 2
      %v2780 = vsel %vm1329, %v2778, %v2779
      %v2781 = vsel %vm1329, %v2779, %v2778
      %v2782 = vadd.f32 %v2729, %v2780
      %v2783 = vadd.f32 %v2730, %v2781
      %v2785 = vlaneseq
      %v2786 = vshrl.u32 %v2785, 7
      %v2787 = vsub.s32 0, %v2786
      %v2788 = vrot.slane %v787, %v2787
      %v2790 = vadd.f32 %v2782, %v2788
      %v2791 = vadd.f32 %v2783, %v2788
      %v2792 = vmax.f32 %v2790, 0.0
      %v2793 = vmax.f32 %v2791, 0.0
      %v2794 = vunpack.c.l.bf16 %v2469
      %v2795 = vunpack.c.h.bf16 %v2469
      %v2796 = vadd.f32 %v2792, %v2794
      %v2797 = vadd.f32 %v2793, %v2795
      %v2798 = vsel %vm1183, %v2796, 0.0
      %v2799 = vsel %vm1183, %v2797, 0.0
      %v2800 = vadd.f32 %v2798, %v2799
      %v2801 = vrot.slane %v2800, 4
      %v2802 = vadd.f32 %v2800, %v2801
      %v2803 = vrot.slane %v2802, 2
      %v2804 = vadd.f32 %v2802, %v2803
      %v2805 = vrot.slane %v2804, 1
      %v2806 = vadd.f32 %v2804, %v2805
      %v2807 = vrcp.pop 16.0
      %v2808 = vmul.f32 %v2806, %v2807
      %v2810 = vsel %vm1183, %v2808, 0
      %2812 = vmatprep.subr.mxu0 0.0
      %2813 = vmatpush1.msra.mxu0 %v788
      %2814 = vmatprep.subr.mxu0 0.0
      %2815 = vmatpush1.msra.mxu0 0.0
      %2816 = vmatprep.subr.mxu0 0.0
      %2817 = vmatpush1.msra.mxu0 0.0
      %2818 = vmatprep.subr.mxu0 0.0
      %2819 = vmatpush1.msra.mxu0 0.0
      %2820 = vmatprep.subr.mxu0 0.0
      %2821 = vmatpush1.msra.mxu0 0.0
      %2822 = vmatprep.subr.mxu0 0.0
      %2823 = vmatpush1.msra.mxu0 0.0
      %2824 = vmatprep.subr.mxu0 0.0
      %2825 = vmatpush1.msra.mxu0 0.0
      %2826 = vmatprep.subr.mxu0 0.0
      %2827 = vmatpush1.msra.mxu0 0.0
      %2828 = vmatprep.subr.mxu0 0.0
      %2829 = vmatpush1.msra.mxu0 0.0
      %2830 = vmatprep.subr.mxu0 0.0
      %2831 = vmatpush1.msra.mxu0 0.0
      %2832 = vmatprep.subr.mxu0 0.0
      %2833 = vmatpush1.msra.mxu0 0.0
      %2834 = vmatprep.subr.mxu0 0.0
      %2835 = vmatpush1.msra.mxu0 0.0
      %2836 = vmatprep.subr.mxu0 0.0
      %2837 = vmatpush1.msra.mxu0 0.0
      %2838 = vmatprep.subr.mxu0 0.0
      %2839 = vmatpush1.msra.mxu0 0.0
      %2840 = vmatprep.subr.mxu0 0.0
      %2841 = vmatpush1.msra.mxu0 0.0
      %2842 = vmatprep.subr.mxu0 0.0
      %2843 = vmatpush1.msra.mxu0 0.0
      %2844 = vmatprep.subr.mxu0 0.0
      %2845 = vmatpush1.msra.mxu0 0.0
      %2846 = vmatprep.subr.mxu0 0.0
      %2847 = vmatpush1.msra.mxu0 0.0
      %2848 = vmatprep.subr.mxu0 0.0
      %2849 = vmatpush1.msra.mxu0 0.0
      %2850 = vmatprep.subr.mxu0 0.0
      %2851 = vmatpush1.msra.mxu0 0.0
      %2852 = vmatprep.subr.mxu0 0.0
      %2853 = vmatpush1.msra.mxu0 0.0
      %2854 = vmatprep.subr.mxu0 0.0
      %2855 = vmatpush1.msra.mxu0 0.0
      %2856 = vmatprep.subr.mxu0 0.0
      %2857 = vmatpush1.msra.mxu0 0.0
      %2858 = vmatprep.subr.mxu0 0.0
      %2859 = vmatpush1.msra.mxu0 0.0
      %2860 = vmatprep.subr.mxu0 0.0
      %2861 = vmatpush1.msra.mxu0 0.0
      %2862 = vmatprep.subr.mxu0 0.0
      %2863 = vmatpush1.msra.mxu0 0.0
      %2864 = vmatprep.subr.mxu0 0.0
      %2865 = vmatpush1.msra.mxu0 0.0
      %2866 = vmatprep.subr.mxu0 0.0
      %2867 = vmatpush1.msra.mxu0 0.0
      %2868 = vmatprep.subr.mxu0 0.0
      %2869 = vmatpush1.msra.mxu0 0.0
      %2870 = vmatprep.subr.mxu0 0.0
      %2871 = vmatpush1.msra.mxu0 0.0
      %2872 = vmatprep.subr.mxu0 0.0
      %2873 = vmatpush1.msra.mxu0 0.0
      %2874 = vmatprep.subr.mxu0 0.0
      %2875 = vmatpush1.msra.mxu0 0.0
      %2876 = vmatprep.mubr.f32.mxu0 0.0
      %2877 = vmatmul.mubr.f32.gmra.mrb[0].mxu0 %v2810
      %v2878 = vpop.f32.mrb[0].mxu0
      %v2879 = vadd.f32 %v789, %v2878
      %v2880 = vpop.f32.mrb[0].mxu0
      %2881 = vdwg.mxu0
      %v2882 = vld [vmem:[%s737] sm:$0x1]
      %v2883 = vmul.f32 %v2879, %v2882
      %vm2884 = vcmask 32768
      %v2885 = vsel %vm2884, %v2883, 0.0
      %2886 = vadd.xlane.f32.xlu0 %v2885
      %v2887 = vpop.xlane.xlu0 %2886
      %vm2888 = vcmask 0
      %2889 = vst.msk [vmem:[%s740] sm:$0x1] %vm2888, %v2887
      %p2890 = scmp.lt.s32.totalorder %s34, 1
      %s2891 = scalar_select %p2890, %s34, 1
      %s2892 = scalar_lea.vmem %s23, %s2891
      // Predicated region
      $region113: #{tpu_custom_call.1} parent=111 // pred_check
        %p2893 = pneg %p550
      $region114: #{tpu_custom_call.1} parent=111 // pred_check_branch
        %2895 = sbr.rel (%p2893) target = $region116
      $region115: #{tpu_custom_call.1} parent=111 // pred_region
        _
      $region116: #{tpu_custom_call.1} parent=111 // pred_fallthru
        _
    $region112: #{tpu_custom_call.1} parent=5 // pred_fallthru
      _
    %p2896 = scmp.le.s32.totalorder 2, %s29
    // Predicated region
    $region117: #{tpu_custom_call.1} parent=5 // pred_check
      %p2897 = pneg %p2896
    $region118: #{tpu_custom_call.1} parent=5 // pred_check_branch
      %2899 = sbr.rel (%p2897) target = $region120
    $region119: #{tpu_custom_call.1} parent=5 // pred_region
      %s2900 = ssub.s32 %s29, 2
      // Predicated region
      $region121: #{tpu_custom_call.1} parent=119 // pred_check
        %p2901 = pneg %p556
      $region122: #{tpu_custom_call.1} parent=119 // pred_check_branch
        %2903 = sbr.rel (%p2901) target = $region124
      $region123: #{tpu_custom_call.1} parent=119 // pred_region
        %p2904 = scmp.lt.s32.totalorder %s35, 1
        %s2905 = scalar_select %p2904, %s35, 1
        %s2906 = scalar_lea.vmem %s23, %s2905
      $region124: #{tpu_custom_call.1} parent=119 // pred_fallthru
        _
    $region120: #{tpu_custom_call.1} parent=5 // pred_fallthru
      _
  $region6: #{tpu_custom_call.1} parent=0 // loop_footer
    %s33 = sadd.s32 1, %s29
  $region7: #{tpu_custom_call.1} parent=0 // loop_footer_branch
    %28 = sbr.rel target = $region3
  $region8: #{tpu_custom_call.1} parent=0 // loop_exit
    _

</llo_original>
